<compile_context>
chip_gen: v6e
topology: v6e:2x2x1
jax: 0.10.0
libtpu: 0.0.40
codegen_flags: <defaults>
</compile_context>

<pallas_src>
import functools

import jax
import jax.numpy as jnp
from jax import lax
from jax.experimental import pallas as pl
from jax.experimental.pallas import tpu as pltpu


def _round_up(x, m):
    return (x + m - 1) // m * m


def _gru_fc_kernel(x_ref,     # (Tc, Bt, D)  time-major chunk of the input
                   wih_ref,   # (D,  3Hg)    input->hidden  [r|z|n] lane slabs
                   whh_ref,   # (Hg, 3Hg)    hidden->hidden [r|z|n] lane slabs
                   bih_ref,   # (1,  3Hg)    b_ih with b_hr/b_hz folded in
                   bhn_ref,   # (1,  Hg)     b_hn (must stay inside the r* term)
                   wfc_ref,   # (Hg, Ap)
                   bfc_ref,   # (1,  Ap)
                   out_ref,   # (Bt, Ap)     written on the last chunk only
                   h_ref,     # (Bt, Hg)     VMEM scratch: hidden-state carry
                   *, t_chunk, tail, unroll):
    c = pl.program_id(1)
    num_chunks = pl.num_programs(1)
    Hg = whh_ref.shape[0]
    f32 = jnp.float32

    @pl.when(c == 0)
    def _init():
        h_ref[...] = jnp.zeros_like(h_ref)

    # Hoisted (1, Hg) bias rows; added via implicit sublane broadcast (cheap),
    # never materialized to (Bt, Hg).
    bi_r = bih_ref[:, 0 * Hg:1 * Hg]
    bi_z = bih_ref[:, 1 * Hg:2 * Hg]
    bi_n = bih_ref[:, 2 * Hg:3 * Hg]
    bh_n = bhn_ref[...]

    def gru_step(t, h):
        x_t = x_ref[t]                                              # (Bt, D)
        # --- r gate ---------------------------------------------------------
        gh_r = jnp.dot(h, whh_ref[:, 0 * Hg:1 * Hg], preferred_element_type=f32)
        gi_r = jnp.dot(x_t, wih_ref[:, 0 * Hg:1 * Hg], preferred_element_type=f32)
        r = jax.nn.sigmoid(gi_r + bi_r + gh_r)
        # --- n gate (consumes r; b_hn inside the r* term, per torch GRU) -----
        gh_n = jnp.dot(h, whh_ref[:, 2 * Hg:3 * Hg], preferred_element_type=f32) + bh_n
        gi_n = jnp.dot(x_t, wih_ref[:, 2 * Hg:3 * Hg], preferred_element_type=f32)
        n = jnp.tanh(gi_n + bi_n + r * gh_n)
        # --- z gate ----------------------------------------------------------
        gh_z = jnp.dot(h, whh_ref[:, 1 * Hg:2 * Hg], preferred_element_type=f32)
        gi_z = jnp.dot(x_t, wih_ref[:, 1 * Hg:2 * Hg], preferred_element_type=f32)
        z = jax.nn.sigmoid(gi_z + bi_z + gh_z)
        # h' = (1 - z) * n + z * h
        return n + z * (h - n)

    def run_chunk(nsteps):
        u = max(1, min(nsteps, unroll))
        h_ref[...] = lax.fori_loop(0, nsteps, gru_step, h_ref[...], unroll=u)

    if tail == 0:
        # Every chunk is full: no masking, no select anywhere.
        run_chunk(t_chunk)
    else:
        # Only the last chunk is short; run a statically shorter loop there.
        is_last = c == num_chunks - 1

        @pl.when(jnp.logical_not(is_last))
        def _full():
            run_chunk(t_chunk)

        @pl.when(is_last)
        def _partial():
            run_chunk(tail)

    @pl.when(c == num_chunks - 1)
    def _final():
        out_ref[...] = (jnp.dot(h_ref[...], wfc_ref[...],
                                preferred_element_type=f32)
                        + bfc_ref[...])


@functools.partial(jax.jit, static_argnames=("t_chunk",))
def qnetwork_rnn_forward(x, w_ih, w_hh, b_ih, b_hh, w_fc, b_fc, *, t_chunk=32):
    """x: (B, T, D) batch-first float32 (or (B, D), which is unsqueezed)."""
    if x.ndim == 2:
        x = x[:, None, :]                                  # x.unsqueeze(1)
    B, T, D = x.shape
    H = w_hh.shape[1]
    A = w_fc.shape[0]
    f32 = jnp.float32

    # ---- Padded / tiled sizes ------------------------------------------------
    Hg = _round_up(H, 128)                                 # lane-aligned gate slabs
    Ap = _round_up(A, 128)                                 # lane-dense output store
    B8 = _round_up(B, 8)

    kind = ""
    try:
        kind = jax.devices()[0].device_kind.lower()
    except Exception:
        pass
    # 256-row batch tiles fill the 256-wide MXU on v6e/v7x; keep 128 on v4/v5.
    bt_cap = 128 if ("v5" in kind or "v4" in kind or "v3" in kind) else 256
    if B8 <= bt_cap:
        Bt, Bp = B8, B8
    else:
        Bt, Bp = bt_cap, _round_up(B, bt_cap)

    tc = max(1, min(t_chunk, T))
    num_chunks = pl.cdiv(T, tc)
    Tp = num_chunks * tc
    tail = T % tc                                          # 0 => all chunks full
    unroll = max(1, min(8, tc))

    # ---- Pack weights: (K, 3*Hg), gates [r|z|n], each slab 128-lane aligned ---
    def pack_gates(w, k_pad):
        K = w.shape[1]
        w3 = w.astype(f32).reshape(3, H, K)
        out = jnp.zeros((3, Hg, k_pad), f32).at[:, :H, :K].set(w3)
        return jnp.transpose(out, (2, 0, 1)).reshape(k_pad, 3 * Hg)

    wih_p = pack_gates(w_ih, D)                            # (D,  3Hg)
    whh_p = pack_gates(w_hh, Hg)                           # (Hg, 3Hg)  (padded rows = 0)

    # Fold b_hr / b_hz into b_ir / b_iz; keep b_hn separate (inside r* term).
    bi3 = b_ih.astype(f32).reshape(3, H)
    bh3 = b_hh.astype(f32).reshape(3, H)
    bi_fold = bi3.at[0].add(bh3[0]).at[1].add(bh3[1])
    bih_p = jnp.zeros((3, Hg), f32).at[:, :H].set(bi_fold).reshape(1, 3 * Hg)
    bhn_p = jnp.zeros((1, Hg), f32).at[0, :H].set(bh3[2])

    wfc_p = jnp.zeros((Hg, Ap), f32).at[:H, :A].set(w_fc.astype(f32).T)
    bfc_p = jnp.zeros((1, Ap), f32).at[0, :A].set(b_fc.astype(f32))

    # ---- Time-major input; pad only when actually needed ----------------------
    x_tm = jnp.transpose(x.astype(f32), (1, 0, 2))         # (T, B, D)
    if (Tp != T) or (Bp != B):
        x_p = jnp.pad(x_tm, ((0, Tp - T), (0, Bp - B), (0, 0)))
    else:
        x_p = x_tm

    # ---- VMEM budget, clamped to the actual device capacity (v7x = 64 MiB) ----
    est_bytes = 4 * (
        2 * tc * Bt * D                 # x chunk, double-buffered
        + 2 * D * 3 * Hg                # W_ih
        + 2 * Hg * 3 * Hg               # W_hh
        + 2 * (3 * Hg + Hg)             # biases
        + 2 * (Hg * Ap + Ap)            # FC weight + bias
        + 2 * Bt * Ap                   # output block
        + Bt * Hg                       # hidden-state scratch
        + 10 * Bt * Hg + 2 * Bt * D     # gate-math working set / spill slack
    )
    try:
        vmem_cap = int(pltpu.get_tpu_info().vmem_capacity_bytes)
    except Exception:
        vmem_cap = 64 * 2**20
    vmem_limit = max(est_bytes * 3 // 2, 32 * 2**20)
    vmem_limit = int(min(vmem_limit, int(vmem_cap * 0.9)))

    kernel = functools.partial(_gru_fc_kernel, t_chunk=tc, tail=tail, unroll=unroll)

    out = pl.pallas_call(
        kernel,
        out_shape=jax.ShapeDtypeStruct((Bp, Ap), f32),
        grid_spec=pltpu.PrefetchScalarGridSpec(
            num_scalar_prefetch=0,
            grid=(Bp // Bt, num_chunks),
            in_specs=[
                pl.BlockSpec((tc, Bt, D), lambda b, c: (c, b, 0)),   # stream x chunks
                pl.BlockSpec((D, 3 * Hg), lambda b, c: (0, 0)),
                pl.BlockSpec((Hg, 3 * Hg), lambda b, c: (0, 0)),
                pl.BlockSpec((1, 3 * Hg), lambda b, c: (0, 0)),
                pl.BlockSpec((1, Hg), lambda b, c: (0, 0)),
                pl.BlockSpec((Hg, Ap), lambda b, c: (0, 0)),
                pl.BlockSpec((1, Ap), lambda b, c: (0, 0)),
            ],
            out_specs=pl.BlockSpec((Bt, Ap), lambda b, c: (b, 0)),
            scratch_shapes=[pltpu.VMEM((Bt, Hg), jnp.float32)],      # hidden carry
        ),
        compiler_params=pltpu.CompilerParams(
            dimension_semantics=("parallel", "arbitrary"),
            vmem_limit_bytes=vmem_limit,
        ),
    )(x_p, wih_p, whh_p, bih_p, bhn_p, wfc_p, bfc_p)

    return out[:B, :A]


def _reference_forward(x, w_ih, w_hh, b_ih, b_hh, w_fc, b_fc):
    """Pure-JAX reference matching torch.nn.GRU + Linear."""
    if x.ndim == 2:
        x = x[:, None, :]
    B, T, D = x.shape
    H = w_hh.shape[1]
    h = jnp.zeros((B, H), jnp.float32)
    for t in range(T):
        x_t = x[:, t, :]
        gi = x_t @ w_ih.T + b_ih
        gh = h @ w_hh.T + b_hh
        r = jax.nn.sigmoid(gi[:, :H] + gh[:, :H])
        z = jax.nn.sigmoid(gi[:, H:2 * H] + gh[:, H:2 * H])
        n = jnp.tanh(gi[:, 2 * H:] + r * gh[:, 2 * H:])
        h = (1.0 - z) * n + z * h
    return h @ w_fc.T + b_fc


if __name__ == "__main__":
    # Small shapes consistent with the module's forward.
    B, T = 2, 8            # batch, sequence length
    D, H, A = 16, 32, 4    # input_dim, hidden_dim, action_dim

    key = jax.random.PRNGKey(0)
    ks = jax.random.split(key, 8)
    bound = 1.0 / jnp.sqrt(H)   # PyTorch default uniform init bound for GRU/Linear

    x = jax.random.normal(ks[0], (B, T, D), dtype=jnp.float32)
    w_ih = jax.random.uniform(ks[1], (3 * H, D), jnp.float32, -bound, bound)
    w_hh = jax.random.uniform(ks[2], (3 * H, H), jnp.float32, -bound, bound)
    b_ih = jax.random.uniform(ks[3], (3 * H,), jnp.float32, -bound, bound)
    b_hh = jax.random.uniform(ks[4], (3 * H,), jnp.float32, -bound, bound)
    w_fc = jax.random.uniform(ks[5], (A, H), jnp.float32, -bound, bound)
    b_fc = jax.random.uniform(ks[6], (A,), jnp.float32, -bound, bound)

    # 3-D (B, T, D) input path (single chunk).
    out = jax.block_until_ready(
        qnetwork_rnn_forward(x, w_ih, w_hh, b_ih, b_hh, w_fc, b_fc))
    ref = _reference_forward(x, w_ih, w_hh, b_ih, b_hh, w_fc, b_fc)
    assert out.shape == (B, A)
    assert jnp.allclose(out, ref, atol=1e-4, rtol=1e-4), (out, ref)

    # 2-D (B, D) input path (x.unsqueeze(1) equivalent).
    x2 = x[:, 0, :]
    out2 = jax.block_until_ready(
        qnetwork_rnn_forward(x2, w_ih, w_hh, b_ih, b_hh, w_fc, b_fc))
    ref2 = _reference_forward(x2, w_ih, w_hh, b_ih, b_hh, w_fc, b_fc)
    assert out2.shape == (B, A)
    assert jnp.allclose(out2, ref2, atol=1e-4, rtol=1e-4), (out2, ref2)

    # Multi-chunk + ragged tail path (T=20 with t_chunk=8 -> chunks 8, 8, 4).
    x3 = jax.random.normal(ks[7], (B, 20, D), dtype=jnp.float32)
    out3 = jax.block_until_ready(
        qnetwork_rnn_forward(x3, w_ih, w_hh, b_ih, b_hh, w_fc, b_fc, t_chunk=8))
    ref3 = _reference_forward(x3, w_ih, w_hh, b_ih, b_hh, w_fc, b_fc)
    assert out3.shape == (B, A)
    assert jnp.allclose(out3, ref3, atol=1e-4, rtol=1e-4), (out3, ref3)

    print("KERNEL_OK")
</pallas_src>

<mosaic_0001>
module attributes {stable_mosaic.version = 11 : i64} {
  func.func @_gru_fc_kernel(%arg0: i32, %arg1: i32, %arg2: memref<8x8x16xf32, #tpu.memory_space<vmem>>, %arg3: memref<16x384xf32, #tpu.memory_space<vmem>>, %arg4: memref<128x384xf32, #tpu.memory_space<vmem>>, %arg5: memref<1x384xf32, #tpu.memory_space<vmem>>, %arg6: memref<1x128xf32, #tpu.memory_space<vmem>>, %arg7: memref<128x128xf32, #tpu.memory_space<vmem>>, %arg8: memref<1x128xf32, #tpu.memory_space<vmem>>, %arg9: memref<8x128xf32, #tpu.memory_space<vmem>>, %arg10: memref<8x128xf32, #tpu.memory_space<vmem>>) attributes {dimension_semantics = [#tpu.dimension_semantics<parallel>, #tpu.dimension_semantics<arbitrary>], iteration_bounds = array<i64: 1, 1>, scalar_prefetch = 0 : i64, scratch_operands = 1 : i64, tpu.core_type = #tpu.core_type<tc>, window_params = [{transform_indices = @transform_0, window_bounds = array<i64: 8, 8, 16>}, {pipeline_mode = #tpu.pipeline_mode<synchronous>, transform_indices = @transform_1, window_bounds = array<i64: 16, 384>}, {pipeline_mode = #tpu.pipeline_mode<synchronous>, transform_indices = @transform_2, window_bounds = array<i64: 128, 384>}, {pipeline_mode = #tpu.pipeline_mode<synchronous>, transform_indices = @transform_3, window_bounds = array<i64: 1, 384>}, {pipeline_mode = #tpu.pipeline_mode<synchronous>, transform_indices = @transform_4, window_bounds = array<i64: 1, 128>}, {pipeline_mode = #tpu.pipeline_mode<synchronous>, transform_indices = @transform_5, window_bounds = array<i64: 128, 128>}, {pipeline_mode = #tpu.pipeline_mode<synchronous>, transform_indices = @transform_6, window_bounds = array<i64: 1, 128>}, {transform_indices = @transform_7, window_bounds = array<i64: 8, 128>}]} {
    %c0_i32 = arith.constant 0 : i32
    %0 = arith.cmpi eq, %arg1, %c0_i32 : i32
    %1 = arith.extui %0 : i1 to i32
    %c0_i32_0 = arith.constant 0 : i32
    %2 = arith.cmpi ne, %1, %c0_i32_0 : i32
    scf.if %2 {
      %cst_188 = arith.constant 0.000000e+00 : f32
      %340 = vector.broadcast %cst_188 : f32 to vector<8x128xf32>
      %c0_189 = arith.constant 0 : index
      %c0_190 = arith.constant 0 : index
      %341 = vector.load %arg10[%c0_189, %c0_190] : memref<8x128xf32, #tpu.memory_space<vmem>>, vector<8x128xf32>
      tpu.vector_store %arg10[%c0_189, %c0_190], %340 {strides = array<i32>} : memref<8x128xf32, #tpu.memory_space<vmem>>, vector<8x128xf32>,
    } else {
    }
    %c0 = arith.constant 0 : index
    %c0_1 = arith.constant 0 : index
    %3 = vector.load %arg5[%c0, %c0_1] : memref<1x384xf32, #tpu.memory_space<vmem>>, vector<1x128xf32>
    %c0_2 = arith.constant 0 : index
    %c128 = arith.constant 128 : index
    %4 = vector.load %arg5[%c0_2, %c128] : memref<1x384xf32, #tpu.memory_space<vmem>>, vector<1x128xf32>
    %c0_3 = arith.constant 0 : index
    %c256 = arith.constant 256 : index
    %5 = vector.load %arg5[%c0_3, %c256] : memref<1x384xf32, #tpu.memory_space<vmem>>, vector<1x128xf32>
    %c0_4 = arith.constant 0 : index
    %c0_5 = arith.constant 0 : index
    %6 = vector.load %arg6[%c0_4, %c0_5] : memref<1x128xf32, #tpu.memory_space<vmem>>, vector<1x128xf32>
    %c0_6 = arith.constant 0 : index
    %c0_7 = arith.constant 0 : index
    %7 = vector.load %arg10[%c0_6, %c0_7] : memref<8x128xf32, #tpu.memory_space<vmem>>, vector<8x128xf32>
    %c0_i32_8 = arith.constant 0 : i32
    %8 = arith.index_cast %c0_i32_8 : i32 to index
    %c0_9 = arith.constant 0 : index
    %c0_10 = arith.constant 0 : index
    %9 = vector.load %arg2[%8, %c0_9, %c0_10] : memref<8x8x16xf32, #tpu.memory_space<vmem>>, vector<1x8x16xf32>
    %10 = vector.shape_cast %9 : vector<1x8x16xf32> to vector<8x16xf32>
    %c0_11 = arith.constant 0 : index
    %c0_12 = arith.constant 0 : index
    %11 = vector.load %arg4[%c0_11, %c0_12] : memref<128x384xf32, #tpu.memory_space<vmem>>, vector<128x128xf32>
    %cst = arith.constant dense<0.000000e+00> : vector<8x128xf32>
    %12 = tpu.matmul %7, %11, %cst {dimension_numbers = #tpu.dot_dimension_numbers<[1], [0], [0], [1], [0, 0, 1, 1], [], []>} : vector<8x128xf32>, vector<128x128xf32>, vector<8x128xf32> -> vector<8x128xf32>
    %c0_13 = arith.constant 0 : index
    %c0_14 = arith.constant 0 : index
    %13 = vector.load %arg3[%c0_13, %c0_14] : memref<16x384xf32, #tpu.memory_space<vmem>>, vector<16x128xf32>
    %cst_15 = arith.constant dense<0.000000e+00> : vector<8x128xf32>
    %14 = tpu.matmul %10, %13, %cst_15 {dimension_numbers = #tpu.dot_dimension_numbers<[1], [0], [0], [1], [0, 0, 1, 1], [], []>} : vector<8x16xf32>, vector<16x128xf32>, vector<8x128xf32> -> vector<8x128xf32>
    %15 = vector.broadcast %3 : vector<1x128xf32> to vector<8x128xf32>
    %16 = arith.addf %14, %15 : vector<8x128xf32>
    %17 = arith.addf %16, %12 : vector<8x128xf32>
    %18 = arith.negf %17 : vector<8x128xf32>
    %19 = math.exp %18 : vector<8x128xf32>
    %cst_16 = arith.constant 1.000000e+00 : f32
    %20 = vector.broadcast %cst_16 : f32 to vector<8x128xf32>
    %21 = arith.addf %20, %19 : vector<8x128xf32>
    %22 = arith.divf %20, %21 : vector<8x128xf32>
    %c0_17 = arith.constant 0 : index
    %c256_18 = arith.constant 256 : index
    %23 = vector.load %arg4[%c0_17, %c256_18] : memref<128x384xf32, #tpu.memory_space<vmem>>, vector<128x128xf32>
    %cst_19 = arith.constant dense<0.000000e+00> : vector<8x128xf32>
    %24 = tpu.matmul %7, %23, %cst_19 {dimension_numbers = #tpu.dot_dimension_numbers<[1], [0], [0], [1], [0, 0, 1, 1], [], []>} : vector<8x128xf32>, vector<128x128xf32>, vector<8x128xf32> -> vector<8x128xf32>
    %25 = vector.broadcast %6 : vector<1x128xf32> to vector<8x128xf32>
    %26 = arith.addf %24, %25 : vector<8x128xf32>
    %c0_20 = arith.constant 0 : index
    %c256_21 = arith.constant 256 : index
    %27 = vector.load %arg3[%c0_20, %c256_21] : memref<16x384xf32, #tpu.memory_space<vmem>>, vector<16x128xf32>
    %cst_22 = arith.constant dense<0.000000e+00> : vector<8x128xf32>
    %28 = tpu.matmul %10, %27, %cst_22 {dimension_numbers = #tpu.dot_dimension_numbers<[1], [0], [0], [1], [0, 0, 1, 1], [], []>} : vector<8x16xf32>, vector<16x128xf32>, vector<8x128xf32> -> vector<8x128xf32>
    %29 = vector.broadcast %5 : vector<1x128xf32> to vector<8x128xf32>
    %30 = arith.addf %28, %29 : vector<8x128xf32>
    %31 = arith.mulf %22, %26 : vector<8x128xf32>
    %32 = arith.addf %30, %31 : vector<8x128xf32>
    %33 = math.tanh %32 : vector<8x128xf32>
    %c0_23 = arith.constant 0 : index
    %c128_24 = arith.constant 128 : index
    %34 = vector.load %arg4[%c0_23, %c128_24] : memref<128x384xf32, #tpu.memory_space<vmem>>, vector<128x128xf32>
    %cst_25 = arith.constant dense<0.000000e+00> : vector<8x128xf32>
    %35 = tpu.matmul %7, %34, %cst_25 {dimension_numbers = #tpu.dot_dimension_numbers<[1], [0], [0], [1], [0, 0, 1, 1], [], []>} : vector<8x128xf32>, vector<128x128xf32>, vector<8x128xf32> -> vector<8x128xf32>
    %c0_26 = arith.constant 0 : index
    %c128_27 = arith.constant 128 : index
    %36 = vector.load %arg3[%c0_26, %c128_27] : memref<16x384xf32, #tpu.memory_space<vmem>>, vector<16x128xf32>
    %cst_28 = arith.constant dense<0.000000e+00> : vector<8x128xf32>
    %37 = tpu.matmul %10, %36, %cst_28 {dimension_numbers = #tpu.dot_dimension_numbers<[1], [0], [0], [1], [0, 0, 1, 1], [], []>} : vector<8x16xf32>, vector<16x128xf32>, vector<8x128xf32> -> vector<8x128xf32>
    %38 = vector.broadcast %4 : vector<1x128xf32> to vector<8x128xf32>
    %39 = arith.addf %37, %38 : vector<8x128xf32>
    %40 = arith.addf %39, %35 : vector<8x128xf32>
    %41 = arith.negf %40 : vector<8x128xf32>
    %42 = math.exp %41 : vector<8x128xf32>
    %cst_29 = arith.constant 1.000000e+00 : f32
    %43 = vector.broadcast %cst_29 : f32 to vector<8x128xf32>
    %44 = arith.addf %43, %42 : vector<8x128xf32>
    %45 = arith.divf %43, %44 : vector<8x128xf32>
    %46 = arith.subf %7, %33 : vector<8x128xf32>
    %47 = arith.mulf %45, %46 : vector<8x128xf32>
    %48 = arith.addf %33, %47 : vector<8x128xf32>
    %c1_i32 = arith.constant 1 : i32
    %49 = arith.index_cast %c1_i32 : i32 to index
    %c0_30 = arith.constant 0 : index
    %c0_31 = arith.constant 0 : index
    %50 = vector.load %arg2[%49, %c0_30, %c0_31] : memref<8x8x16xf32, #tpu.memory_space<vmem>>, vector<1x8x16xf32>
    %51 = vector.shape_cast %50 : vector<1x8x16xf32> to vector<8x16xf32>
    %c0_32 = arith.constant 0 : index
    %c0_33 = arith.constant 0 : index
    %52 = vector.load %arg4[%c0_32, %c0_33] : memref<128x384xf32, #tpu.memory_space<vmem>>, vector<128x128xf32>
    %cst_34 = arith.constant dense<0.000000e+00> : vector<8x128xf32>
    %53 = tpu.matmul %48, %52, %cst_34 {dimension_numbers = #tpu.dot_dimension_numbers<[1], [0], [0], [1], [0, 0, 1, 1], [], []>} : vector<8x128xf32>, vector<128x128xf32>, vector<8x128xf32> -> vector<8x128xf32>
    %c0_35 = arith.constant 0 : index
    %c0_36 = arith.constant 0 : index
    %54 = vector.load %arg3[%c0_35, %c0_36] : memref<16x384xf32, #tpu.memory_space<vmem>>, vector<16x128xf32>
    %cst_37 = arith.constant dense<0.000000e+00> : vector<8x128xf32>
    %55 = tpu.matmul %51, %54, %cst_37 {dimension_numbers = #tpu.dot_dimension_numbers<[1], [0], [0], [1], [0, 0, 1, 1], [], []>} : vector<8x16xf32>, vector<16x128xf32>, vector<8x128xf32> -> vector<8x128xf32>
    %56 = vector.broadcast %3 : vector<1x128xf32> to vector<8x128xf32>
    %57 = arith.addf %55, %56 : vector<8x128xf32>
    %58 = arith.addf %57, %53 : vector<8x128xf32>
    %59 = arith.negf %58 : vector<8x128xf32>
    %60 = math.exp %59 : vector<8x128xf32>
    %cst_38 = arith.constant 1.000000e+00 : f32
    %61 = vector.broadcast %cst_38 : f32 to vector<8x128xf32>
    %62 = arith.addf %61, %60 : vector<8x128xf32>
    %63 = arith.divf %61, %62 : vector<8x128xf32>
    %c0_39 = arith.constant 0 : index
    %c256_40 = arith.constant 256 : index
    %64 = vector.load %arg4[%c0_39, %c256_40] : memref<128x384xf32, #tpu.memory_space<vmem>>, vector<128x128xf32>
    %cst_41 = arith.constant dense<0.000000e+00> : vector<8x128xf32>
    %65 = tpu.matmul %48, %64, %cst_41 {dimension_numbers = #tpu.dot_dimension_numbers<[1], [0], [0], [1], [0, 0, 1, 1], [], []>} : vector<8x128xf32>, vector<128x128xf32>, vector<8x128xf32> -> vector<8x128xf32>
    %66 = vector.broadcast %6 : vector<1x128xf32> to vector<8x128xf32>
    %67 = arith.addf %65, %66 : vector<8x128xf32>
    %c0_42 = arith.constant 0 : index
    %c256_43 = arith.constant 256 : index
    %68 = vector.load %arg3[%c0_42, %c256_43] : memref<16x384xf32, #tpu.memory_space<vmem>>, vector<16x128xf32>
    %cst_44 = arith.constant dense<0.000000e+00> : vector<8x128xf32>
    %69 = tpu.matmul %51, %68, %cst_44 {dimension_numbers = #tpu.dot_dimension_numbers<[1], [0], [0], [1], [0, 0, 1, 1], [], []>} : vector<8x16xf32>, vector<16x128xf32>, vector<8x128xf32> -> vector<8x128xf32>
    %70 = vector.broadcast %5 : vector<1x128xf32> to vector<8x128xf32>
    %71 = arith.addf %69, %70 : vector<8x128xf32>
    %72 = arith.mulf %63, %67 : vector<8x128xf32>
    %73 = arith.addf %71, %72 : vector<8x128xf32>
    %74 = math.tanh %73 : vector<8x128xf32>
    %c0_45 = arith.constant 0 : index
    %c128_46 = arith.constant 128 : index
    %75 = vector.load %arg4[%c0_45, %c128_46] : memref<128x384xf32, #tpu.memory_space<vmem>>, vector<128x128xf32>
    %cst_47 = arith.constant dense<0.000000e+00> : vector<8x128xf32>
    %76 = tpu.matmul %48, %75, %cst_47 {dimension_numbers = #tpu.dot_dimension_numbers<[1], [0], [0], [1], [0, 0, 1, 1], [], []>} : vector<8x128xf32>, vector<128x128xf32>, vector<8x128xf32> -> vector<8x128xf32>
    %c0_48 = arith.constant 0 : index
    %c128_49 = arith.constant 128 : index
    %77 = vector.load %arg3[%c0_48, %c128_49] : memref<16x384xf32, #tpu.memory_space<vmem>>, vector<16x128xf32>
    %cst_50 = arith.constant dense<0.000000e+00> : vector<8x128xf32>
    %78 = tpu.matmul %51, %77, %cst_50 {dimension_numbers = #tpu.dot_dimension_numbers<[1], [0], [0], [1], [0, 0, 1, 1], [], []>} : vector<8x16xf32>, vector<16x128xf32>, vector<8x128xf32> -> vector<8x128xf32>
    %79 = vector.broadcast %4 : vector<1x128xf32> to vector<8x128xf32>
    %80 = arith.addf %78, %79 : vector<8x128xf32>
    %81 = arith.addf %80, %76 : vector<8x128xf32>
    %82 = arith.negf %81 : vector<8x128xf32>
    %83 = math.exp %82 : vector<8x128xf32>
    %cst_51 = arith.constant 1.000000e+00 : f32
    %84 = vector.broadcast %cst_51 : f32 to vector<8x128xf32>
    %85 = arith.addf %84, %83 : vector<8x128xf32>
    %86 = arith.divf %84, %85 : vector<8x128xf32>
    %87 = arith.subf %48, %74 : vector<8x128xf32>
    %88 = arith.mulf %86, %87 : vector<8x128xf32>
    %89 = arith.addf %74, %88 : vector<8x128xf32>
    %c2_i32 = arith.constant 2 : i32
    %90 = arith.index_cast %c2_i32 : i32 to index
    %c0_52 = arith.constant 0 : index
    %c0_53 = arith.constant 0 : index
    %91 = vector.load %arg2[%90, %c0_52, %c0_53] : memref<8x8x16xf32, #tpu.memory_space<vmem>>, vector<1x8x16xf32>
    %92 = vector.shape_cast %91 : vector<1x8x16xf32> to vector<8x16xf32>
    %c0_54 = arith.constant 0 : index
    %c0_55 = arith.constant 0 : index
    %93 = vector.load %arg4[%c0_54, %c0_55] : memref<128x384xf32, #tpu.memory_space<vmem>>, vector<128x128xf32>
    %cst_56 = arith.constant dense<0.000000e+00> : vector<8x128xf32>
    %94 = tpu.matmul %89, %93, %cst_56 {dimension_numbers = #tpu.dot_dimension_numbers<[1], [0], [0], [1], [0, 0, 1, 1], [], []>} : vector<8x128xf32>, vector<128x128xf32>, vector<8x128xf32> -> vector<8x128xf32>
    %c0_57 = arith.constant 0 : index
    %c0_58 = arith.constant 0 : index
    %95 = vector.load %arg3[%c0_57, %c0_58] : memref<16x384xf32, #tpu.memory_space<vmem>>, vector<16x128xf32>
    %cst_59 = arith.constant dense<0.000000e+00> : vector<8x128xf32>
    %96 = tpu.matmul %92, %95, %cst_59 {dimension_numbers = #tpu.dot_dimension_numbers<[1], [0], [0], [1], [0, 0, 1, 1], [], []>} : vector<8x16xf32>, vector<16x128xf32>, vector<8x128xf32> -> vector<8x128xf32>
    %97 = vector.broadcast %3 : vector<1x128xf32> to vector<8x128xf32>
    %98 = arith.addf %96, %97 : vector<8x128xf32>
    %99 = arith.addf %98, %94 : vector<8x128xf32>
    %100 = arith.negf %99 : vector<8x128xf32>
    %101 = math.exp %100 : vector<8x128xf32>
    %cst_60 = arith.constant 1.000000e+00 : f32
    %102 = vector.broadcast %cst_60 : f32 to vector<8x128xf32>
    %103 = arith.addf %102, %101 : vector<8x128xf32>
    %104 = arith.divf %102, %103 : vector<8x128xf32>
    %c0_61 = arith.constant 0 : index
    %c256_62 = arith.constant 256 : index
    %105 = vector.load %arg4[%c0_61, %c256_62] : memref<128x384xf32, #tpu.memory_space<vmem>>, vector<128x128xf32>
    %cst_63 = arith.constant dense<0.000000e+00> : vector<8x128xf32>
    %106 = tpu.matmul %89, %105, %cst_63 {dimension_numbers = #tpu.dot_dimension_numbers<[1], [0], [0], [1], [0, 0, 1, 1], [], []>} : vector<8x128xf32>, vector<128x128xf32>, vector<8x128xf32> -> vector<8x128xf32>
    %107 = vector.broadcast %6 : vector<1x128xf32> to vector<8x128xf32>
    %108 = arith.addf %106, %107 : vector<8x128xf32>
    %c0_64 = arith.constant 0 : index
    %c256_65 = arith.constant 256 : index
    %109 = vector.load %arg3[%c0_64, %c256_65] : memref<16x384xf32, #tpu.memory_space<vmem>>, vector<16x128xf32>
    %cst_66 = arith.constant dense<0.000000e+00> : vector<8x128xf32>
    %110 = tpu.matmul %92, %109, %cst_66 {dimension_numbers = #tpu.dot_dimension_numbers<[1], [0], [0], [1], [0, 0, 1, 1], [], []>} : vector<8x16xf32>, vector<16x128xf32>, vector<8x128xf32> -> vector<8x128xf32>
    %111 = vector.broadcast %5 : vector<1x128xf32> to vector<8x128xf32>
    %112 = arith.addf %110, %111 : vector<8x128xf32>
    %113 = arith.mulf %104, %108 : vector<8x128xf32>
    %114 = arith.addf %112, %113 : vector<8x128xf32>
    %115 = math.tanh %114 : vector<8x128xf32>
    %c0_67 = arith.constant 0 : index
    %c128_68 = arith.constant 128 : index
    %116 = vector.load %arg4[%c0_67, %c128_68] : memref<128x384xf32, #tpu.memory_space<vmem>>, vector<128x128xf32>
    %cst_69 = arith.constant dense<0.000000e+00> : vector<8x128xf32>
    %117 = tpu.matmul %89, %116, %cst_69 {dimension_numbers = #tpu.dot_dimension_numbers<[1], [0], [0], [1], [0, 0, 1, 1], [], []>} : vector<8x128xf32>, vector<128x128xf32>, vector<8x128xf32> -> vector<8x128xf32>
    %c0_70 = arith.constant 0 : index
    %c128_71 = arith.constant 128 : index
    %118 = vector.load %arg3[%c0_70, %c128_71] : memref<16x384xf32, #tpu.memory_space<vmem>>, vector<16x128xf32>
    %cst_72 = arith.constant dense<0.000000e+00> : vector<8x128xf32>
    %119 = tpu.matmul %92, %118, %cst_72 {dimension_numbers = #tpu.dot_dimension_numbers<[1], [0], [0], [1], [0, 0, 1, 1], [], []>} : vector<8x16xf32>, vector<16x128xf32>, vector<8x128xf32> -> vector<8x128xf32>
    %120 = vector.broadcast %4 : vector<1x128xf32> to vector<8x128xf32>
    %121 = arith.addf %119, %120 : vector<8x128xf32>
    %122 = arith.addf %121, %117 : vector<8x128xf32>
    %123 = arith.negf %122 : vector<8x128xf32>
    %124 = math.exp %123 : vector<8x128xf32>
    %cst_73 = arith.constant 1.000000e+00 : f32
    %125 = vector.broadcast %cst_73 : f32 to vector<8x128xf32>
    %126 = arith.addf %125, %124 : vector<8x128xf32>
    %127 = arith.divf %125, %126 : vector<8x128xf32>
    %128 = arith.subf %89, %115 : vector<8x128xf32>
    %129 = arith.mulf %127, %128 : vector<8x128xf32>
    %130 = arith.addf %115, %129 : vector<8x128xf32>
    %c3_i32 = arith.constant 3 : i32
    %131 = arith.index_cast %c3_i32 : i32 to index
    %c0_74 = arith.constant 0 : index
    %c0_75 = arith.constant 0 : index
    %132 = vector.load %arg2[%131, %c0_74, %c0_75] : memref<8x8x16xf32, #tpu.memory_space<vmem>>, vector<1x8x16xf32>
    %133 = vector.shape_cast %132 : vector<1x8x16xf32> to vector<8x16xf32>
    %c0_76 = arith.constant 0 : index
    %c0_77 = arith.constant 0 : index
    %134 = vector.load %arg4[%c0_76, %c0_77] : memref<128x384xf32, #tpu.memory_space<vmem>>, vector<128x128xf32>
    %cst_78 = arith.constant dense<0.000000e+00> : vector<8x128xf32>
    %135 = tpu.matmul %130, %134, %cst_78 {dimension_numbers = #tpu.dot_dimension_numbers<[1], [0], [0], [1], [0, 0, 1, 1], [], []>} : vector<8x128xf32>, vector<128x128xf32>, vector<8x128xf32> -> vector<8x128xf32>
    %c0_79 = arith.constant 0 : index
    %c0_80 = arith.constant 0 : index
    %136 = vector.load %arg3[%c0_79, %c0_80] : memref<16x384xf32, #tpu.memory_space<vmem>>, vector<16x128xf32>
    %cst_81 = arith.constant dense<0.000000e+00> : vector<8x128xf32>
    %137 = tpu.matmul %133, %136, %cst_81 {dimension_numbers = #tpu.dot_dimension_numbers<[1], [0], [0], [1], [0, 0, 1, 1], [], []>} : vector<8x16xf32>, vector<16x128xf32>, vector<8x128xf32> -> vector<8x128xf32>
    %138 = vector.broadcast %3 : vector<1x128xf32> to vector<8x128xf32>
    %139 = arith.addf %137, %138 : vector<8x128xf32>
    %140 = arith.addf %139, %135 : vector<8x128xf32>
    %141 = arith.negf %140 : vector<8x128xf32>
    %142 = math.exp %141 : vector<8x128xf32>
    %cst_82 = arith.constant 1.000000e+00 : f32
    %143 = vector.broadcast %cst_82 : f32 to vector<8x128xf32>
    %144 = arith.addf %143, %142 : vector<8x128xf32>
    %145 = arith.divf %143, %144 : vector<8x128xf32>
    %c0_83 = arith.constant 0 : index
    %c256_84 = arith.constant 256 : index
    %146 = vector.load %arg4[%c0_83, %c256_84] : memref<128x384xf32, #tpu.memory_space<vmem>>, vector<128x128xf32>
    %cst_85 = arith.constant dense<0.000000e+00> : vector<8x128xf32>
    %147 = tpu.matmul %130, %146, %cst_85 {dimension_numbers = #tpu.dot_dimension_numbers<[1], [0], [0], [1], [0, 0, 1, 1], [], []>} : vector<8x128xf32>, vector<128x128xf32>, vector<8x128xf32> -> vector<8x128xf32>
    %148 = vector.broadcast %6 : vector<1x128xf32> to vector<8x128xf32>
    %149 = arith.addf %147, %148 : vector<8x128xf32>
    %c0_86 = arith.constant 0 : index
    %c256_87 = arith.constant 256 : index
    %150 = vector.load %arg3[%c0_86, %c256_87] : memref<16x384xf32, #tpu.memory_space<vmem>>, vector<16x128xf32>
    %cst_88 = arith.constant dense<0.000000e+00> : vector<8x128xf32>
    %151 = tpu.matmul %133, %150, %cst_88 {dimension_numbers = #tpu.dot_dimension_numbers<[1], [0], [0], [1], [0, 0, 1, 1], [], []>} : vector<8x16xf32>, vector<16x128xf32>, vector<8x128xf32> -> vector<8x128xf32>
    %152 = vector.broadcast %5 : vector<1x128xf32> to vector<8x128xf32>
    %153 = arith.addf %151, %152 : vector<8x128xf32>
    %154 = arith.mulf %145, %149 : vector<8x128xf32>
    %155 = arith.addf %153, %154 : vector<8x128xf32>
    %156 = math.tanh %155 : vector<8x128xf32>
    %c0_89 = arith.constant 0 : index
    %c128_90 = arith.constant 128 : index
    %157 = vector.load %arg4[%c0_89, %c128_90] : memref<128x384xf32, #tpu.memory_space<vmem>>, vector<128x128xf32>
    %cst_91 = arith.constant dense<0.000000e+00> : vector<8x128xf32>
    %158 = tpu.matmul %130, %157, %cst_91 {dimension_numbers = #tpu.dot_dimension_numbers<[1], [0], [0], [1], [0, 0, 1, 1], [], []>} : vector<8x128xf32>, vector<128x128xf32>, vector<8x128xf32> -> vector<8x128xf32>
    %c0_92 = arith.constant 0 : index
    %c128_93 = arith.constant 128 : index
    %159 = vector.load %arg3[%c0_92, %c128_93] : memref<16x384xf32, #tpu.memory_space<vmem>>, vector<16x128xf32>
    %cst_94 = arith.constant dense<0.000000e+00> : vector<8x128xf32>
    %160 = tpu.matmul %133, %159, %cst_94 {dimension_numbers = #tpu.dot_dimension_numbers<[1], [0], [0], [1], [0, 0, 1, 1], [], []>} : vector<8x16xf32>, vector<16x128xf32>, vector<8x128xf32> -> vector<8x128xf32>
    %161 = vector.broadcast %4 : vector<1x128xf32> to vector<8x128xf32>
    %162 = arith.addf %160, %161 : vector<8x128xf32>
    %163 = arith.addf %162, %158 : vector<8x128xf32>
    %164 = arith.negf %163 : vector<8x128xf32>
    %165 = math.exp %164 : vector<8x128xf32>
    %cst_95 = arith.constant 1.000000e+00 : f32
    %166 = vector.broadcast %cst_95 : f32 to vector<8x128xf32>
    %167 = arith.addf %166, %165 : vector<8x128xf32>
    %168 = arith.divf %166, %167 : vector<8x128xf32>
    %169 = arith.subf %130, %156 : vector<8x128xf32>
    %170 = arith.mulf %168, %169 : vector<8x128xf32>
    %171 = arith.addf %156, %170 : vector<8x128xf32>
    %c4_i32 = arith.constant 4 : i32
    %172 = arith.index_cast %c4_i32 : i32 to index
    %c0_96 = arith.constant 0 : index
    %c0_97 = arith.constant 0 : index
    %173 = vector.load %arg2[%172, %c0_96, %c0_97] : memref<8x8x16xf32, #tpu.memory_space<vmem>>, vector<1x8x16xf32>
    %174 = vector.shape_cast %173 : vector<1x8x16xf32> to vector<8x16xf32>
    %c0_98 = arith.constant 0 : index
    %c0_99 = arith.constant 0 : index
    %175 = vector.load %arg4[%c0_98, %c0_99] : memref<128x384xf32, #tpu.memory_space<vmem>>, vector<128x128xf32>
    %cst_100 = arith.constant dense<0.000000e+00> : vector<8x128xf32>
    %176 = tpu.matmul %171, %175, %cst_100 {dimension_numbers = #tpu.dot_dimension_numbers<[1], [0], [0], [1], [0, 0, 1, 1], [], []>} : vector<8x128xf32>, vector<128x128xf32>, vector<8x128xf32> -> vector<8x128xf32>
    %c0_101 = arith.constant 0 : index
    %c0_102 = arith.constant 0 : index
    %177 = vector.load %arg3[%c0_101, %c0_102] : memref<16x384xf32, #tpu.memory_space<vmem>>, vector<16x128xf32>
    %cst_103 = arith.constant dense<0.000000e+00> : vector<8x128xf32>
    %178 = tpu.matmul %174, %177, %cst_103 {dimension_numbers = #tpu.dot_dimension_numbers<[1], [0], [0], [1], [0, 0, 1, 1], [], []>} : vector<8x16xf32>, vector<16x128xf32>, vector<8x128xf32> -> vector<8x128xf32>
    %179 = vector.broadcast %3 : vector<1x128xf32> to vector<8x128xf32>
    %180 = arith.addf %178, %179 : vector<8x128xf32>
    %181 = arith.addf %180, %176 : vector<8x128xf32>
    %182 = arith.negf %181 : vector<8x128xf32>
    %183 = math.exp %182 : vector<8x128xf32>
    %cst_104 = arith.constant 1.000000e+00 : f32
    %184 = vector.broadcast %cst_104 : f32 to vector<8x128xf32>
    %185 = arith.addf %184, %183 : vector<8x128xf32>
    %186 = arith.divf %184, %185 : vector<8x128xf32>
    %c0_105 = arith.constant 0 : index
    %c256_106 = arith.constant 256 : index
    %187 = vector.load %arg4[%c0_105, %c256_106] : memref<128x384xf32, #tpu.memory_space<vmem>>, vector<128x128xf32>
    %cst_107 = arith.constant dense<0.000000e+00> : vector<8x128xf32>
    %188 = tpu.matmul %171, %187, %cst_107 {dimension_numbers = #tpu.dot_dimension_numbers<[1], [0], [0], [1], [0, 0, 1, 1], [], []>} : vector<8x128xf32>, vector<128x128xf32>, vector<8x128xf32> -> vector<8x128xf32>
    %189 = vector.broadcast %6 : vector<1x128xf32> to vector<8x128xf32>
    %190 = arith.addf %188, %189 : vector<8x128xf32>
    %c0_108 = arith.constant 0 : index
    %c256_109 = arith.constant 256 : index
    %191 = vector.load %arg3[%c0_108, %c256_109] : memref<16x384xf32, #tpu.memory_space<vmem>>, vector<16x128xf32>
    %cst_110 = arith.constant dense<0.000000e+00> : vector<8x128xf32>
    %192 = tpu.matmul %174, %191, %cst_110 {dimension_numbers = #tpu.dot_dimension_numbers<[1], [0], [0], [1], [0, 0, 1, 1], [], []>} : vector<8x16xf32>, vector<16x128xf32>, vector<8x128xf32> -> vector<8x128xf32>
    %193 = vector.broadcast %5 : vector<1x128xf32> to vector<8x128xf32>
    %194 = arith.addf %192, %193 : vector<8x128xf32>
    %195 = arith.mulf %186, %190 : vector<8x128xf32>
    %196 = arith.addf %194, %195 : vector<8x128xf32>
    %197 = math.tanh %196 : vector<8x128xf32>
    %c0_111 = arith.constant 0 : index
    %c128_112 = arith.constant 128 : index
    %198 = vector.load %arg4[%c0_111, %c128_112] : memref<128x384xf32, #tpu.memory_space<vmem>>, vector<128x128xf32>
    %cst_113 = arith.constant dense<0.000000e+00> : vector<8x128xf32>
    %199 = tpu.matmul %171, %198, %cst_113 {dimension_numbers = #tpu.dot_dimension_numbers<[1], [0], [0], [1], [0, 0, 1, 1], [], []>} : vector<8x128xf32>, vector<128x128xf32>, vector<8x128xf32> -> vector<8x128xf32>
    %c0_114 = arith.constant 0 : index
    %c128_115 = arith.constant 128 : index
    %200 = vector.load %arg3[%c0_114, %c128_115] : memref<16x384xf32, #tpu.memory_space<vmem>>, vector<16x128xf32>
    %cst_116 = arith.constant dense<0.000000e+00> : vector<8x128xf32>
    %201 = tpu.matmul %174, %200, %cst_116 {dimension_numbers = #tpu.dot_dimension_numbers<[1], [0], [0], [1], [0, 0, 1, 1], [], []>} : vector<8x16xf32>, vector<16x128xf32>, vector<8x128xf32> -> vector<8x128xf32>
    %202 = vector.broadcast %4 : vector<1x128xf32> to vector<8x128xf32>
    %203 = arith.addf %201, %202 : vector<8x128xf32>
    %204 = arith.addf %203, %199 : vector<8x128xf32>
    %205 = arith.negf %204 : vector<8x128xf32>
    %206 = math.exp %205 : vector<8x128xf32>
    %cst_117 = arith.constant 1.000000e+00 : f32
    %207 = vector.broadcast %cst_117 : f32 to vector<8x128xf32>
    %208 = arith.addf %207, %206 : vector<8x128xf32>
    %209 = arith.divf %207, %208 : vector<8x128xf32>
    %210 = arith.subf %171, %197 : vector<8x128xf32>
    %211 = arith.mulf %209, %210 : vector<8x128xf32>
    %212 = arith.addf %197, %211 : vector<8x128xf32>
    %c5_i32 = arith.constant 5 : i32
    %213 = arith.index_cast %c5_i32 : i32 to index
    %c0_118 = arith.constant 0 : index
    %c0_119 = arith.constant 0 : index
    %214 = vector.load %arg2[%213, %c0_118, %c0_119] : memref<8x8x16xf32, #tpu.memory_space<vmem>>, vector<1x8x16xf32>
    %215 = vector.shape_cast %214 : vector<1x8x16xf32> to vector<8x16xf32>
    %c0_120 = arith.constant 0 : index
    %c0_121 = arith.constant 0 : index
    %216 = vector.load %arg4[%c0_120, %c0_121] : memref<128x384xf32, #tpu.memory_space<vmem>>, vector<128x128xf32>
    %cst_122 = arith.constant dense<0.000000e+00> : vector<8x128xf32>
    %217 = tpu.matmul %212, %216, %cst_122 {dimension_numbers = #tpu.dot_dimension_numbers<[1], [0], [0], [1], [0, 0, 1, 1], [], []>} : vector<8x128xf32>, vector<128x128xf32>, vector<8x128xf32> -> vector<8x128xf32>
    %c0_123 = arith.constant 0 : index
    %c0_124 = arith.constant 0 : index
    %218 = vector.load %arg3[%c0_123, %c0_124] : memref<16x384xf32, #tpu.memory_space<vmem>>, vector<16x128xf32>
    %cst_125 = arith.constant dense<0.000000e+00> : vector<8x128xf32>
    %219 = tpu.matmul %215, %218, %cst_125 {dimension_numbers = #tpu.dot_dimension_numbers<[1], [0], [0], [1], [0, 0, 1, 1], [], []>} : vector<8x16xf32>, vector<16x128xf32>, vector<8x128xf32> -> vector<8x128xf32>
    %220 = vector.broadcast %3 : vector<1x128xf32> to vector<8x128xf32>
    %221 = arith.addf %219, %220 : vector<8x128xf32>
    %222 = arith.addf %221, %217 : vector<8x128xf32>
    %223 = arith.negf %222 : vector<8x128xf32>
    %224 = math.exp %223 : vector<8x128xf32>
    %cst_126 = arith.constant 1.000000e+00 : f32
    %225 = vector.broadcast %cst_126 : f32 to vector<8x128xf32>
    %226 = arith.addf %225, %224 : vector<8x128xf32>
    %227 = arith.divf %225, %226 : vector<8x128xf32>
    %c0_127 = arith.constant 0 : index
    %c256_128 = arith.constant 256 : index
    %228 = vector.load %arg4[%c0_127, %c256_128] : memref<128x384xf32, #tpu.memory_space<vmem>>, vector<128x128xf32>
    %cst_129 = arith.constant dense<0.000000e+00> : vector<8x128xf32>
    %229 = tpu.matmul %212, %228, %cst_129 {dimension_numbers = #tpu.dot_dimension_numbers<[1], [0], [0], [1], [0, 0, 1, 1], [], []>} : vector<8x128xf32>, vector<128x128xf32>, vector<8x128xf32> -> vector<8x128xf32>
    %230 = vector.broadcast %6 : vector<1x128xf32> to vector<8x128xf32>
    %231 = arith.addf %229, %230 : vector<8x128xf32>
    %c0_130 = arith.constant 0 : index
    %c256_131 = arith.constant 256 : index
    %232 = vector.load %arg3[%c0_130, %c256_131] : memref<16x384xf32, #tpu.memory_space<vmem>>, vector<16x128xf32>
    %cst_132 = arith.constant dense<0.000000e+00> : vector<8x128xf32>
    %233 = tpu.matmul %215, %232, %cst_132 {dimension_numbers = #tpu.dot_dimension_numbers<[1], [0], [0], [1], [0, 0, 1, 1], [], []>} : vector<8x16xf32>, vector<16x128xf32>, vector<8x128xf32> -> vector<8x128xf32>
    %234 = vector.broadcast %5 : vector<1x128xf32> to vector<8x128xf32>
    %235 = arith.addf %233, %234 : vector<8x128xf32>
    %236 = arith.mulf %227, %231 : vector<8x128xf32>
    %237 = arith.addf %235, %236 : vector<8x128xf32>
    %238 = math.tanh %237 : vector<8x128xf32>
    %c0_133 = arith.constant 0 : index
    %c128_134 = arith.constant 128 : index
    %239 = vector.load %arg4[%c0_133, %c128_134] : memref<128x384xf32, #tpu.memory_space<vmem>>, vector<128x128xf32>
    %cst_135 = arith.constant dense<0.000000e+00> : vector<8x128xf32>
    %240 = tpu.matmul %212, %239, %cst_135 {dimension_numbers = #tpu.dot_dimension_numbers<[1], [0], [0], [1], [0, 0, 1, 1], [], []>} : vector<8x128xf32>, vector<128x128xf32>, vector<8x128xf32> -> vector<8x128xf32>
    %c0_136 = arith.constant 0 : index
    %c128_137 = arith.constant 128 : index
    %241 = vector.load %arg3[%c0_136, %c128_137] : memref<16x384xf32, #tpu.memory_space<vmem>>, vector<16x128xf32>
    %cst_138 = arith.constant dense<0.000000e+00> : vector<8x128xf32>
    %242 = tpu.matmul %215, %241, %cst_138 {dimension_numbers = #tpu.dot_dimension_numbers<[1], [0], [0], [1], [0, 0, 1, 1], [], []>} : vector<8x16xf32>, vector<16x128xf32>, vector<8x128xf32> -> vector<8x128xf32>
    %243 = vector.broadcast %4 : vector<1x128xf32> to vector<8x128xf32>
    %244 = arith.addf %242, %243 : vector<8x128xf32>
    %245 = arith.addf %244, %240 : vector<8x128xf32>
    %246 = arith.negf %245 : vector<8x128xf32>
    %247 = math.exp %246 : vector<8x128xf32>
    %cst_139 = arith.constant 1.000000e+00 : f32
    %248 = vector.broadcast %cst_139 : f32 to vector<8x128xf32>
    %249 = arith.addf %248, %247 : vector<8x128xf32>
    %250 = arith.divf %248, %249 : vector<8x128xf32>
    %251 = arith.subf %212, %238 : vector<8x128xf32>
    %252 = arith.mulf %250, %251 : vector<8x128xf32>
    %253 = arith.addf %238, %252 : vector<8x128xf32>
    %c6_i32 = arith.constant 6 : i32
    %254 = arith.index_cast %c6_i32 : i32 to index
    %c0_140 = arith.constant 0 : index
    %c0_141 = arith.constant 0 : index
    %255 = vector.load %arg2[%254, %c0_140, %c0_141] : memref<8x8x16xf32, #tpu.memory_space<vmem>>, vector<1x8x16xf32>
    %256 = vector.shape_cast %255 : vector<1x8x16xf32> to vector<8x16xf32>
    %c0_142 = arith.constant 0 : index
    %c0_143 = arith.constant 0 : index
    %257 = vector.load %arg4[%c0_142, %c0_143] : memref<128x384xf32, #tpu.memory_space<vmem>>, vector<128x128xf32>
    %cst_144 = arith.constant dense<0.000000e+00> : vector<8x128xf32>
    %258 = tpu.matmul %253, %257, %cst_144 {dimension_numbers = #tpu.dot_dimension_numbers<[1], [0], [0], [1], [0, 0, 1, 1], [], []>} : vector<8x128xf32>, vector<128x128xf32>, vector<8x128xf32> -> vector<8x128xf32>
    %c0_145 = arith.constant 0 : index
    %c0_146 = arith.constant 0 : index
    %259 = vector.load %arg3[%c0_145, %c0_146] : memref<16x384xf32, #tpu.memory_space<vmem>>, vector<16x128xf32>
    %cst_147 = arith.constant dense<0.000000e+00> : vector<8x128xf32>
    %260 = tpu.matmul %256, %259, %cst_147 {dimension_numbers = #tpu.dot_dimension_numbers<[1], [0], [0], [1], [0, 0, 1, 1], [], []>} : vector<8x16xf32>, vector<16x128xf32>, vector<8x128xf32> -> vector<8x128xf32>
    %261 = vector.broadcast %3 : vector<1x128xf32> to vector<8x128xf32>
    %262 = arith.addf %260, %261 : vector<8x128xf32>
    %263 = arith.addf %262, %258 : vector<8x128xf32>
    %264 = arith.negf %263 : vector<8x128xf32>
    %265 = math.exp %264 : vector<8x128xf32>
    %cst_148 = arith.constant 1.000000e+00 : f32
    %266 = vector.broadcast %cst_148 : f32 to vector<8x128xf32>
    %267 = arith.addf %266, %265 : vector<8x128xf32>
    %268 = arith.divf %266, %267 : vector<8x128xf32>
    %c0_149 = arith.constant 0 : index
    %c256_150 = arith.constant 256 : index
    %269 = vector.load %arg4[%c0_149, %c256_150] : memref<128x384xf32, #tpu.memory_space<vmem>>, vector<128x128xf32>
    %cst_151 = arith.constant dense<0.000000e+00> : vector<8x128xf32>
    %270 = tpu.matmul %253, %269, %cst_151 {dimension_numbers = #tpu.dot_dimension_numbers<[1], [0], [0], [1], [0, 0, 1, 1], [], []>} : vector<8x128xf32>, vector<128x128xf32>, vector<8x128xf32> -> vector<8x128xf32>
    %271 = vector.broadcast %6 : vector<1x128xf32> to vector<8x128xf32>
    %272 = arith.addf %270, %271 : vector<8x128xf32>
    %c0_152 = arith.constant 0 : index
    %c256_153 = arith.constant 256 : index
    %273 = vector.load %arg3[%c0_152, %c256_153] : memref<16x384xf32, #tpu.memory_space<vmem>>, vector<16x128xf32>
    %cst_154 = arith.constant dense<0.000000e+00> : vector<8x128xf32>
    %274 = tpu.matmul %256, %273, %cst_154 {dimension_numbers = #tpu.dot_dimension_numbers<[1], [0], [0], [1], [0, 0, 1, 1], [], []>} : vector<8x16xf32>, vector<16x128xf32>, vector<8x128xf32> -> vector<8x128xf32>
    %275 = vector.broadcast %5 : vector<1x128xf32> to vector<8x128xf32>
    %276 = arith.addf %274, %275 : vector<8x128xf32>
    %277 = arith.mulf %268, %272 : vector<8x128xf32>
    %278 = arith.addf %276, %277 : vector<8x128xf32>
    %279 = math.tanh %278 : vector<8x128xf32>
    %c0_155 = arith.constant 0 : index
    %c128_156 = arith.constant 128 : index
    %280 = vector.load %arg4[%c0_155, %c128_156] : memref<128x384xf32, #tpu.memory_space<vmem>>, vector<128x128xf32>
    %cst_157 = arith.constant dense<0.000000e+00> : vector<8x128xf32>
    %281 = tpu.matmul %253, %280, %cst_157 {dimension_numbers = #tpu.dot_dimension_numbers<[1], [0], [0], [1], [0, 0, 1, 1], [], []>} : vector<8x128xf32>, vector<128x128xf32>, vector<8x128xf32> -> vector<8x128xf32>
    %c0_158 = arith.constant 0 : index
    %c128_159 = arith.constant 128 : index
    %282 = vector.load %arg3[%c0_158, %c128_159] : memref<16x384xf32, #tpu.memory_space<vmem>>, vector<16x128xf32>
    %cst_160 = arith.constant dense<0.000000e+00> : vector<8x128xf32>
    %283 = tpu.matmul %256, %282, %cst_160 {dimension_numbers = #tpu.dot_dimension_numbers<[1], [0], [0], [1], [0, 0, 1, 1], [], []>} : vector<8x16xf32>, vector<16x128xf32>, vector<8x128xf32> -> vector<8x128xf32>
    %284 = vector.broadcast %4 : vector<1x128xf32> to vector<8x128xf32>
    %285 = arith.addf %283, %284 : vector<8x128xf32>
    %286 = arith.addf %285, %281 : vector<8x128xf32>
    %287 = arith.negf %286 : vector<8x128xf32>
    %288 = math.exp %287 : vector<8x128xf32>
    %cst_161 = arith.constant 1.000000e+00 : f32
    %289 = vector.broadcast %cst_161 : f32 to vector<8x128xf32>
    %290 = arith.addf %289, %288 : vector<8x128xf32>
    %291 = arith.divf %289, %290 : vector<8x128xf32>
    %292 = arith.subf %253, %279 : vector<8x128xf32>
    %293 = arith.mulf %291, %292 : vector<8x128xf32>
    %294 = arith.addf %279, %293 : vector<8x128xf32>
    %c7_i32 = arith.constant 7 : i32
    %295 = arith.index_cast %c7_i32 : i32 to index
    %c0_162 = arith.constant 0 : index
    %c0_163 = arith.constant 0 : index
    %296 = vector.load %arg2[%295, %c0_162, %c0_163] : memref<8x8x16xf32, #tpu.memory_space<vmem>>, vector<1x8x16xf32>
    %297 = vector.shape_cast %296 : vector<1x8x16xf32> to vector<8x16xf32>
    %c0_164 = arith.constant 0 : index
    %c0_165 = arith.constant 0 : index
    %298 = vector.load %arg4[%c0_164, %c0_165] : memref<128x384xf32, #tpu.memory_space<vmem>>, vector<128x128xf32>
    %cst_166 = arith.constant dense<0.000000e+00> : vector<8x128xf32>
    %299 = tpu.matmul %294, %298, %cst_166 {dimension_numbers = #tpu.dot_dimension_numbers<[1], [0], [0], [1], [0, 0, 1, 1], [], []>} : vector<8x128xf32>, vector<128x128xf32>, vector<8x128xf32> -> vector<8x128xf32>
    %c0_167 = arith.constant 0 : index
    %c0_168 = arith.constant 0 : index
    %300 = vector.load %arg3[%c0_167, %c0_168] : memref<16x384xf32, #tpu.memory_space<vmem>>, vector<16x128xf32>
    %cst_169 = arith.constant dense<0.000000e+00> : vector<8x128xf32>
    %301 = tpu.matmul %297, %300, %cst_169 {dimension_numbers = #tpu.dot_dimension_numbers<[1], [0], [0], [1], [0, 0, 1, 1], [], []>} : vector<8x16xf32>, vector<16x128xf32>, vector<8x128xf32> -> vector<8x128xf32>
    %302 = vector.broadcast %3 : vector<1x128xf32> to vector<8x128xf32>
    %303 = arith.addf %301, %302 : vector<8x128xf32>
    %304 = arith.addf %303, %299 : vector<8x128xf32>
    %305 = arith.negf %304 : vector<8x128xf32>
    %306 = math.exp %305 : vector<8x128xf32>
    %cst_170 = arith.constant 1.000000e+00 : f32
    %307 = vector.broadcast %cst_170 : f32 to vector<8x128xf32>
    %308 = arith.addf %307, %306 : vector<8x128xf32>
    %309 = arith.divf %307, %308 : vector<8x128xf32>
    %c0_171 = arith.constant 0 : index
    %c256_172 = arith.constant 256 : index
    %310 = vector.load %arg4[%c0_171, %c256_172] : memref<128x384xf32, #tpu.memory_space<vmem>>, vector<128x128xf32>
    %cst_173 = arith.constant dense<0.000000e+00> : vector<8x128xf32>
    %311 = tpu.matmul %294, %310, %cst_173 {dimension_numbers = #tpu.dot_dimension_numbers<[1], [0], [0], [1], [0, 0, 1, 1], [], []>} : vector<8x128xf32>, vector<128x128xf32>, vector<8x128xf32> -> vector<8x128xf32>
    %312 = vector.broadcast %6 : vector<1x128xf32> to vector<8x128xf32>
    %313 = arith.addf %311, %312 : vector<8x128xf32>
    %c0_174 = arith.constant 0 : index
    %c256_175 = arith.constant 256 : index
    %314 = vector.load %arg3[%c0_174, %c256_175] : memref<16x384xf32, #tpu.memory_space<vmem>>, vector<16x128xf32>
    %cst_176 = arith.constant dense<0.000000e+00> : vector<8x128xf32>
    %315 = tpu.matmul %297, %314, %cst_176 {dimension_numbers = #tpu.dot_dimension_numbers<[1], [0], [0], [1], [0, 0, 1, 1], [], []>} : vector<8x16xf32>, vector<16x128xf32>, vector<8x128xf32> -> vector<8x128xf32>
    %316 = vector.broadcast %5 : vector<1x128xf32> to vector<8x128xf32>
    %317 = arith.addf %315, %316 : vector<8x128xf32>
    %318 = arith.mulf %309, %313 : vector<8x128xf32>
    %319 = arith.addf %317, %318 : vector<8x128xf32>
    %320 = math.tanh %319 : vector<8x128xf32>
    %c0_177 = arith.constant 0 : index
    %c128_178 = arith.constant 128 : index
    %321 = vector.load %arg4[%c0_177, %c128_178] : memref<128x384xf32, #tpu.memory_space<vmem>>, vector<128x128xf32>
    %cst_179 = arith.constant dense<0.000000e+00> : vector<8x128xf32>
    %322 = tpu.matmul %294, %321, %cst_179 {dimension_numbers = #tpu.dot_dimension_numbers<[1], [0], [0], [1], [0, 0, 1, 1], [], []>} : vector<8x128xf32>, vector<128x128xf32>, vector<8x128xf32> -> vector<8x128xf32>
    %c0_180 = arith.constant 0 : index
    %c128_181 = arith.constant 128 : index
    %323 = vector.load %arg3[%c0_180, %c128_181] : memref<16x384xf32, #tpu.memory_space<vmem>>, vector<16x128xf32>
    %cst_182 = arith.constant dense<0.000000e+00> : vector<8x128xf32>
    %324 = tpu.matmul %297, %323, %cst_182 {dimension_numbers = #tpu.dot_dimension_numbers<[1], [0], [0], [1], [0, 0, 1, 1], [], []>} : vector<8x16xf32>, vector<16x128xf32>, vector<8x128xf32> -> vector<8x128xf32>
    %325 = vector.broadcast %4 : vector<1x128xf32> to vector<8x128xf32>
    %326 = arith.addf %324, %325 : vector<8x128xf32>
    %327 = arith.addf %326, %322 : vector<8x128xf32>
    %328 = arith.negf %327 : vector<8x128xf32>
    %329 = math.exp %328 : vector<8x128xf32>
    %cst_183 = arith.constant 1.000000e+00 : f32
    %330 = vector.broadcast %cst_183 : f32 to vector<8x128xf32>
    %331 = arith.addf %330, %329 : vector<8x128xf32>
    %332 = arith.divf %330, %331 : vector<8x128xf32>
    %333 = arith.subf %294, %320 : vector<8x128xf32>
    %334 = arith.mulf %332, %333 : vector<8x128xf32>
    %335 = arith.addf %320, %334 : vector<8x128xf32>
    %c8_i32 = arith.constant 8 : i32
    %c0_184 = arith.constant 0 : index
    %c0_185 = arith.constant 0 : index
    %336 = vector.load %arg10[%c0_184, %c0_185] : memref<8x128xf32, #tpu.memory_space<vmem>>, vector<8x128xf32>
    tpu.vector_store %arg10[%c0_184, %c0_185], %335 {strides = array<i32>} : memref<8x128xf32, #tpu.memory_space<vmem>>, vector<8x128xf32>,
    %c0_i32_186 = arith.constant 0 : i32
    %337 = arith.cmpi eq, %arg1, %c0_i32_186 : i32
    %338 = arith.extui %337 : i1 to i32
    %c0_i32_187 = arith.constant 0 : i32
    %339 = arith.cmpi ne, %338, %c0_i32_187 : i32
    scf.if %339 {
      %c0_188 = arith.constant 0 : index
      %c0_189 = arith.constant 0 : index
      %340 = vector.load %arg10[%c0_188, %c0_189] : memref<8x128xf32, #tpu.memory_space<vmem>>, vector<8x128xf32>
      %c0_190 = arith.constant 0 : index
      %c0_191 = arith.constant 0 : index
      %341 = vector.load %arg7[%c0_190, %c0_191] : memref<128x128xf32, #tpu.memory_space<vmem>>, vector<128x128xf32>
      %cst_192 = arith.constant dense<0.000000e+00> : vector<8x128xf32>
      %342 = tpu.matmul %340, %341, %cst_192 {dimension_numbers = #tpu.dot_dimension_numbers<[1], [0], [0], [1], [0, 0, 1, 1], [], []>} : vector<8x128xf32>, vector<128x128xf32>, vector<8x128xf32> -> vector<8x128xf32>
      %c0_193 = arith.constant 0 : index
      %c0_194 = arith.constant 0 : index
      %343 = vector.load %arg8[%c0_193, %c0_194] : memref<1x128xf32, #tpu.memory_space<vmem>>, vector<1x128xf32>
      %344 = vector.broadcast %343 : vector<1x128xf32> to vector<8x128xf32>
      %345 = arith.addf %342, %344 : vector<8x128xf32>
      %c0_195 = arith.constant 0 : index
      %c0_196 = arith.constant 0 : index
      %346 = vector.load %arg9[%c0_195, %c0_196] : memref<8x128xf32, #tpu.memory_space<vmem>>, vector<8x128xf32>
      tpu.vector_store %arg9[%c0_195, %c0_196], %345 {strides = array<i32>} : memref<8x128xf32, #tpu.memory_space<vmem>>, vector<8x128xf32>,
    } else {
    }
    return
  }
  func.func @transform_0(%arg0: i32, %arg1: i32) -> (i32, i32, i32) {
    %c0_i32 = arith.constant 0 : i32
    %c0_i32_0 = arith.constant 0 : i32
    return %arg1, %arg0, %c0_i32 : i32, i32, i32
  }
  func.func @transform_1(%arg0: i32, %arg1: i32) -> (i32, i32) {
    %c0_i32 = arith.constant 0 : i32
    %c0_i32_0 = arith.constant 0 : i32
    %c0_i32_1 = arith.constant 0 : i32
    return %c0_i32, %c0_i32_0 : i32, i32
  }
  func.func @transform_2(%arg0: i32, %arg1: i32) -> (i32, i32) {
    %c0_i32 = arith.constant 0 : i32
    %c0_i32_0 = arith.constant 0 : i32
    %c0_i32_1 = arith.constant 0 : i32
    return %c0_i32, %c0_i32_0 : i32, i32
  }
  func.func @transform_3(%arg0: i32, %arg1: i32) -> (i32, i32) {
    %c0_i32 = arith.constant 0 : i32
    %c0_i32_0 = arith.constant 0 : i32
    %c0_i32_1 = arith.constant 0 : i32
    return %c0_i32, %c0_i32_0 : i32, i32
  }
  func.func @transform_4(%arg0: i32, %arg1: i32) -> (i32, i32) {
    %c0_i32 = arith.constant 0 : i32
    %c0_i32_0 = arith.constant 0 : i32
    %c0_i32_1 = arith.constant 0 : i32
    return %c0_i32, %c0_i32_0 : i32, i32
  }
  func.func @transform_5(%arg0: i32, %arg1: i32) -> (i32, i32) {
    %c0_i32 = arith.constant 0 : i32
    %c0_i32_0 = arith.constant 0 : i32
    %c0_i32_1 = arith.constant 0 : i32
    return %c0_i32, %c0_i32_0 : i32, i32
  }
  func.func @transform_6(%arg0: i32, %arg1: i32) -> (i32, i32) {
    %c0_i32 = arith.constant 0 : i32
    %c0_i32_0 = arith.constant 0 : i32
    %c0_i32_1 = arith.constant 0 : i32
    return %c0_i32, %c0_i32_0 : i32, i32
  }
  func.func @transform_7(%arg0: i32, %arg1: i32) -> (i32, i32) {
    %c0_i32 = arith.constant 0 : i32
    %c0_i32_0 = arith.constant 0 : i32
    return %arg0, %c0_i32 : i32, i32
  }
}

</mosaic_0001>

<llo_original>
// kernel: qnetwork_rnn_forward.1
$region0: #{qnetwork_rnn_forward.1}
  #allocation0 [shape = 'u32[]', space=smem, size = 0x4, offset = 0x4, fixed_abs, tag = 'smem constant byte address 0x4 - core index']
  #allocation1 [shape = 'u32[144,128]{1,0:T(1,128)}', space=vmem, size = 0x12000, scoped, tag = 'internal scratch']
  #allocation2 [shape = 'f32[8,128]{1,0:T(8,128)}', space=vmem, size = 0x1000, scoped, tag = 'scratch operand']
  %s0 = inlined_call_operand.vmem [shape: f32[8,8,16], index: 0, kind: input, shape index: {}]
  %s1 = inlined_call_operand.vmem [shape: f32[16,384], index: 1, kind: input, shape index: {}]
  %s2 = inlined_call_operand.vmem [shape: f32[128,384], index: 2, kind: input, shape index: {}]
  %s3 = inlined_call_operand.vmem [shape: f32[1,384], index: 3, kind: input, shape index: {}]
  %s4 = inlined_call_operand.vmem [shape: f32[1,128], index: 4, kind: input, shape index: {}]
  %s5 = inlined_call_operand.vmem [shape: f32[128,128], index: 5, kind: input, shape index: {}]
  %s6 = inlined_call_operand.vmem [shape: f32[1,128], index: 6, kind: input, shape index: {}]
  %s7 = inlined_call_operand.vmem [shape: f32[8,128], index: 7, kind: output, shape index: {}]
  %s8 = sld [smem:[#allocation0]]
  $region46: #{qnetwork_rnn_forward.1} parent=0
    _
  %s10 = ssub.s32 1, %s8
  %s11 = scalar_select 0, %s10, %s8
  // Predicated region
  $region2: #{qnetwork_rnn_forward.1} parent=0 // pred_check
    _
  $region3: #{qnetwork_rnn_forward.1} parent=0 // pred_check_branch
    %13 = sbr.rel (0) target = $region5
  $region4: #{qnetwork_rnn_forward.1} parent=0 // pred_region
    _
  $region5: #{qnetwork_rnn_forward.1} parent=0 // pred_fallthru
    _
  // Predicated region
  $region6: #{qnetwork_rnn_forward.1} parent=0 // pred_check
    _
  $region7: #{qnetwork_rnn_forward.1} parent=0 // pred_check_branch
    %15 = sbr.rel (0) target = $region9
  $region8: #{qnetwork_rnn_forward.1} parent=0 // pred_region
    _
  $region9: #{qnetwork_rnn_forward.1} parent=0 // pred_fallthru
    _
  // Predicated region
  $region10: #{qnetwork_rnn_forward.1} parent=0 // pred_check
    _
  $region11: #{qnetwork_rnn_forward.1} parent=0 // pred_check_branch
    %17 = sbr.rel (0) target = $region13
  $region12: #{qnetwork_rnn_forward.1} parent=0 // pred_region
    _
  $region13: #{qnetwork_rnn_forward.1} parent=0 // pred_fallthru
    _
  // Predicated region
  $region14: #{qnetwork_rnn_forward.1} parent=0 // pred_check
    _
  $region15: #{qnetwork_rnn_forward.1} parent=0 // pred_check_branch
    %19 = sbr.rel (0) target = $region17
  $region16: #{qnetwork_rnn_forward.1} parent=0 // pred_region
    _
  $region17: #{qnetwork_rnn_forward.1} parent=0 // pred_fallthru
    _
  // Predicated region
  $region18: #{qnetwork_rnn_forward.1} parent=0 // pred_check
    _
  $region19: #{qnetwork_rnn_forward.1} parent=0 // pred_check_branch
    %21 = sbr.rel (0) target = $region21
  $region20: #{qnetwork_rnn_forward.1} parent=0 // pred_region
    _
  $region21: #{qnetwork_rnn_forward.1} parent=0 // pred_fallthru
    _
  // Predicated region
  $region22: #{qnetwork_rnn_forward.1} parent=0 // pred_check
    _
  $region23: #{qnetwork_rnn_forward.1} parent=0 // pred_check_branch
    %23 = sbr.rel (0) target = $region25
  $region24: #{qnetwork_rnn_forward.1} parent=0 // pred_region
    _
  $region25: #{qnetwork_rnn_forward.1} parent=0 // pred_fallthru
    _
  // Predicated region
  $region26: #{qnetwork_rnn_forward.1} parent=0 // pred_check
    _
  $region27: #{qnetwork_rnn_forward.1} parent=0 // pred_check_branch
    %25 = sbr.rel (0) target = $region29
  $region28: #{qnetwork_rnn_forward.1} parent=0 // pred_region
    _
  $region29: #{qnetwork_rnn_forward.1} parent=0 // pred_fallthru
    _
  %p26 = scmp.eq.s32.totalorder 0, 0
  // Predicated region
  $region30: #{qnetwork_rnn_forward.1} parent=0 // pred_check
    %p27 = pneg %p26
  $region31: #{qnetwork_rnn_forward.1} parent=0 // pred_check_branch
    %29 = sbr.rel (%p27) target = $region33
  $region32: #{qnetwork_rnn_forward.1} parent=0 // pred_region
    %30 = vst [vmem:[#allocation2] sm:$0xff] 0.0
  $region33: #{qnetwork_rnn_forward.1} parent=0 // pred_fallthru
    _
  %v31 = vld [vmem:[%s3] sm:$0x1]
  %v32 = vld [vmem:[%s3 + $0x1] sm:$0x1]
  %v33 = vld [vmem:[%s3 + $0x2] sm:$0x1]
  %v34 = vld [vmem:[%s4] sm:$0x1]
  %v35 = vld [vmem:[#allocation2] sm:$0xff]
  %v36 = vld [vmem:[%s0] sm:$0xff]
  %v37 = vld [vmem:[%s2] sm:$0xff]
  %v38 = vld [vmem:[%s2 + $0x18] sm:$0xff]
  %v39 = vld [vmem:[%s2 + $0x30] sm:$0xff]
  %v40 = vld [vmem:[%s2 + $0x48] sm:$0xff]
  %v41 = vld [vmem:[%s2 + $0x60] sm:$0xff]
  %v42 = vld [vmem:[%s2 + $0x78] sm:$0xff]
  %v43 = vld [vmem:[%s2 + $0x90] sm:$0xff]
  %v44 = vld [vmem:[%s2 + $0xa8] sm:$0xff]
  %v45 = vld [vmem:[%s2 + $0xc0] sm:$0xff]
  %v46 = vld [vmem:[%s2 + $0xd8] sm:$0xff]
  %v47 = vld [vmem:[%s2 + $0xf0] sm:$0xff]
  %v48 = vld [vmem:[%s2 + $0x108] sm:$0xff]
  %v49 = vld [vmem:[%s2 + $0x120] sm:$0xff]
  %v50 = vld [vmem:[%s2 + $0x138] sm:$0xff]
  %v51 = vld [vmem:[%s2 + $0x150] sm:$0xff]
  %v52 = vld [vmem:[%s2 + $0x168] sm:$0xff]
  %53 = vmatprep.subr.mxu0 0.0
  %54 = vmatpush1.msra.mxu0 %v52
  %55 = vmatprep.subr.mxu0 0.0
  %56 = vmatpush1.msra.mxu0 %v51
  %57 = vmatprep.subr.mxu0 0.0
  %58 = vmatpush1.msra.mxu0 %v50
  %59 = vmatprep.subr.mxu0 0.0
  %60 = vmatpush1.msra.mxu0 %v49
  %61 = vmatprep.subr.mxu0 0.0
  %62 = vmatpush1.msra.mxu0 %v48
  %63 = vmatprep.subr.mxu0 0.0
  %64 = vmatpush1.msra.mxu0 %v47
  %65 = vmatprep.subr.mxu0 0.0
  %66 = vmatpush1.msra.mxu0 %v46
  %67 = vmatprep.subr.mxu0 0.0
  %68 = vmatpush1.msra.mxu0 %v45
  %69 = vmatprep.subr.mxu0 0.0
  %70 = vmatpush1.msra.mxu0 %v44
  %71 = vmatprep.subr.mxu0 0.0
  %72 = vmatpush1.msra.mxu0 %v43
  %73 = vmatprep.subr.mxu0 0.0
  %74 = vmatpush1.msra.mxu0 %v42
  %75 = vmatprep.subr.mxu0 0.0
  %76 = vmatpush1.msra.mxu0 %v41
  %77 = vmatprep.subr.mxu0 0.0
  %78 = vmatpush1.msra.mxu0 %v40
  %79 = vmatprep.subr.mxu0 0.0
  %80 = vmatpush1.msra.mxu0 %v39
  %81 = vmatprep.subr.mxu0 0.0
  %82 = vmatpush1.msra.mxu0 %v38
  %83 = vmatprep.subr.mxu0 0.0
  %84 = vmatpush1.msra.mxu0 %v37
  %85 = vmatprep.subr.mxu0 0.0
  %86 = vmatpush2.msra.mxu0 0.0
  %87 = vmatprep.subr.mxu0 0.0
  %88 = vmatpush2.msra.mxu0 0.0
  %89 = vmatprep.subr.mxu0 0.0
  %90 = vmatpush2.msra.mxu0 0.0
  %91 = vmatprep.subr.mxu0 0.0
  %92 = vmatpush2.msra.mxu0 0.0
  %93 = vmatprep.subr.mxu0 0.0
  %94 = vmatpush2.msra.mxu0 0.0
  %95 = vmatprep.subr.mxu0 0.0
  %96 = vmatpush2.msra.mxu0 0.0
  %97 = vmatprep.subr.mxu0 0.0
  %98 = vmatpush2.msra.mxu0 0.0
  %99 = vmatprep.subr.mxu0 0.0
  %100 = vmatpush2.msra.mxu0 0.0
  %101 = vmatprep.subr.mxu0 0.0
  %102 = vmatpush2.msra.mxu0 0.0
  %103 = vmatprep.subr.mxu0 0.0
  %104 = vmatpush2.msra.mxu0 0.0
  %105 = vmatprep.subr.mxu0 0.0
  %106 = vmatpush2.msra.mxu0 0.0
  %107 = vmatprep.subr.mxu0 0.0
  %108 = vmatpush2.msra.mxu0 0.0
  %109 = vmatprep.subr.mxu0 0.0
  %110 = vmatpush2.msra.mxu0 0.0
  %111 = vmatprep.subr.mxu0 0.0
  %112 = vmatpush2.msra.mxu0 0.0
  %113 = vmatprep.subr.mxu0 0.0
  %114 = vmatpush2.msra.mxu0 0.0
  %115 = vmatprep.subr.mxu0 0.0
  %116 = vmatpush2.msra.mxu0 0.0
  %117 = vmatprep.mubr.f32.mxu0 0.0
  %118 = vmatmul.mubr.f32.gmra.mxu0 %v35
  %v119 = vpop.f32.mrf.mxu0
  %v120 = vadd.f32 0.0, %v119
  %v121 = vpop.f32.mrf.mxu0
  %122 = vdwg.mxu0
  %v123 = vld [vmem:[%s1] sm:$0xff]
  %v124 = vld [vmem:[%s1 + $0x18] sm:$0xff]
  %v126 = vlaneseq
  %v127 = vshrl.u32 %v126, 7
  %v128 = vsub.s32 0, %v127
  %v129 = vrot.slane %v31, %v128
  %vm131 = vcmask 130048
  %v133 = vsel %vm131, %v36, 0
  %135 = vmatprep.subr.mxu0 0.0
  %136 = vmatpush1.msra.mxu0 0.0
  %137 = vmatprep.subr.mxu0 0.0
  %138 = vmatpush1.msra.mxu0 0.0
  %139 = vmatprep.subr.mxu0 0.0
  %140 = vmatpush1.msra.mxu0 0.0
  %141 = vmatprep.subr.mxu0 0.0
  %142 = vmatpush1.msra.mxu0 0.0
  %143 = vmatprep.subr.mxu0 0.0
  %144 = vmatpush1.msra.mxu0 0.0
  %145 = vmatprep.subr.mxu0 0.0
  %146 = vmatpush1.msra.mxu0 0.0
  %147 = vmatprep.subr.mxu0 0.0
  %148 = vmatpush1.msra.mxu0 0.0
  %149 = vmatprep.subr.mxu0 0.0
  %150 = vmatpush1.msra.mxu0 0.0
  %151 = vmatprep.subr.mxu0 0.0
  %152 = vmatpush1.msra.mxu0 0.0
  %153 = vmatprep.subr.mxu0 0.0
  %154 = vmatpush1.msra.mxu0 0.0
  %155 = vmatprep.subr.mxu0 0.0
  %156 = vmatpush1.msra.mxu0 0.0
  %157 = vmatprep.subr.mxu0 0.0
  %158 = vmatpush1.msra.mxu0 0.0
  %159 = vmatprep.subr.mxu0 0.0
  %160 = vmatpush1.msra.mxu0 0.0
  %161 = vmatprep.subr.mxu0 0.0
  %162 = vmatpush1.msra.mxu0 0.0
  %163 = vmatprep.subr.mxu0 0.0
  %164 = vmatpush1.msra.mxu0 %v124
  %165 = vmatprep.subr.mxu0 0.0
  %166 = vmatpush1.msra.mxu0 %v123
  %167 = vmatprep.subr.mxu0 0.0
  %168 = vmatpush2.msra.mxu0 0.0
  %169 = vmatprep.subr.mxu0 0.0
  %170 = vmatpush2.msra.mxu0 0.0
  %171 = vmatprep.subr.mxu0 0.0
  %172 = vmatpush2.msra.mxu0 0.0
  %173 = vmatprep.subr.mxu0 0.0
  %174 = vmatpush2.msra.mxu0 0.0
  %175 = vmatprep.subr.mxu0 0.0
  %176 = vmatpush2.msra.mxu0 0.0
  %177 = vmatprep.subr.mxu0 0.0
  %178 = vmatpush2.msra.mxu0 0.0
  %179 = vmatprep.subr.mxu0 0.0
  %180 = vmatpush2.msra.mxu0 0.0
  %181 = vmatprep.subr.mxu0 0.0
  %182 = vmatpush2.msra.mxu0 0.0
  %183 = vmatprep.subr.mxu0 0.0
  %184 = vmatpush2.msra.mxu0 0.0
  %185 = vmatprep.subr.mxu0 0.0
  %186 = vmatpush2.msra.mxu0 0.0
  %187 = vmatprep.subr.mxu0 0.0
  %188 = vmatpush2.msra.mxu0 0.0
  %189 = vmatprep.subr.mxu0 0.0
  %190 = vmatpush2.msra.mxu0 0.0
  %191 = vmatprep.subr.mxu0 0.0
  %192 = vmatpush2.msra.mxu0 0.0
  %193 = vmatprep.subr.mxu0 0.0
  %194 = vmatpush2.msra.mxu0 0.0
  %195 = vmatprep.subr.mxu0 0.0
  %196 = vmatpush2.msra.mxu0 0.0
  %197 = vmatprep.subr.mxu0 0.0
  %198 = vmatpush2.msra.mxu0 0.0
  %199 = vmatprep.mubr.f32.mxu0 0.0
  %200 = vmatmul.mubr.f32.gmra.mxu0 %v133
  %v201 = vpop.f32.mrf.mxu0
  %v202 = vadd.f32 %v129, %v201
  %v203 = vpop.f32.mrf.mxu0
  %204 = vdwg.mxu0
  %v205 = vadd.f32 %v202, %v120
  %v206 = vxor.u32 %v205, 2147483648
  %v207 = vmul.f32 %v206, 1.442695
  %v208 = vpow.pop %v207
  %v209 = vadd.f32 %v208, 1.0
  %v210 = vrcp.pop %v209
  %v211 = vmul.f32 1.0, %v210
  %v212 = vld [vmem:[%s2 + $0x10] sm:$0xff]
  %v213 = vld [vmem:[%s2 + $0x28] sm:$0xff]
  %v214 = vld [vmem:[%s2 + $0x40] sm:$0xff]
  %v215 = vld [vmem:[%s2 + $0x58] sm:$0xff]
  %v216 = vld [vmem:[%s2 + $0x70] sm:$0xff]
  %v217 = vld [vmem:[%s2 + $0x88] sm:$0xff]
  %v218 = vld [vmem:[%s2 + $0xa0] sm:$0xff]
  %v219 = vld [vmem:[%s2 + $0xb8] sm:$0xff]
  %v220 = vld [vmem:[%s2 + $0xd0] sm:$0xff]
  %v221 = vld [vmem:[%s2 + $0xe8] sm:$0xff]
  %v222 = vld [vmem:[%s2 + $0x100] sm:$0xff]
  %v223 = vld [vmem:[%s2 + $0x118] sm:$0xff]
  %v224 = vld [vmem:[%s2 + $0x130] sm:$0xff]
  %v225 = vld [vmem:[%s2 + $0x148] sm:$0xff]
  %v226 = vld [vmem:[%s2 + $0x160] sm:$0xff]
  %v227 = vld [vmem:[%s2 + $0x178] sm:$0xff]
  %v229 = vlaneseq
  %v230 = vshrl.u32 %v229, 7
  %v231 = vsub.s32 0, %v230
  %v232 = vrot.slane %v34, %v231
  %234 = vmatprep.subr.mxu0 0.0
  %235 = vmatpush1.msra.mxu0 %v227
  %236 = vmatprep.subr.mxu0 0.0
  %237 = vmatpush1.msra.mxu0 %v226
  %238 = vmatprep.subr.mxu0 0.0
  %239 = vmatpush1.msra.mxu0 %v225
  %240 = vmatprep.subr.mxu0 0.0
  %241 = vmatpush1.msra.mxu0 %v224
  %242 = vmatprep.subr.mxu0 0.0
  %243 = vmatpush1.msra.mxu0 %v223
  %244 = vmatprep.subr.mxu0 0.0
  %245 = vmatpush1.msra.mxu0 %v222
  %246 = vmatprep.subr.mxu0 0.0
  %247 = vmatpush1.msra.mxu0 %v221
  %248 = vmatprep.subr.mxu0 0.0
  %249 = vmatpush1.msra.mxu0 %v220
  %250 = vmatprep.subr.mxu0 0.0
  %251 = vmatpush1.msra.mxu0 %v219
  %252 = vmatprep.subr.mxu0 0.0
  %253 = vmatpush1.msra.mxu0 %v218
  %254 = vmatprep.subr.mxu0 0.0
  %255 = vmatpush1.msra.mxu0 %v217
  %256 = vmatprep.subr.mxu0 0.0
  %257 = vmatpush1.msra.mxu0 %v216
  %258 = vmatprep.subr.mxu0 0.0
  %259 = vmatpush1.msra.mxu0 %v215
  %260 = vmatprep.subr.mxu0 0.0
  %261 = vmatpush1.msra.mxu0 %v214
  %262 = vmatprep.subr.mxu0 0.0
  %263 = vmatpush1.msra.mxu0 %v213
  %264 = vmatprep.subr.mxu0 0.0
  %265 = vmatpush1.msra.mxu0 %v212
  %266 = vmatprep.subr.mxu0 0.0
  %267 = vmatpush2.msra.mxu0 0.0
  %268 = vmatprep.subr.mxu0 0.0
  %269 = vmatpush2.msra.mxu0 0.0
  %270 = vmatprep.subr.mxu0 0.0
  %271 = vmatpush2.msra.mxu0 0.0
  %272 = vmatprep.subr.mxu0 0.0
  %273 = vmatpush2.msra.mxu0 0.0
  %274 = vmatprep.subr.mxu0 0.0
  %275 = vmatpush2.msra.mxu0 0.0
  %276 = vmatprep.subr.mxu0 0.0
  %277 = vmatpush2.msra.mxu0 0.0
  %278 = vmatprep.subr.mxu0 0.0
  %279 = vmatpush2.msra.mxu0 0.0
  %280 = vmatprep.subr.mxu0 0.0
  %281 = vmatpush2.msra.mxu0 0.0
  %282 = vmatprep.subr.mxu0 0.0
  %283 = vmatpush2.msra.mxu0 0.0
  %284 = vmatprep.subr.mxu0 0.0
  %285 = vmatpush2.msra.mxu0 0.0
  %286 = vmatprep.subr.mxu0 0.0
  %287 = vmatpush2.msra.mxu0 0.0
  %288 = vmatprep.subr.mxu0 0.0
  %289 = vmatpush2.msra.mxu0 0.0
  %290 = vmatprep.subr.mxu0 0.0
  %291 = vmatpush2.msra.mxu0 0.0
  %292 = vmatprep.subr.mxu0 0.0
  %293 = vmatpush2.msra.mxu0 0.0
  %294 = vmatprep.subr.mxu0 0.0
  %295 = vmatpush2.msra.mxu0 0.0
  %296 = vmatprep.subr.mxu0 0.0
  %297 = vmatpush2.msra.mxu0 0.0
  %298 = vmatprep.mubr.f32.mxu0 0.0
  %299 = vmatmul.mubr.f32.gmra.mxu0 %v35
  %v300 = vpop.f32.mrf.mxu0
  %v301 = vadd.f32 %v232, %v300
  %v302 = vpop.f32.mrf.mxu0
  %303 = vdwg.mxu0
  %v304 = vld [vmem:[%s1 + $0x10] sm:$0xff]
  %v305 = vld [vmem:[%s1 + $0x28] sm:$0xff]
  %v307 = vlaneseq
  %v308 = vshrl.u32 %v307, 7
  %v309 = vsub.s32 0, %v308
  %v310 = vrot.slane %v33, %v309
  %312 = vmatprep.subr.mxu0 0.0
  %313 = vmatpush1.msra.mxu0 0.0
  %314 = vmatprep.subr.mxu0 0.0
  %315 = vmatpush1.msra.mxu0 0.0
  %316 = vmatprep.subr.mxu0 0.0
  %317 = vmatpush1.msra.mxu0 0.0
  %318 = vmatprep.subr.mxu0 0.0
  %319 = vmatpush1.msra.mxu0 0.0
  %320 = vmatprep.subr.mxu0 0.0
  %321 = vmatpush1.msra.mxu0 0.0
  %322 = vmatprep.subr.mxu0 0.0
  %323 = vmatpush1.msra.mxu0 0.0
  %324 = vmatprep.subr.mxu0 0.0
  %325 = vmatpush1.msra.mxu0 0.0
  %326 = vmatprep.subr.mxu0 0.0
  %327 = vmatpush1.msra.mxu0 0.0
  %328 = vmatprep.subr.mxu0 0.0
  %329 = vmatpush1.msra.mxu0 0.0
  %330 = vmatprep.subr.mxu0 0.0
  %331 = vmatpush1.msra.mxu0 0.0
  %332 = vmatprep.subr.mxu0 0.0
  %333 = vmatpush1.msra.mxu0 0.0
  %334 = vmatprep.subr.mxu0 0.0
  %335 = vmatpush1.msra.mxu0 0.0
  %336 = vmatprep.subr.mxu0 0.0
  %337 = vmatpush1.msra.mxu0 0.0
  %338 = vmatprep.subr.mxu0 0.0
  %339 = vmatpush1.msra.mxu0 0.0
  %340 = vmatprep.subr.mxu0 0.0
  %341 = vmatpush1.msra.mxu0 %v305
  %342 = vmatprep.subr.mxu0 0.0
  %343 = vmatpush1.msra.mxu0 %v304
  %344 = vmatprep.subr.mxu0 0.0
  %345 = vmatpush2.msra.mxu0 0.0
  %346 = vmatprep.subr.mxu0 0.0
  %347 = vmatpush2.msra.mxu0 0.0
  %348 = vmatprep.subr.mxu0 0.0
  %349 = vmatpush2.msra.mxu0 0.0
  %350 = vmatprep.subr.mxu0 0.0
  %351 = vmatpush2.msra.mxu0 0.0
  %352 = vmatprep.subr.mxu0 0.0
  %353 = vmatpush2.msra.mxu0 0.0
  %354 = vmatprep.subr.mxu0 0.0
  %355 = vmatpush2.msra.mxu0 0.0
  %356 = vmatprep.subr.mxu0 0.0
  %357 = vmatpush2.msra.mxu0 0.0
  %358 = vmatprep.subr.mxu0 0.0
  %359 = vmatpush2.msra.mxu0 0.0
  %360 = vmatprep.subr.mxu0 0.0
  %361 = vmatpush2.msra.mxu0 0.0
  %362 = vmatprep.subr.mxu0 0.0
  %363 = vmatpush2.msra.mxu0 0.0
  %364 = vmatprep.subr.mxu0 0.0
  %365 = vmatpush2.msra.mxu0 0.0
  %366 = vmatprep.subr.mxu0 0.0
  %367 = vmatpush2.msra.mxu0 0.0
  %368 = vmatprep.subr.mxu0 0.0
  %369 = vmatpush2.msra.mxu0 0.0
  %370 = vmatprep.subr.mxu0 0.0
  %371 = vmatpush2.msra.mxu0 0.0
  %372 = vmatprep.subr.mxu0 0.0
  %373 = vmatpush2.msra.mxu0 0.0
  %374 = vmatprep.subr.mxu0 0.0
  %375 = vmatpush2.msra.mxu0 0.0
  %376 = vmatprep.mubr.f32.mxu0 0.0
  %377 = vmatmul.mubr.f32.gmra.mxu0 %v133
  %v378 = vpop.f32.mrf.mxu0
  %v379 = vadd.f32 %v310, %v378
  %v380 = vpop.f32.mrf.mxu0
  %381 = vdwg.mxu0
  %v382 = vmul.f32 %v211, %v301
  %v383 = vadd.f32 %v379, %v382
  %v384 = vtanh.pop %v383
  %v385 = vld [vmem:[%s2 + $0x8] sm:$0xff]
  %v386 = vld [vmem:[%s2 + $0x20] sm:$0xff]
  %v387 = vld [vmem:[%s2 + $0x38] sm:$0xff]
  %v388 = vld [vmem:[%s2 + $0x50] sm:$0xff]
  %v389 = vld [vmem:[%s2 + $0x68] sm:$0xff]
  %v390 = vld [vmem:[%s2 + $0x80] sm:$0xff]
  %v391 = vld [vmem:[%s2 + $0x98] sm:$0xff]
  %v392 = vld [vmem:[%s2 + $0xb0] sm:$0xff]
  %v393 = vld [vmem:[%s2 + $0xc8] sm:$0xff]
  %v394 = vld [vmem:[%s2 + $0xe0] sm:$0xff]
  %v395 = vld [vmem:[%s2 + $0xf8] sm:$0xff]
  %v396 = vld [vmem:[%s2 + $0x110] sm:$0xff]
  %v397 = vld [vmem:[%s2 + $0x128] sm:$0xff]
  %v398 = vld [vmem:[%s2 + $0x140] sm:$0xff]
  %v399 = vld [vmem:[%s2 + $0x158] sm:$0xff]
  %v400 = vld [vmem:[%s2 + $0x170] sm:$0xff]
  %401 = vmatprep.subr.mxu0 0.0
  %402 = vmatpush1.msra.mxu0 %v400
  %403 = vmatprep.subr.mxu0 0.0
  %404 = vmatpush1.msra.mxu0 %v399
  %405 = vmatprep.subr.mxu0 0.0
  %406 = vmatpush1.msra.mxu0 %v398
  %407 = vmatprep.subr.mxu0 0.0
  %408 = vmatpush1.msra.mxu0 %v397
  %409 = vmatprep.subr.mxu0 0.0
  %410 = vmatpush1.msra.mxu0 %v396
  %411 = vmatprep.subr.mxu0 0.0
  %412 = vmatpush1.msra.mxu0 %v395
  %413 = vmatprep.subr.mxu0 0.0
  %414 = vmatpush1.msra.mxu0 %v394
  %415 = vmatprep.subr.mxu0 0.0
  %416 = vmatpush1.msra.mxu0 %v393
  %417 = vmatprep.subr.mxu0 0.0
  %418 = vmatpush1.msra.mxu0 %v392
  %419 = vmatprep.subr.mxu0 0.0
  %420 = vmatpush1.msra.mxu0 %v391
  %421 = vmatprep.subr.mxu0 0.0
  %422 = vmatpush1.msra.mxu0 %v390
  %423 = vmatprep.subr.mxu0 0.0
  %424 = vmatpush1.msra.mxu0 %v389
  %425 = vmatprep.subr.mxu0 0.0
  %426 = vmatpush1.msra.mxu0 %v388
  %427 = vmatprep.subr.mxu0 0.0
  %428 = vmatpush1.msra.mxu0 %v387
  %429 = vmatprep.subr.mxu0 0.0
  %430 = vmatpush1.msra.mxu0 %v386
  %431 = vmatprep.subr.mxu0 0.0
  %432 = vmatpush1.msra.mxu0 %v385
  %433 = vmatprep.subr.mxu0 0.0
  %434 = vmatpush2.msra.mxu0 0.0
  %435 = vmatprep.subr.mxu0 0.0
  %436 = vmatpush2.msra.mxu0 0.0
  %437 = vmatprep.subr.mxu0 0.0
  %438 = vmatpush2.msra.mxu0 0.0
  %439 = vmatprep.subr.mxu0 0.0
  %440 = vmatpush2.msra.mxu0 0.0
  %441 = vmatprep.subr.mxu0 0.0
  %442 = vmatpush2.msra.mxu0 0.0
  %443 = vmatprep.subr.mxu0 0.0
  %444 = vmatpush2.msra.mxu0 0.0
  %445 = vmatprep.subr.mxu0 0.0
  %446 = vmatpush2.msra.mxu0 0.0
  %447 = vmatprep.subr.mxu0 0.0
  %448 = vmatpush2.msra.mxu0 0.0
  %449 = vmatprep.subr.mxu0 0.0
  %450 = vmatpush2.msra.mxu0 0.0
  %451 = vmatprep.subr.mxu0 0.0
  %452 = vmatpush2.msra.mxu0 0.0
  %453 = vmatprep.subr.mxu0 0.0
  %454 = vmatpush2.msra.mxu0 0.0
  %455 = vmatprep.subr.mxu0 0.0
  %456 = vmatpush2.msra.mxu0 0.0
  %457 = vmatprep.subr.mxu0 0.0
  %458 = vmatpush2.msra.mxu0 0.0
  %459 = vmatprep.subr.mxu0 0.0
  %460 = vmatpush2.msra.mxu0 0.0
  %461 = vmatprep.subr.mxu0 0.0
  %462 = vmatpush2.msra.mxu0 0.0
  %463 = vmatprep.subr.mxu0 0.0
  %464 = vmatpush2.msra.mxu0 0.0
  %465 = vmatprep.mubr.f32.mxu0 0.0
  %466 = vmatmul.mubr.f32.gmra.mxu0 %v35
  %v467 = vpop.f32.mrf.mxu0
  %v468 = vadd.f32 0.0, %v467
  %v469 = vpop.f32.mrf.mxu0
  %470 = vdwg.mxu0
  %v471 = vld [vmem:[%s1 + $0x8] sm:$0xff]
  %v472 = vld [vmem:[%s1 + $0x20] sm:$0xff]
  %v474 = vlaneseq
  %v475 = vshrl.u32 %v474, 7
  %v476 = vsub.s32 0, %v475
  %v477 = vrot.slane %v32, %v476
  %479 = vmatprep.subr.mxu0 0.0
  %480 = vmatpush1.msra.mxu0 0.0
  %481 = vmatprep.subr.mxu0 0.0
  %482 = vmatpush1.msra.mxu0 0.0
  %483 = vmatprep.subr.mxu0 0.0
  %484 = vmatpush1.msra.mxu0 0.0
  %485 = vmatprep.subr.mxu0 0.0
  %486 = vmatpush1.msra.mxu0 0.0
  %487 = vmatprep.subr.mxu0 0.0
  %488 = vmatpush1.msra.mxu0 0.0
  %489 = vmatprep.subr.mxu0 0.0
  %490 = vmatpush1.msra.mxu0 0.0
  %491 = vmatprep.subr.mxu0 0.0
  %492 = vmatpush1.msra.mxu0 0.0
  %493 = vmatprep.subr.mxu0 0.0
  %494 = vmatpush1.msra.mxu0 0.0
  %495 = vmatprep.subr.mxu0 0.0
  %496 = vmatpush1.msra.mxu0 0.0
  %497 = vmatprep.subr.mxu0 0.0
  %498 = vmatpush1.msra.mxu0 0.0
  %499 = vmatprep.subr.mxu0 0.0
  %500 = vmatpush1.msra.mxu0 0.0
  %501 = vmatprep.subr.mxu0 0.0
  %502 = vmatpush1.msra.mxu0 0.0
  %503 = vmatprep.subr.mxu0 0.0
  %504 = vmatpush1.msra.mxu0 0.0
  %505 = vmatprep.subr.mxu0 0.0
  %506 = vmatpush1.msra.mxu0 0.0
  %507 = vmatprep.subr.mxu0 0.0
  %508 = vmatpush1.msra.mxu0 %v472
  %509 = vmatprep.subr.mxu0 0.0
  %510 = vmatpush1.msra.mxu0 %v471
  %511 = vmatprep.subr.mxu0 0.0
  %512 = vmatpush2.msra.mxu0 0.0
  %513 = vmatprep.subr.mxu0 0.0
  %514 = vmatpush2.msra.mxu0 0.0
  %515 = vmatprep.subr.mxu0 0.0
  %516 = vmatpush2.msra.mxu0 0.0
  %517 = vmatprep.subr.mxu0 0.0
  %518 = vmatpush2.msra.mxu0 0.0
  %519 = vmatprep.subr.mxu0 0.0
  %520 = vmatpush2.msra.mxu0 0.0
  %521 = vmatprep.subr.mxu0 0.0
  %522 = vmatpush2.msra.mxu0 0.0
  %523 = vmatprep.subr.mxu0 0.0
  %524 = vmatpush2.msra.mxu0 0.0
  %525 = vmatprep.subr.mxu0 0.0
  %526 = vmatpush2.msra.mxu0 0.0
  %527 = vmatprep.subr.mxu0 0.0
  %528 = vmatpush2.msra.mxu0 0.0
  %529 = vmatprep.subr.mxu0 0.0
  %530 = vmatpush2.msra.mxu0 0.0
  %531 = vmatprep.subr.mxu0 0.0
  %532 = vmatpush2.msra.mxu0 0.0
  %533 = vmatprep.subr.mxu0 0.0
  %534 = vmatpush2.msra.mxu0 0.0
  %535 = vmatprep.subr.mxu0 0.0
  %536 = vmatpush2.msra.mxu0 0.0
  %537 = vmatprep.subr.mxu0 0.0
  %538 = vmatpush2.msra.mxu0 0.0
  %539 = vmatprep.subr.mxu0 0.0
  %540 = vmatpush2.msra.mxu0 0.0
  %541 = vmatprep.subr.mxu0 0.0
  %542 = vmatpush2.msra.mxu0 0.0
  %543 = vmatprep.mubr.f32.mxu0 0.0
  %544 = vmatmul.mubr.f32.gmra.mxu0 %v133
  %v545 = vpop.f32.mrf.mxu0
  %v546 = vadd.f32 %v477, %v545
  %v547 = vpop.f32.mrf.mxu0
  %548 = vdwg.mxu0
  %v549 = vadd.f32 %v546, %v468
  %v550 = vxor.u32 %v549, 2147483648
  %v551 = vmul.f32 %v550, 1.442695
  %v552 = vpow.pop %v551
  %v553 = vadd.f32 %v552, 1.0
  %v554 = vrcp.pop %v553
  %v555 = vmul.f32 1.0, %v554
  %v556 = vsub.f32 %v35, %v384
  %v557 = vmul.f32 %v555, %v556
  %v558 = vadd.f32 %v384, %v557
  %s559 = scalar_lea.vmem %s0, 8
  %v560 = vld [vmem:[%s559] sm:$0xff]
  %561 = vmatprep.subr.mxu0 0.0
  %562 = vmatpush1.msra.mxu0 %v52
  %563 = vmatprep.subr.mxu0 0.0
  %564 = vmatpush1.msra.mxu0 %v51
  %565 = vmatprep.subr.mxu0 0.0
  %566 = vmatpush1.msra.mxu0 %v50
  %567 = vmatprep.subr.mxu0 0.0
  %568 = vmatpush1.msra.mxu0 %v49
  %569 = vmatprep.subr.mxu0 0.0
  %570 = vmatpush1.msra.mxu0 %v48
  %571 = vmatprep.subr.mxu0 0.0
  %572 = vmatpush1.msra.mxu0 %v47
  %573 = vmatprep.subr.mxu0 0.0
  %574 = vmatpush1.msra.mxu0 %v46
  %575 = vmatprep.subr.mxu0 0.0
  %576 = vmatpush1.msra.mxu0 %v45
  %577 = vmatprep.subr.mxu0 0.0
  %578 = vmatpush1.msra.mxu0 %v44
  %579 = vmatprep.subr.mxu0 0.0
  %580 = vmatpush1.msra.mxu0 %v43
  %581 = vmatprep.subr.mxu0 0.0
  %582 = vmatpush1.msra.mxu0 %v42
  %583 = vmatprep.subr.mxu0 0.0
  %584 = vmatpush1.msra.mxu0 %v41
  %585 = vmatprep.subr.mxu0 0.0
  %586 = vmatpush1.msra.mxu0 %v40
  %587 = vmatprep.subr.mxu0 0.0
  %588 = vmatpush1.msra.mxu0 %v39
  %589 = vmatprep.subr.mxu0 0.0
  %590 = vmatpush1.msra.mxu0 %v38
  %591 = vmatprep.subr.mxu0 0.0
  %592 = vmatpush1.msra.mxu0 %v37
  %593 = vmatprep.subr.mxu0 0.0
  %594 = vmatpush2.msra.mxu0 0.0
  %595 = vmatprep.subr.mxu0 0.0
  %596 = vmatpush2.msra.mxu0 0.0
  %597 = vmatprep.subr.mxu0 0.0
  %598 = vmatpush2.msra.mxu0 0.0
  %599 = vmatprep.subr.mxu0 0.0
  %600 = vmatpush2.msra.mxu0 0.0
  %601 = vmatprep.subr.mxu0 0.0
  %602 = vmatpush2.msra.mxu0 0.0
  %603 = vmatprep.subr.mxu0 0.0
  %604 = vmatpush2.msra.mxu0 0.0
  %605 = vmatprep.subr.mxu0 0.0
  %606 = vmatpush2.msra.mxu0 0.0
  %607 = vmatprep.subr.mxu0 0.0
  %608 = vmatpush2.msra.mxu0 0.0
  %609 = vmatprep.subr.mxu0 0.0
  %610 = vmatpush2.msra.mxu0 0.0
  %611 = vmatprep.subr.mxu0 0.0
  %612 = vmatpush2.msra.mxu0 0.0
  %613 = vmatprep.subr.mxu0 0.0
  %614 = vmatpush2.msra.mxu0 0.0
  %615 = vmatprep.subr.mxu0 0.0
  %616 = vmatpush2.msra.mxu0 0.0
  %617 = vmatprep.subr.mxu0 0.0
  %618 = vmatpush2.msra.mxu0 0.0
  %619 = vmatprep.subr.mxu0 0.0
  %620 = vmatpush2.msra.mxu0 0.0
  %621 = vmatprep.subr.mxu0 0.0
  %622 = vmatpush2.msra.mxu0 0.0
  %623 = vmatprep.subr.mxu0 0.0
  %624 = vmatpush2.msra.mxu0 0.0
  %625 = vmatprep.mubr.f32.mxu0 0.0
  %626 = vmatmul.mubr.f32.gmra.mxu0 %v558
  %v627 = vpop.f32.mrf.mxu0
  %v628 = vadd.f32 0.0, %v627
  %v629 = vpop.f32.mrf.mxu0
  %630 = vdwg.mxu0
  %v632 = vsel %vm131, %v560, 0
  %634 = vmatprep.subr.mxu0 0.0
  %635 = vmatpush1.msra.mxu0 0.0
  %636 = vmatprep.subr.mxu0 0.0
  %637 = vmatpush1.msra.mxu0 0.0
  %638 = vmatprep.subr.mxu0 0.0
  %639 = vmatpush1.msra.mxu0 0.0
  %640 = vmatprep.subr.mxu0 0.0
  %641 = vmatpush1.msra.mxu0 0.0
  %642 = vmatprep.subr.mxu0 0.0
  %643 = vmatpush1.msra.mxu0 0.0
  %644 = vmatprep.subr.mxu0 0.0
  %645 = vmatpush1.msra.mxu0 0.0
  %646 = vmatprep.subr.mxu0 0.0
  %647 = vmatpush1.msra.mxu0 0.0
  %648 = vmatprep.subr.mxu0 0.0
  %649 = vmatpush1.msra.mxu0 0.0
  %650 = vmatprep.subr.mxu0 0.0
  %651 = vmatpush1.msra.mxu0 0.0
  %652 = vmatprep.subr.mxu0 0.0
  %653 = vmatpush1.msra.mxu0 0.0
  %654 = vmatprep.subr.mxu0 0.0
  %655 = vmatpush1.msra.mxu0 0.0
  %656 = vmatprep.subr.mxu0 0.0
  %657 = vmatpush1.msra.mxu0 0.0
  %658 = vmatprep.subr.mxu0 0.0
  %659 = vmatpush1.msra.mxu0 0.0
  %660 = vmatprep.subr.mxu0 0.0
  %661 = vmatpush1.msra.mxu0 0.0
  %662 = vmatprep.subr.mxu0 0.0
  %663 = vmatpush1.msra.mxu0 %v124
  %664 = vmatprep.subr.mxu0 0.0
  %665 = vmatpush1.msra.mxu0 %v123
  %666 = vmatprep.subr.mxu0 0.0
  %667 = vmatpush2.msra.mxu0 0.0
  %668 = vmatprep.subr.mxu0 0.0
  %669 = vmatpush2.msra.mxu0 0.0
  %670 = vmatprep.subr.mxu0 0.0
  %671 = vmatpush2.msra.mxu0 0.0
  %672 = vmatprep.subr.mxu0 0.0
  %673 = vmatpush2.msra.mxu0 0.0
  %674 = vmatprep.subr.mxu0 0.0
  %675 = vmatpush2.msra.mxu0 0.0
  %676 = vmatprep.subr.mxu0 0.0
  %677 = vmatpush2.msra.mxu0 0.0
  %678 = vmatprep.subr.mxu0 0.0
  %679 = vmatpush2.msra.mxu0 0.0
  %680 = vmatprep.subr.mxu0 0.0
  %681 = vmatpush2.msra.mxu0 0.0
  %682 = vmatprep.subr.mxu0 0.0
  %683 = vmatpush2.msra.mxu0 0.0
  %684 = vmatprep.subr.mxu0 0.0
  %685 = vmatpush2.msra.mxu0 0.0
  %686 = vmatprep.subr.mxu0 0.0
  %687 = vmatpush2.msra.mxu0 0.0
  %688 = vmatprep.subr.mxu0 0.0
  %689 = vmatpush2.msra.mxu0 0.0
  %690 = vmatprep.subr.mxu0 0.0
  %691 = vmatpush2.msra.mxu0 0.0
  %692 = vmatprep.subr.mxu0 0.0
  %693 = vmatpush2.msra.mxu0 0.0
  %694 = vmatprep.subr.mxu0 0.0
  %695 = vmatpush2.msra.mxu0 0.0
  %696 = vmatprep.subr.mxu0 0.0
  %697 = vmatpush2.msra.mxu0 0.0
  %698 = vmatprep.mubr.f32.mxu0 0.0
  %699 = vmatmul.mubr.f32.gmra.mxu0 %v632
  %v700 = vpop.f32.mrf.mxu0
  %v701 = vadd.f32 %v129, %v700
  %v702 = vpop.f32.mrf.mxu0
  %703 = vdwg.mxu0
  %v704 = vadd.f32 %v701, %v628
  %v705 = vxor.u32 %v704, 2147483648
  %v706 = vmul.f32 %v705, 1.442695
  %v707 = vpow.pop %v706
  %v708 = vadd.f32 %v707, 1.0
  %v709 = vrcp.pop %v708
  %v710 = vmul.f32 1.0, %v709
  %711 = vmatprep.subr.mxu0 0.0
  %712 = vmatpush1.msra.mxu0 %v227
  %713 = vmatprep.subr.mxu0 0.0
  %714 = vmatpush1.msra.mxu0 %v226
  %715 = vmatprep.subr.mxu0 0.0
  %716 = vmatpush1.msra.mxu0 %v225
  %717 = vmatprep.subr.mxu0 0.0
  %718 = vmatpush1.msra.mxu0 %v224
  %719 = vmatprep.subr.mxu0 0.0
  %720 = vmatpush1.msra.mxu0 %v223
  %721 = vmatprep.subr.mxu0 0.0
  %722 = vmatpush1.msra.mxu0 %v222
  %723 = vmatprep.subr.mxu0 0.0
  %724 = vmatpush1.msra.mxu0 %v221
  %725 = vmatprep.subr.mxu0 0.0
  %726 = vmatpush1.msra.mxu0 %v220
  %727 = vmatprep.subr.mxu0 0.0
  %728 = vmatpush1.msra.mxu0 %v219
  %729 = vmatprep.subr.mxu0 0.0
  %730 = vmatpush1.msra.mxu0 %v218
  %731 = vmatprep.subr.mxu0 0.0
  %732 = vmatpush1.msra.mxu0 %v217
  %733 = vmatprep.subr.mxu0 0.0
  %734 = vmatpush1.msra.mxu0 %v216
  %735 = vmatprep.subr.mxu0 0.0
  %736 = vmatpush1.msra.mxu0 %v215
  %737 = vmatprep.subr.mxu0 0.0
  %738 = vmatpush1.msra.mxu0 %v214
  %739 = vmatprep.subr.mxu0 0.0
  %740 = vmatpush1.msra.mxu0 %v213
  %741 = vmatprep.subr.mxu0 0.0
  %742 = vmatpush1.msra.mxu0 %v212
  %743 = vmatprep.subr.mxu0 0.0
  %744 = vmatpush2.msra.mxu0 0.0
  %745 = vmatprep.subr.mxu0 0.0
  %746 = vmatpush2.msra.mxu0 0.0
  %747 = vmatprep.subr.mxu0 0.0
  %748 = vmatpush2.msra.mxu0 0.0
  %749 = vmatprep.subr.mxu0 0.0
  %750 = vmatpush2.msra.mxu0 0.0
  %751 = vmatprep.subr.mxu0 0.0
  %752 = vmatpush2.msra.mxu0 0.0
  %753 = vmatprep.subr.mxu0 0.0
  %754 = vmatpush2.msra.mxu0 0.0
  %755 = vmatprep.subr.mxu0 0.0
  %756 = vmatpush2.msra.mxu0 0.0
  %757 = vmatprep.subr.mxu0 0.0
  %758 = vmatpush2.msra.mxu0 0.0
  %759 = vmatprep.subr.mxu0 0.0
  %760 = vmatpush2.msra.mxu0 0.0
  %761 = vmatprep.subr.mxu0 0.0
  %762 = vmatpush2.msra.mxu0 0.0
  %763 = vmatprep.subr.mxu0 0.0
  %764 = vmatpush2.msra.mxu0 0.0
  %765 = vmatprep.subr.mxu0 0.0
  %766 = vmatpush2.msra.mxu0 0.0
  %767 = vmatprep.subr.mxu0 0.0
  %768 = vmatpush2.msra.mxu0 0.0
  %769 = vmatprep.subr.mxu0 0.0
  %770 = vmatpush2.msra.mxu0 0.0
  %771 = vmatprep.subr.mxu0 0.0
  %772 = vmatpush2.msra.mxu0 0.0
  %773 = vmatprep.subr.mxu0 0.0
  %774 = vmatpush2.msra.mxu0 0.0
  %775 = vmatprep.mubr.f32.mxu0 0.0
  %776 = vmatmul.mubr.f32.gmra.mxu0 %v558
  %v777 = vpop.f32.mrf.mxu0
  %v778 = vadd.f32 %v232, %v777
  %v779 = vpop.f32.mrf.mxu0
  %780 = vdwg.mxu0
  %781 = vmatprep.subr.mxu0 0.0
  %782 = vmatpush1.msra.mxu0 0.0
  %783 = vmatprep.subr.mxu0 0.0
  %784 = vmatpush1.msra.mxu0 0.0
  %785 = vmatprep.subr.mxu0 0.0
  %786 = vmatpush1.msra.mxu0 0.0
  %787 = vmatprep.subr.mxu0 0.0
  %788 = vmatpush1.msra.mxu0 0.0
  %789 = vmatprep.subr.mxu0 0.0
  %790 = vmatpush1.msra.mxu0 0.0
  %791 = vmatprep.subr.mxu0 0.0
  %792 = vmatpush1.msra.mxu0 0.0
  %793 = vmatprep.subr.mxu0 0.0
  %794 = vmatpush1.msra.mxu0 0.0
  %795 = vmatprep.subr.mxu0 0.0
  %796 = vmatpush1.msra.mxu0 0.0
  %797 = vmatprep.subr.mxu0 0.0
  %798 = vmatpush1.msra.mxu0 0.0
  %799 = vmatprep.subr.mxu0 0.0
  %800 = vmatpush1.msra.mxu0 0.0
  %801 = vmatprep.subr.mxu0 0.0
  %802 = vmatpush1.msra.mxu0 0.0
  %803 = vmatprep.subr.mxu0 0.0
  %804 = vmatpush1.msra.mxu0 0.0
  %805 = vmatprep.subr.mxu0 0.0
  %806 = vmatpush1.msra.mxu0 0.0
  %807 = vmatprep.subr.mxu0 0.0
  %808 = vmatpush1.msra.mxu0 0.0
  %809 = vmatprep.subr.mxu0 0.0
  %810 = vmatpush1.msra.mxu0 %v305
  %811 = vmatprep.subr.mxu0 0.0
  %812 = vmatpush1.msra.mxu0 %v304
  %813 = vmatprep.subr.mxu0 0.0
  %814 = vmatpush2.msra.mxu0 0.0
  %815 = vmatprep.subr.mxu0 0.0
  %816 = vmatpush2.msra.mxu0 0.0
  %817 = vmatprep.subr.mxu0 0.0
  %818 = vmatpush2.msra.mxu0 0.0
  %819 = vmatprep.subr.mxu0 0.0
  %820 = vmatpush2.msra.mxu0 0.0
  %821 = vmatprep.subr.mxu0 0.0
  %822 = vmatpush2.msra.mxu0 0.0
  %823 = vmatprep.subr.mxu0 0.0
  %824 = vmatpush2.msra.mxu0 0.0
  %825 = vmatprep.subr.mxu0 0.0
  %826 = vmatpush2.msra.mxu0 0.0
  %827 = vmatprep.subr.mxu0 0.0
  %828 = vmatpush2.msra.mxu0 0.0
  %829 = vmatprep.subr.mxu0 0.0
  %830 = vmatpush2.msra.mxu0 0.0
  %831 = vmatprep.subr.mxu0 0.0
  %832 = vmatpush2.msra.mxu0 0.0
  %833 = vmatprep.subr.mxu0 0.0
  %834 = vmatpush2.msra.mxu0 0.0
  %835 = vmatprep.subr.mxu0 0.0
  %836 = vmatpush2.msra.mxu0 0.0
  %837 = vmatprep.subr.mxu0 0.0
  %838 = vmatpush2.msra.mxu0 0.0
  %839 = vmatprep.subr.mxu0 0.0
  %840 = vmatpush2.msra.mxu0 0.0
  %841 = vmatprep.subr.mxu0 0.0
  %842 = vmatpush2.msra.mxu0 0.0
  %843 = vmatprep.subr.mxu0 0.0
  %844 = vmatpush2.msra.mxu0 0.0
  %845 = vmatprep.mubr.f32.mxu0 0.0
  %846 = vmatmul.mubr.f32.gmra.mxu0 %v632
  %v847 = vpop.f32.mrf.mxu0
  %v848 = vadd.f32 %v310, %v847
  %v849 = vpop.f32.mrf.mxu0
  %850 = vdwg.mxu0
  %v851 = vmul.f32 %v710, %v778
  %v852 = vadd.f32 %v848, %v851
  %v853 = vtanh.pop %v852
  %854 = vmatprep.subr.mxu0 0.0
  %855 = vmatpush1.msra.mxu0 %v400
  %856 = vmatprep.subr.mxu0 0.0
  %857 = vmatpush1.msra.mxu0 %v399
  %858 = vmatprep.subr.mxu0 0.0
  %859 = vmatpush1.msra.mxu0 %v398
  %860 = vmatprep.subr.mxu0 0.0
  %861 = vmatpush1.msra.mxu0 %v397
  %862 = vmatprep.subr.mxu0 0.0
  %863 = vmatpush1.msra.mxu0 %v396
  %864 = vmatprep.subr.mxu0 0.0
  %865 = vmatpush1.msra.mxu0 %v395
  %866 = vmatprep.subr.mxu0 0.0
  %867 = vmatpush1.msra.mxu0 %v394
  %868 = vmatprep.subr.mxu0 0.0
  %869 = vmatpush1.msra.mxu0 %v393
  %870 = vmatprep.subr.mxu0 0.0
  %871 = vmatpush1.msra.mxu0 %v392
  %872 = vmatprep.subr.mxu0 0.0
  %873 = vmatpush1.msra.mxu0 %v391
  %874 = vmatprep.subr.mxu0 0.0
  %875 = vmatpush1.msra.mxu0 %v390
  %876 = vmatprep.subr.mxu0 0.0
  %877 = vmatpush1.msra.mxu0 %v389
  %878 = vmatprep.subr.mxu0 0.0
  %879 = vmatpush1.msra.mxu0 %v388
  %880 = vmatprep.subr.mxu0 0.0
  %881 = vmatpush1.msra.mxu0 %v387
  %882 = vmatprep.subr.mxu0 0.0
  %883 = vmatpush1.msra.mxu0 %v386
  %884 = vmatprep.subr.mxu0 0.0
  %885 = vmatpush1.msra.mxu0 %v385
  %886 = vmatprep.subr.mxu0 0.0
  %887 = vmatpush2.msra.mxu0 0.0
  %888 = vmatprep.subr.mxu0 0.0
  %889 = vmatpush2.msra.mxu0 0.0
  %890 = vmatprep.subr.mxu0 0.0
  %891 = vmatpush2.msra.mxu0 0.0
  %892 = vmatprep.subr.mxu0 0.0
  %893 = vmatpush2.msra.mxu0 0.0
  %894 = vmatprep.subr.mxu0 0.0
  %895 = vmatpush2.msra.mxu0 0.0
  %896 = vmatprep.subr.mxu0 0.0
  %897 = vmatpush2.msra.mxu0 0.0
  %898 = vmatprep.subr.mxu0 0.0
  %899 = vmatpush2.msra.mxu0 0.0
  %900 = vmatprep.subr.mxu0 0.0
  %901 = vmatpush2.msra.mxu0 0.0
  %902 = vmatprep.subr.mxu0 0.0
  %903 = vmatpush2.msra.mxu0 0.0
  %904 = vmatprep.subr.mxu0 0.0
  %905 = vmatpush2.msra.mxu0 0.0
  %906 = vmatprep.subr.mxu0 0.0
  %907 = vmatpush2.msra.mxu0 0.0
  %908 = vmatprep.subr.mxu0 0.0
  %909 = vmatpush2.msra.mxu0 0.0
  %910 = vmatprep.subr.mxu0 0.0
  %911 = vmatpush2.msra.mxu0 0.0
  %912 = vmatprep.subr.mxu0 0.0
  %913 = vmatpush2.msra.mxu0 0.0
  %914 = vmatprep.subr.mxu0 0.0
  %915 = vmatpush2.msra.mxu0 0.0
  %916 = vmatprep.subr.mxu0 0.0
  %917 = vmatpush2.msra.mxu0 0.0
  %918 = vmatprep.mubr.f32.mxu0 0.0
  %919 = vmatmul.mubr.f32.gmra.mxu0 %v558
  %v920 = vpop.f32.mrf.mxu0
  %v921 = vadd.f32 0.0, %v920
  %v922 = vpop.f32.mrf.mxu0
  %923 = vdwg.mxu0
  %924 = vmatprep.subr.mxu0 0.0
  %925 = vmatpush1.msra.mxu0 0.0
  %926 = vmatprep.subr.mxu0 0.0
  %927 = vmatpush1.msra.mxu0 0.0
  %928 = vmatprep.subr.mxu0 0.0
  %929 = vmatpush1.msra.mxu0 0.0
  %930 = vmatprep.subr.mxu0 0.0
  %931 = vmatpush1.msra.mxu0 0.0
  %932 = vmatprep.subr.mxu0 0.0
  %933 = vmatpush1.msra.mxu0 0.0
  %934 = vmatprep.subr.mxu0 0.0
  %935 = vmatpush1.msra.mxu0 0.0
  %936 = vmatprep.subr.mxu0 0.0
  %937 = vmatpush1.msra.mxu0 0.0
  %938 = vmatprep.subr.mxu0 0.0
  %939 = vmatpush1.msra.mxu0 0.0
  %940 = vmatprep.subr.mxu0 0.0
  %941 = vmatpush1.msra.mxu0 0.0
  %942 = vmatprep.subr.mxu0 0.0
  %943 = vmatpush1.msra.mxu0 0.0
  %944 = vmatprep.subr.mxu0 0.0
  %945 = vmatpush1.msra.mxu0 0.0
  %946 = vmatprep.subr.mxu0 0.0
  %947 = vmatpush1.msra.mxu0 0.0
  %948 = vmatprep.subr.mxu0 0.0
  %949 = vmatpush1.msra.mxu0 0.0
  %950 = vmatprep.subr.mxu0 0.0
  %951 = vmatpush1.msra.mxu0 0.0
  %952 = vmatprep.subr.mxu0 0.0
  %953 = vmatpush1.msra.mxu0 %v472
  %954 = vmatprep.subr.mxu0 0.0
  %955 = vmatpush1.msra.mxu0 %v471
  %956 = vmatprep.subr.mxu0 0.0
  %957 = vmatpush2.msra.mxu0 0.0
  %958 = vmatprep.subr.mxu0 0.0
  %959 = vmatpush2.msra.mxu0 0.0
  %960 = vmatprep.subr.mxu0 0.0
  %961 = vmatpush2.msra.mxu0 0.0
  %962 = vmatprep.subr.mxu0 0.0
  %963 = vmatpush2.msra.mxu0 0.0
  %964 = vmatprep.subr.mxu0 0.0
  %965 = vmatpush2.msra.mxu0 0.0
  %966 = vmatprep.subr.mxu0 0.0
  %967 = vmatpush2.msra.mxu0 0.0
  %968 = vmatprep.subr.mxu0 0.0
  %969 = vmatpush2.msra.mxu0 0.0
  %970 = vmatprep.subr.mxu0 0.0
  %971 = vmatpush2.msra.mxu0 0.0
  %972 = vmatprep.subr.mxu0 0.0
  %973 = vmatpush2.msra.mxu0 0.0
  %974 = vmatprep.subr.mxu0 0.0
  %975 = vmatpush2.msra.mxu0 0.0
  %976 = vmatprep.subr.mxu0 0.0
  %977 = vmatpush2.msra.mxu0 0.0
  %978 = vmatprep.subr.mxu0 0.0
  %979 = vmatpush2.msra.mxu0 0.0
  %980 = vmatprep.subr.mxu0 0.0
  %981 = vmatpush2.msra.mxu0 0.0
  %982 = vmatprep.subr.mxu0 0.0
  %983 = vmatpush2.msra.mxu0 0.0
  %984 = vmatprep.subr.mxu0 0.0
  %985 = vmatpush2.msra.mxu0 0.0
  %986 = vmatprep.subr.mxu0 0.0
  %987 = vmatpush2.msra.mxu0 0.0
  %988 = vmatprep.mubr.f32.mxu0 0.0
  %989 = vmatmul.mubr.f32.gmra.mxu0 %v632
  %v990 = vpop.f32.mrf.mxu0
  %v991 = vadd.f32 %v477, %v990
  %v992 = vpop.f32.mrf.mxu0
  %993 = vdwg.mxu0
  %v994 = vadd.f32 %v991, %v921
  %v995 = vxor.u32 %v994, 2147483648
  %v996 = vmul.f32 %v995, 1.442695
  %v997 = vpow.pop %v996
  %v998 = vadd.f32 %v997, 1.0
  %v999 = vrcp.pop %v998
  %v1000 = vmul.f32 1.0, %v999
  %v1001 = vsub.f32 %v558, %v853
  %v1002 = vmul.f32 %v1000, %v1001
  %v1003 = vadd.f32 %v853, %v1002
  %s1004 = scalar_lea.vmem %s0, 16
  %v1005 = vld [vmem:[%s1004] sm:$0xff]
  %1006 = vmatprep.subr.mxu0 0.0
  %1007 = vmatpush1.msra.mxu0 %v52
  %1008 = vmatprep.subr.mxu0 0.0
  %1009 = vmatpush1.msra.mxu0 %v51
  %1010 = vmatprep.subr.mxu0 0.0
  %1011 = vmatpush1.msra.mxu0 %v50
  %1012 = vmatprep.subr.mxu0 0.0
  %1013 = vmatpush1.msra.mxu0 %v49
  %1014 = vmatprep.subr.mxu0 0.0
  %1015 = vmatpush1.msra.mxu0 %v48
  %1016 = vmatprep.subr.mxu0 0.0
  %1017 = vmatpush1.msra.mxu0 %v47
  %1018 = vmatprep.subr.mxu0 0.0
  %1019 = vmatpush1.msra.mxu0 %v46
  %1020 = vmatprep.subr.mxu0 0.0
  %1021 = vmatpush1.msra.mxu0 %v45
  %1022 = vmatprep.subr.mxu0 0.0
  %1023 = vmatpush1.msra.mxu0 %v44
  %1024 = vmatprep.subr.mxu0 0.0
  %1025 = vmatpush1.msra.mxu0 %v43
  %1026 = vmatprep.subr.mxu0 0.0
  %1027 = vmatpush1.msra.mxu0 %v42
  %1028 = vmatprep.subr.mxu0 0.0
  %1029 = vmatpush1.msra.mxu0 %v41
  %1030 = vmatprep.subr.mxu0 0.0
  %1031 = vmatpush1.msra.mxu0 %v40
  %1032 = vmatprep.subr.mxu0 0.0
  %1033 = vmatpush1.msra.mxu0 %v39
  %1034 = vmatprep.subr.mxu0 0.0
  %1035 = vmatpush1.msra.mxu0 %v38
  %1036 = vmatprep.subr.mxu0 0.0
  %1037 = vmatpush1.msra.mxu0 %v37
  %1038 = vmatprep.subr.mxu0 0.0
  %1039 = vmatpush2.msra.mxu0 0.0
  %1040 = vmatprep.subr.mxu0 0.0
  %1041 = vmatpush2.msra.mxu0 0.0
  %1042 = vmatprep.subr.mxu0 0.0
  %1043 = vmatpush2.msra.mxu0 0.0
  %1044 = vmatprep.subr.mxu0 0.0
  %1045 = vmatpush2.msra.mxu0 0.0
  %1046 = vmatprep.subr.mxu0 0.0
  %1047 = vmatpush2.msra.mxu0 0.0
  %1048 = vmatprep.subr.mxu0 0.0
  %1049 = vmatpush2.msra.mxu0 0.0
  %1050 = vmatprep.subr.mxu0 0.0
  %1051 = vmatpush2.msra.mxu0 0.0
  %1052 = vmatprep.subr.mxu0 0.0
  %1053 = vmatpush2.msra.mxu0 0.0
  %1054 = vmatprep.subr.mxu0 0.0
  %1055 = vmatpush2.msra.mxu0 0.0
  %1056 = vmatprep.subr.mxu0 0.0
  %1057 = vmatpush2.msra.mxu0 0.0
  %1058 = vmatprep.subr.mxu0 0.0
  %1059 = vmatpush2.msra.mxu0 0.0
  %1060 = vmatprep.subr.mxu0 0.0
  %1061 = vmatpush2.msra.mxu0 0.0
  %1062 = vmatprep.subr.mxu0 0.0
  %1063 = vmatpush2.msra.mxu0 0.0
  %1064 = vmatprep.subr.mxu0 0.0
  %1065 = vmatpush2.msra.mxu0 0.0
  %1066 = vmatprep.subr.mxu0 0.0
  %1067 = vmatpush2.msra.mxu0 0.0
  %1068 = vmatprep.subr.mxu0 0.0
  %1069 = vmatpush2.msra.mxu0 0.0
  %1070 = vmatprep.mubr.f32.mxu0 0.0
  %1071 = vmatmul.mubr.f32.gmra.mxu0 %v1003
  %v1072 = vpop.f32.mrf.mxu0
  %v1073 = vadd.f32 0.0, %v1072
  %v1074 = vpop.f32.mrf.mxu0
  %1075 = vdwg.mxu0
  %v1077 = vsel %vm131, %v1005, 0
  %1079 = vmatprep.subr.mxu0 0.0
  %1080 = vmatpush1.msra.mxu0 0.0
  %1081 = vmatprep.subr.mxu0 0.0
  %1082 = vmatpush1.msra.mxu0 0.0
  %1083 = vmatprep.subr.mxu0 0.0
  %1084 = vmatpush1.msra.mxu0 0.0
  %1085 = vmatprep.subr.mxu0 0.0
  %1086 = vmatpush1.msra.mxu0 0.0
  %1087 = vmatprep.subr.mxu0 0.0
  %1088 = vmatpush1.msra.mxu0 0.0
  %1089 = vmatprep.subr.mxu0 0.0
  %1090 = vmatpush1.msra.mxu0 0.0
  %1091 = vmatprep.subr.mxu0 0.0
  %1092 = vmatpush1.msra.mxu0 0.0
  %1093 = vmatprep.subr.mxu0 0.0
  %1094 = vmatpush1.msra.mxu0 0.0
  %1095 = vmatprep.subr.mxu0 0.0
  %1096 = vmatpush1.msra.mxu0 0.0
  %1097 = vmatprep.subr.mxu0 0.0
  %1098 = vmatpush1.msra.mxu0 0.0
  %1099 = vmatprep.subr.mxu0 0.0
  %1100 = vmatpush1.msra.mxu0 0.0
  %1101 = vmatprep.subr.mxu0 0.0
  %1102 = vmatpush1.msra.mxu0 0.0
  %1103 = vmatprep.subr.mxu0 0.0
  %1104 = vmatpush1.msra.mxu0 0.0
  %1105 = vmatprep.subr.mxu0 0.0
  %1106 = vmatpush1.msra.mxu0 0.0
  %1107 = vmatprep.subr.mxu0 0.0
  %1108 = vmatpush1.msra.mxu0 %v124
  %1109 = vmatprep.subr.mxu0 0.0
  %1110 = vmatpush1.msra.mxu0 %v123
  %1111 = vmatprep.subr.mxu0 0.0
  %1112 = vmatpush2.msra.mxu0 0.0
  %1113 = vmatprep.subr.mxu0 0.0
  %1114 = vmatpush2.msra.mxu0 0.0
  %1115 = vmatprep.subr.mxu0 0.0
  %1116 = vmatpush2.msra.mxu0 0.0
  %1117 = vmatprep.subr.mxu0 0.0
  %1118 = vmatpush2.msra.mxu0 0.0
  %1119 = vmatprep.subr.mxu0 0.0
  %1120 = vmatpush2.msra.mxu0 0.0
  %1121 = vmatprep.subr.mxu0 0.0
  %1122 = vmatpush2.msra.mxu0 0.0
  %1123 = vmatprep.subr.mxu0 0.0
  %1124 = vmatpush2.msra.mxu0 0.0
  %1125 = vmatprep.subr.mxu0 0.0
  %1126 = vmatpush2.msra.mxu0 0.0
  %1127 = vmatprep.subr.mxu0 0.0
  %1128 = vmatpush2.msra.mxu0 0.0
  %1129 = vmatprep.subr.mxu0 0.0
  %1130 = vmatpush2.msra.mxu0 0.0
  %1131 = vmatprep.subr.mxu0 0.0
  %1132 = vmatpush2.msra.mxu0 0.0
  %1133 = vmatprep.subr.mxu0 0.0
  %1134 = vmatpush2.msra.mxu0 0.0
  %1135 = vmatprep.subr.mxu0 0.0
  %1136 = vmatpush2.msra.mxu0 0.0
  %1137 = vmatprep.subr.mxu0 0.0
  %1138 = vmatpush2.msra.mxu0 0.0
  %1139 = vmatprep.subr.mxu0 0.0
  %1140 = vmatpush2.msra.mxu0 0.0
  %1141 = vmatprep.subr.mxu0 0.0
  %1142 = vmatpush2.msra.mxu0 0.0
  %1143 = vmatprep.mubr.f32.mxu0 0.0
  %1144 = vmatmul.mubr.f32.gmra.mxu0 %v1077
  %v1145 = vpop.f32.mrf.mxu0
  %v1146 = vadd.f32 %v129, %v1145
  %v1147 = vpop.f32.mrf.mxu0
  %1148 = vdwg.mxu0
  %v1149 = vadd.f32 %v1146, %v1073
  %v1150 = vxor.u32 %v1149, 2147483648
  %v1151 = vmul.f32 %v1150, 1.442695
  %v1152 = vpow.pop %v1151
  %v1153 = vadd.f32 %v1152, 1.0
  %v1154 = vrcp.pop %v1153
  %v1155 = vmul.f32 1.0, %v1154
  %1156 = vmatprep.subr.mxu0 0.0
  %1157 = vmatpush1.msra.mxu0 %v227
  %1158 = vmatprep.subr.mxu0 0.0
  %1159 = vmatpush1.msra.mxu0 %v226
  %1160 = vmatprep.subr.mxu0 0.0
  %1161 = vmatpush1.msra.mxu0 %v225
  %1162 = vmatprep.subr.mxu0 0.0
  %1163 = vmatpush1.msra.mxu0 %v224
  %1164 = vmatprep.subr.mxu0 0.0
  %1165 = vmatpush1.msra.mxu0 %v223
  %1166 = vmatprep.subr.mxu0 0.0
  %1167 = vmatpush1.msra.mxu0 %v222
  %1168 = vmatprep.subr.mxu0 0.0
  %1169 = vmatpush1.msra.mxu0 %v221
  %1170 = vmatprep.subr.mxu0 0.0
  %1171 = vmatpush1.msra.mxu0 %v220
  %1172 = vmatprep.subr.mxu0 0.0
  %1173 = vmatpush1.msra.mxu0 %v219
  %1174 = vmatprep.subr.mxu0 0.0
  %1175 = vmatpush1.msra.mxu0 %v218
  %1176 = vmatprep.subr.mxu0 0.0
  %1177 = vmatpush1.msra.mxu0 %v217
  %1178 = vmatprep.subr.mxu0 0.0
  %1179 = vmatpush1.msra.mxu0 %v216
  %1180 = vmatprep.subr.mxu0 0.0
  %1181 = vmatpush1.msra.mxu0 %v215
  %1182 = vmatprep.subr.mxu0 0.0
  %1183 = vmatpush1.msra.mxu0 %v214
  %1184 = vmatprep.subr.mxu0 0.0
  %1185 = vmatpush1.msra.mxu0 %v213
  %1186 = vmatprep.subr.mxu0 0.0
  %1187 = vmatpush1.msra.mxu0 %v212
  %1188 = vmatprep.subr.mxu0 0.0
  %1189 = vmatpush2.msra.mxu0 0.0
  %1190 = vmatprep.subr.mxu0 0.0
  %1191 = vmatpush2.msra.mxu0 0.0
  %1192 = vmatprep.subr.mxu0 0.0
  %1193 = vmatpush2.msra.mxu0 0.0
  %1194 = vmatprep.subr.mxu0 0.0
  %1195 = vmatpush2.msra.mxu0 0.0
  %1196 = vmatprep.subr.mxu0 0.0
  %1197 = vmatpush2.msra.mxu0 0.0
  %1198 = vmatprep.subr.mxu0 0.0
  %1199 = vmatpush2.msra.mxu0 0.0
  %1200 = vmatprep.subr.mxu0 0.0
  %1201 = vmatpush2.msra.mxu0 0.0
  %1202 = vmatprep.subr.mxu0 0.0
  %1203 = vmatpush2.msra.mxu0 0.0
  %1204 = vmatprep.subr.mxu0 0.0
  %1205 = vmatpush2.msra.mxu0 0.0
  %1206 = vmatprep.subr.mxu0 0.0
  %1207 = vmatpush2.msra.mxu0 0.0
  %1208 = vmatprep.subr.mxu0 0.0
  %1209 = vmatpush2.msra.mxu0 0.0
  %1210 = vmatprep.subr.mxu0 0.0
  %1211 = vmatpush2.msra.mxu0 0.0
  %1212 = vmatprep.subr.mxu0 0.0
  %1213 = vmatpush2.msra.mxu0 0.0
  %1214 = vmatprep.subr.mxu0 0.0
  %1215 = vmatpush2.msra.mxu0 0.0
  %1216 = vmatprep.subr.mxu0 0.0
  %1217 = vmatpush2.msra.mxu0 0.0
  %1218 = vmatprep.subr.mxu0 0.0
  %1219 = vmatpush2.msra.mxu0 0.0
  %1220 = vmatprep.mubr.f32.mxu0 0.0
  %1221 = vmatmul.mubr.f32.gmra.mxu0 %v1003
  %v1222 = vpop.f32.mrf.mxu0
  %v1223 = vadd.f32 %v232, %v1222
  %v1224 = vpop.f32.mrf.mxu0
  %1225 = vdwg.mxu0
  %1226 = vmatprep.subr.mxu0 0.0
  %1227 = vmatpush1.msra.mxu0 0.0
  %1228 = vmatprep.subr.mxu0 0.0
  %1229 = vmatpush1.msra.mxu0 0.0
  %1230 = vmatprep.subr.mxu0 0.0
  %1231 = vmatpush1.msra.mxu0 0.0
  %1232 = vmatprep.subr.mxu0 0.0
  %1233 = vmatpush1.msra.mxu0 0.0
  %1234 = vmatprep.subr.mxu0 0.0
  %1235 = vmatpush1.msra.mxu0 0.0
  %1236 = vmatprep.subr.mxu0 0.0
  %1237 = vmatpush1.msra.mxu0 0.0
  %1238 = vmatprep.subr.mxu0 0.0
  %1239 = vmatpush1.msra.mxu0 0.0
  %1240 = vmatprep.subr.mxu0 0.0
  %1241 = vmatpush1.msra.mxu0 0.0
  %1242 = vmatprep.subr.mxu0 0.0
  %1243 = vmatpush1.msra.mxu0 0.0
  %1244 = vmatprep.subr.mxu0 0.0
  %1245 = vmatpush1.msra.mxu0 0.0
  %1246 = vmatprep.subr.mxu0 0.0
  %1247 = vmatpush1.msra.mxu0 0.0
  %1248 = vmatprep.subr.mxu0 0.0
  %1249 = vmatpush1.msra.mxu0 0.0
  %1250 = vmatprep.subr.mxu0 0.0
  %1251 = vmatpush1.msra.mxu0 0.0
  %1252 = vmatprep.subr.mxu0 0.0
  %1253 = vmatpush1.msra.mxu0 0.0
  %1254 = vmatprep.subr.mxu0 0.0
  %1255 = vmatpush1.msra.mxu0 %v305
  %1256 = vmatprep.subr.mxu0 0.0
  %1257 = vmatpush1.msra.mxu0 %v304
  %1258 = vmatprep.subr.mxu0 0.0
  %1259 = vmatpush2.msra.mxu0 0.0
  %1260 = vmatprep.subr.mxu0 0.0
  %1261 = vmatpush2.msra.mxu0 0.0
  %1262 = vmatprep.subr.mxu0 0.0
  %1263 = vmatpush2.msra.mxu0 0.0
  %1264 = vmatprep.subr.mxu0 0.0
  %1265 = vmatpush2.msra.mxu0 0.0
  %1266 = vmatprep.subr.mxu0 0.0
  %1267 = vmatpush2.msra.mxu0 0.0
  %1268 = vmatprep.subr.mxu0 0.0
  %1269 = vmatpush2.msra.mxu0 0.0
  %1270 = vmatprep.subr.mxu0 0.0
  %1271 = vmatpush2.msra.mxu0 0.0
  %1272 = vmatprep.subr.mxu0 0.0
  %1273 = vmatpush2.msra.mxu0 0.0
  %1274 = vmatprep.subr.mxu0 0.0
  %1275 = vmatpush2.msra.mxu0 0.0
  %1276 = vmatprep.subr.mxu0 0.0
  %1277 = vmatpush2.msra.mxu0 0.0
  %1278 = vmatprep.subr.mxu0 0.0
  %1279 = vmatpush2.msra.mxu0 0.0
  %1280 = vmatprep.subr.mxu0 0.0
  %1281 = vmatpush2.msra.mxu0 0.0
  %1282 = vmatprep.subr.mxu0 0.0
  %1283 = vmatpush2.msra.mxu0 0.0
  %1284 = vmatprep.subr.mxu0 0.0
  %1285 = vmatpush2.msra.mxu0 0.0
  %1286 = vmatprep.subr.mxu0 0.0
  %1287 = vmatpush2.msra.mxu0 0.0
  %1288 = vmatprep.subr.mxu0 0.0
  %1289 = vmatpush2.msra.mxu0 0.0
  %1290 = vmatprep.mubr.f32.mxu0 0.0
  %1291 = vmatmul.mubr.f32.gmra.mxu0 %v1077
  %v1292 = vpop.f32.mrf.mxu0
  %v1293 = vadd.f32 %v310, %v1292
  %v1294 = vpop.f32.mrf.mxu0
  %1295 = vdwg.mxu0
  %v1296 = vmul.f32 %v1155, %v1223
  %v1297 = vadd.f32 %v1293, %v1296
  %v1298 = vtanh.pop %v1297
  %1299 = vmatprep.subr.mxu0 0.0
  %1300 = vmatpush1.msra.mxu0 %v400
  %1301 = vmatprep.subr.mxu0 0.0
  %1302 = vmatpush1.msra.mxu0 %v399
  %1303 = vmatprep.subr.mxu0 0.0
  %1304 = vmatpush1.msra.mxu0 %v398
  %1305 = vmatprep.subr.mxu0 0.0
  %1306 = vmatpush1.msra.mxu0 %v397
  %1307 = vmatprep.subr.mxu0 0.0
  %1308 = vmatpush1.msra.mxu0 %v396
  %1309 = vmatprep.subr.mxu0 0.0
  %1310 = vmatpush1.msra.mxu0 %v395
  %1311 = vmatprep.subr.mxu0 0.0
  %1312 = vmatpush1.msra.mxu0 %v394
  %1313 = vmatprep.subr.mxu0 0.0
  %1314 = vmatpush1.msra.mxu0 %v393
  %1315 = vmatprep.subr.mxu0 0.0
  %1316 = vmatpush1.msra.mxu0 %v392
  %1317 = vmatprep.subr.mxu0 0.0
  %1318 = vmatpush1.msra.mxu0 %v391
  %1319 = vmatprep.subr.mxu0 0.0
  %1320 = vmatpush1.msra.mxu0 %v390
  %1321 = vmatprep.subr.mxu0 0.0
  %1322 = vmatpush1.msra.mxu0 %v389
  %1323 = vmatprep.subr.mxu0 0.0
  %1324 = vmatpush1.msra.mxu0 %v388
  %1325 = vmatprep.subr.mxu0 0.0
  %1326 = vmatpush1.msra.mxu0 %v387
  %1327 = vmatprep.subr.mxu0 0.0
  %1328 = vmatpush1.msra.mxu0 %v386
  %1329 = vmatprep.subr.mxu0 0.0
  %1330 = vmatpush1.msra.mxu0 %v385
  %1331 = vmatprep.subr.mxu0 0.0
  %1332 = vmatpush2.msra.mxu0 0.0
  %1333 = vmatprep.subr.mxu0 0.0
  %1334 = vmatpush2.msra.mxu0 0.0
  %1335 = vmatprep.subr.mxu0 0.0
  %1336 = vmatpush2.msra.mxu0 0.0
  %1337 = vmatprep.subr.mxu0 0.0
  %1338 = vmatpush2.msra.mxu0 0.0
  %1339 = vmatprep.subr.mxu0 0.0
  %1340 = vmatpush2.msra.mxu0 0.0
  %1341 = vmatprep.subr.mxu0 0.0
  %1342 = vmatpush2.msra.mxu0 0.0
  %1343 = vmatprep.subr.mxu0 0.0
  %1344 = vmatpush2.msra.mxu0 0.0
  %1345 = vmatprep.subr.mxu0 0.0
  %1346 = vmatpush2.msra.mxu0 0.0
  %1347 = vmatprep.subr.mxu0 0.0
  %1348 = vmatpush2.msra.mxu0 0.0
  %1349 = vmatprep.subr.mxu0 0.0
  %1350 = vmatpush2.msra.mxu0 0.0
  %1351 = vmatprep.subr.mxu0 0.0
  %1352 = vmatpush2.msra.mxu0 0.0
  %1353 = vmatprep.subr.mxu0 0.0
  %1354 = vmatpush2.msra.mxu0 0.0
  %1355 = vmatprep.subr.mxu0 0.0
  %1356 = vmatpush2.msra.mxu0 0.0
  %1357 = vmatprep.subr.mxu0 0.0
  %1358 = vmatpush2.msra.mxu0 0.0
  %1359 = vmatprep.subr.mxu0 0.0
  %1360 = vmatpush2.msra.mxu0 0.0
  %1361 = vmatprep.subr.mxu0 0.0
  %1362 = vmatpush2.msra.mxu0 0.0
  %1363 = vmatprep.mubr.f32.mxu0 0.0
  %1364 = vmatmul.mubr.f32.gmra.mxu0 %v1003
  %v1365 = vpop.f32.mrf.mxu0
  %v1366 = vadd.f32 0.0, %v1365
  %v1367 = vpop.f32.mrf.mxu0
  %1368 = vdwg.mxu0
  %1369 = vmatprep.subr.mxu0 0.0
  %1370 = vmatpush1.msra.mxu0 0.0
  %1371 = vmatprep.subr.mxu0 0.0
  %1372 = vmatpush1.msra.mxu0 0.0
  %1373 = vmatprep.subr.mxu0 0.0
  %1374 = vmatpush1.msra.mxu0 0.0
  %1375 = vmatprep.subr.mxu0 0.0
  %1376 = vmatpush1.msra.mxu0 0.0
  %1377 = vmatprep.subr.mxu0 0.0
  %1378 = vmatpush1.msra.mxu0 0.0
  %1379 = vmatprep.subr.mxu0 0.0
  %1380 = vmatpush1.msra.mxu0 0.0
  %1381 = vmatprep.subr.mxu0 0.0
  %1382 = vmatpush1.msra.mxu0 0.0
  %1383 = vmatprep.subr.mxu0 0.0
  %1384 = vmatpush1.msra.mxu0 0.0
  %1385 = vmatprep.subr.mxu0 0.0
  %1386 = vmatpush1.msra.mxu0 0.0
  %1387 = vmatprep.subr.mxu0 0.0
  %1388 = vmatpush1.msra.mxu0 0.0
  %1389 = vmatprep.subr.mxu0 0.0
  %1390 = vmatpush1.msra.mxu0 0.0
  %1391 = vmatprep.subr.mxu0 0.0
  %1392 = vmatpush1.msra.mxu0 0.0
  %1393 = vmatprep.subr.mxu0 0.0
  %1394 = vmatpush1.msra.mxu0 0.0
  %1395 = vmatprep.subr.mxu0 0.0
  %1396 = vmatpush1.msra.mxu0 0.0
  %1397 = vmatprep.subr.mxu0 0.0
  %1398 = vmatpush1.msra.mxu0 %v472
  %1399 = vmatprep.subr.mxu0 0.0
  %1400 = vmatpush1.msra.mxu0 %v471
  %1401 = vmatprep.subr.mxu0 0.0
  %1402 = vmatpush2.msra.mxu0 0.0
  %1403 = vmatprep.subr.mxu0 0.0
  %1404 = vmatpush2.msra.mxu0 0.0
  %1405 = vmatprep.subr.mxu0 0.0
  %1406 = vmatpush2.msra.mxu0 0.0
  %1407 = vmatprep.subr.mxu0 0.0
  %1408 = vmatpush2.msra.mxu0 0.0
  %1409 = vmatprep.subr.mxu0 0.0
  %1410 = vmatpush2.msra.mxu0 0.0
  %1411 = vmatprep.subr.mxu0 0.0
  %1412 = vmatpush2.msra.mxu0 0.0
  %1413 = vmatprep.subr.mxu0 0.0
  %1414 = vmatpush2.msra.mxu0 0.0
  %1415 = vmatprep.subr.mxu0 0.0
  %1416 = vmatpush2.msra.mxu0 0.0
  %1417 = vmatprep.subr.mxu0 0.0
  %1418 = vmatpush2.msra.mxu0 0.0
  %1419 = vmatprep.subr.mxu0 0.0
  %1420 = vmatpush2.msra.mxu0 0.0
  %1421 = vmatprep.subr.mxu0 0.0
  %1422 = vmatpush2.msra.mxu0 0.0
  %1423 = vmatprep.subr.mxu0 0.0
  %1424 = vmatpush2.msra.mxu0 0.0
  %1425 = vmatprep.subr.mxu0 0.0
  %1426 = vmatpush2.msra.mxu0 0.0
  %1427 = vmatprep.subr.mxu0 0.0
  %1428 = vmatpush2.msra.mxu0 0.0
  %1429 = vmatprep.subr.mxu0 0.0
  %1430 = vmatpush2.msra.mxu0 0.0
  %1431 = vmatprep.subr.mxu0 0.0
  %1432 = vmatpush2.msra.mxu0 0.0
  %1433 = vmatprep.mubr.f32.mxu0 0.0
  %1434 = vmatmul.mubr.f32.gmra.mxu0 %v1077
  %v1435 = vpop.f32.mrf.mxu0
  %v1436 = vadd.f32 %v477, %v1435
  %v1437 = vpop.f32.mrf.mxu0
  %1438 = vdwg.mxu0
  %v1439 = vadd.f32 %v1436, %v1366
  %v1440 = vxor.u32 %v1439, 2147483648
  %v1441 = vmul.f32 %v1440, 1.442695
  %v1442 = vpow.pop %v1441
  %v1443 = vadd.f32 %v1442, 1.0
  %v1444 = vrcp.pop %v1443
  %v1445 = vmul.f32 1.0, %v1444
  %v1446 = vsub.f32 %v1003, %v1298
  %v1447 = vmul.f32 %v1445, %v1446
  %v1448 = vadd.f32 %v1298, %v1447
  %s1449 = scalar_lea.vmem %s0, 24
  %v1450 = vld [vmem:[%s1449] sm:$0xff]
  %1451 = vmatprep.subr.mxu0 0.0
  %1452 = vmatpush1.msra.mxu0 %v52
  %1453 = vmatprep.subr.mxu0 0.0
  %1454 = vmatpush1.msra.mxu0 %v51
  %1455 = vmatprep.subr.mxu0 0.0
  %1456 = vmatpush1.msra.mxu0 %v50
  %1457 = vmatprep.subr.mxu0 0.0
  %1458 = vmatpush1.msra.mxu0 %v49
  %1459 = vmatprep.subr.mxu0 0.0
  %1460 = vmatpush1.msra.mxu0 %v48
  %1461 = vmatprep.subr.mxu0 0.0
  %1462 = vmatpush1.msra.mxu0 %v47
  %1463 = vmatprep.subr.mxu0 0.0
  %1464 = vmatpush1.msra.mxu0 %v46
  %1465 = vmatprep.subr.mxu0 0.0
  %1466 = vmatpush1.msra.mxu0 %v45
  %1467 = vmatprep.subr.mxu0 0.0
  %1468 = vmatpush1.msra.mxu0 %v44
  %1469 = vmatprep.subr.mxu0 0.0
  %1470 = vmatpush1.msra.mxu0 %v43
  %1471 = vmatprep.subr.mxu0 0.0
  %1472 = vmatpush1.msra.mxu0 %v42
  %1473 = vmatprep.subr.mxu0 0.0
  %1474 = vmatpush1.msra.mxu0 %v41
  %1475 = vmatprep.subr.mxu0 0.0
  %1476 = vmatpush1.msra.mxu0 %v40
  %1477 = vmatprep.subr.mxu0 0.0
  %1478 = vmatpush1.msra.mxu0 %v39
  %1479 = vmatprep.subr.mxu0 0.0
  %1480 = vmatpush1.msra.mxu0 %v38
  %1481 = vmatprep.subr.mxu0 0.0
  %1482 = vmatpush1.msra.mxu0 %v37
  %1483 = vmatprep.subr.mxu0 0.0
  %1484 = vmatpush2.msra.mxu0 0.0
  %1485 = vmatprep.subr.mxu0 0.0
  %1486 = vmatpush2.msra.mxu0 0.0
  %1487 = vmatprep.subr.mxu0 0.0
  %1488 = vmatpush2.msra.mxu0 0.0
  %1489 = vmatprep.subr.mxu0 0.0
  %1490 = vmatpush2.msra.mxu0 0.0
  %1491 = vmatprep.subr.mxu0 0.0
  %1492 = vmatpush2.msra.mxu0 0.0
  %1493 = vmatprep.subr.mxu0 0.0
  %1494 = vmatpush2.msra.mxu0 0.0
  %1495 = vmatprep.subr.mxu0 0.0
  %1496 = vmatpush2.msra.mxu0 0.0
  %1497 = vmatprep.subr.mxu0 0.0
  %1498 = vmatpush2.msra.mxu0 0.0
  %1499 = vmatprep.subr.mxu0 0.0
  %1500 = vmatpush2.msra.mxu0 0.0
  %1501 = vmatprep.subr.mxu0 0.0
  %1502 = vmatpush2.msra.mxu0 0.0
  %1503 = vmatprep.subr.mxu0 0.0
  %1504 = vmatpush2.msra.mxu0 0.0
  %1505 = vmatprep.subr.mxu0 0.0
  %1506 = vmatpush2.msra.mxu0 0.0
  %1507 = vmatprep.subr.mxu0 0.0
  %1508 = vmatpush2.msra.mxu0 0.0
  %1509 = vmatprep.subr.mxu0 0.0
  %1510 = vmatpush2.msra.mxu0 0.0
  %1511 = vmatprep.subr.mxu0 0.0
  %1512 = vmatpush2.msra.mxu0 0.0
  %1513 = vmatprep.subr.mxu0 0.0
  %1514 = vmatpush2.msra.mxu0 0.0
  %1515 = vmatprep.mubr.f32.mxu0 0.0
  %1516 = vmatmul.mubr.f32.gmra.mxu0 %v1448
  %v1517 = vpop.f32.mrf.mxu0
  %v1518 = vadd.f32 0.0, %v1517
  %v1519 = vpop.f32.mrf.mxu0
  %1520 = vdwg.mxu0
  %v1522 = vsel %vm131, %v1450, 0
  %1524 = vmatprep.subr.mxu0 0.0
  %1525 = vmatpush1.msra.mxu0 0.0
  %1526 = vmatprep.subr.mxu0 0.0
  %1527 = vmatpush1.msra.mxu0 0.0
  %1528 = vmatprep.subr.mxu0 0.0
  %1529 = vmatpush1.msra.mxu0 0.0
  %1530 = vmatprep.subr.mxu0 0.0
  %1531 = vmatpush1.msra.mxu0 0.0
  %1532 = vmatprep.subr.mxu0 0.0
  %1533 = vmatpush1.msra.mxu0 0.0
  %1534 = vmatprep.subr.mxu0 0.0
  %1535 = vmatpush1.msra.mxu0 0.0
  %1536 = vmatprep.subr.mxu0 0.0
  %1537 = vmatpush1.msra.mxu0 0.0
  %1538 = vmatprep.subr.mxu0 0.0
  %1539 = vmatpush1.msra.mxu0 0.0
  %1540 = vmatprep.subr.mxu0 0.0
  %1541 = vmatpush1.msra.mxu0 0.0
  %1542 = vmatprep.subr.mxu0 0.0
  %1543 = vmatpush1.msra.mxu0 0.0
  %1544 = vmatprep.subr.mxu0 0.0
  %1545 = vmatpush1.msra.mxu0 0.0
  %1546 = vmatprep.subr.mxu0 0.0
  %1547 = vmatpush1.msra.mxu0 0.0
  %1548 = vmatprep.subr.mxu0 0.0
  %1549 = vmatpush1.msra.mxu0 0.0
  %1550 = vmatprep.subr.mxu0 0.0
  %1551 = vmatpush1.msra.mxu0 0.0
  %1552 = vmatprep.subr.mxu0 0.0
  %1553 = vmatpush1.msra.mxu0 %v124
  %1554 = vmatprep.subr.mxu0 0.0
  %1555 = vmatpush1.msra.mxu0 %v123
  %1556 = vmatprep.subr.mxu0 0.0
  %1557 = vmatpush2.msra.mxu0 0.0
  %1558 = vmatprep.subr.mxu0 0.0
  %1559 = vmatpush2.msra.mxu0 0.0
  %1560 = vmatprep.subr.mxu0 0.0
  %1561 = vmatpush2.msra.mxu0 0.0
  %1562 = vmatprep.subr.mxu0 0.0
  %1563 = vmatpush2.msra.mxu0 0.0
  %1564 = vmatprep.subr.mxu0 0.0
  %1565 = vmatpush2.msra.mxu0 0.0
  %1566 = vmatprep.subr.mxu0 0.0
  %1567 = vmatpush2.msra.mxu0 0.0
  %1568 = vmatprep.subr.mxu0 0.0
  %1569 = vmatpush2.msra.mxu0 0.0
  %1570 = vmatprep.subr.mxu0 0.0
  %1571 = vmatpush2.msra.mxu0 0.0
  %1572 = vmatprep.subr.mxu0 0.0
  %1573 = vmatpush2.msra.mxu0 0.0
  %1574 = vmatprep.subr.mxu0 0.0
  %1575 = vmatpush2.msra.mxu0 0.0
  %1576 = vmatprep.subr.mxu0 0.0
  %1577 = vmatpush2.msra.mxu0 0.0
  %1578 = vmatprep.subr.mxu0 0.0
  %1579 = vmatpush2.msra.mxu0 0.0
  %1580 = vmatprep.subr.mxu0 0.0
  %1581 = vmatpush2.msra.mxu0 0.0
  %1582 = vmatprep.subr.mxu0 0.0
  %1583 = vmatpush2.msra.mxu0 0.0
  %1584 = vmatprep.subr.mxu0 0.0
  %1585 = vmatpush2.msra.mxu0 0.0
  %1586 = vmatprep.subr.mxu0 0.0
  %1587 = vmatpush2.msra.mxu0 0.0
  %1588 = vmatprep.mubr.f32.mxu0 0.0
  %1589 = vmatmul.mubr.f32.gmra.mxu0 %v1522
  %v1590 = vpop.f32.mrf.mxu0
  %v1591 = vadd.f32 %v129, %v1590
  %v1592 = vpop.f32.mrf.mxu0
  %1593 = vdwg.mxu0
  %v1594 = vadd.f32 %v1591, %v1518
  %v1595 = vxor.u32 %v1594, 2147483648
  %v1596 = vmul.f32 %v1595, 1.442695
  %v1597 = vpow.pop %v1596
  %v1598 = vadd.f32 %v1597, 1.0
  %v1599 = vrcp.pop %v1598
  %v1600 = vmul.f32 1.0, %v1599
  %1601 = vmatprep.subr.mxu0 0.0
  %1602 = vmatpush1.msra.mxu0 %v227
  %1603 = vmatprep.subr.mxu0 0.0
  %1604 = vmatpush1.msra.mxu0 %v226
  %1605 = vmatprep.subr.mxu0 0.0
  %1606 = vmatpush1.msra.mxu0 %v225
  %1607 = vmatprep.subr.mxu0 0.0
  %1608 = vmatpush1.msra.mxu0 %v224
  %1609 = vmatprep.subr.mxu0 0.0
  %1610 = vmatpush1.msra.mxu0 %v223
  %1611 = vmatprep.subr.mxu0 0.0
  %1612 = vmatpush1.msra.mxu0 %v222
  %1613 = vmatprep.subr.mxu0 0.0
  %1614 = vmatpush1.msra.mxu0 %v221
  %1615 = vmatprep.subr.mxu0 0.0
  %1616 = vmatpush1.msra.mxu0 %v220
  %1617 = vmatprep.subr.mxu0 0.0
  %1618 = vmatpush1.msra.mxu0 %v219
  %1619 = vmatprep.subr.mxu0 0.0
  %1620 = vmatpush1.msra.mxu0 %v218
  %1621 = vmatprep.subr.mxu0 0.0
  %1622 = vmatpush1.msra.mxu0 %v217
  %1623 = vmatprep.subr.mxu0 0.0
  %1624 = vmatpush1.msra.mxu0 %v216
  %1625 = vmatprep.subr.mxu0 0.0
  %1626 = vmatpush1.msra.mxu0 %v215
  %1627 = vmatprep.subr.mxu0 0.0
  %1628 = vmatpush1.msra.mxu0 %v214
  %1629 = vmatprep.subr.mxu0 0.0
  %1630 = vmatpush1.msra.mxu0 %v213
  %1631 = vmatprep.subr.mxu0 0.0
  %1632 = vmatpush1.msra.mxu0 %v212
  %1633 = vmatprep.subr.mxu0 0.0
  %1634 = vmatpush2.msra.mxu0 0.0
  %1635 = vmatprep.subr.mxu0 0.0
  %1636 = vmatpush2.msra.mxu0 0.0
  %1637 = vmatprep.subr.mxu0 0.0
  %1638 = vmatpush2.msra.mxu0 0.0
  %1639 = vmatprep.subr.mxu0 0.0
  %1640 = vmatpush2.msra.mxu0 0.0
  %1641 = vmatprep.subr.mxu0 0.0
  %1642 = vmatpush2.msra.mxu0 0.0
  %1643 = vmatprep.subr.mxu0 0.0
  %1644 = vmatpush2.msra.mxu0 0.0
  %1645 = vmatprep.subr.mxu0 0.0
  %1646 = vmatpush2.msra.mxu0 0.0
  %1647 = vmatprep.subr.mxu0 0.0
  %1648 = vmatpush2.msra.mxu0 0.0
  %1649 = vmatprep.subr.mxu0 0.0
  %1650 = vmatpush2.msra.mxu0 0.0
  %1651 = vmatprep.subr.mxu0 0.0
  %1652 = vmatpush2.msra.mxu0 0.0
  %1653 = vmatprep.subr.mxu0 0.0
  %1654 = vmatpush2.msra.mxu0 0.0
  %1655 = vmatprep.subr.mxu0 0.0
  %1656 = vmatpush2.msra.mxu0 0.0
  %1657 = vmatprep.subr.mxu0 0.0
  %1658 = vmatpush2.msra.mxu0 0.0
  %1659 = vmatprep.subr.mxu0 0.0
  %1660 = vmatpush2.msra.mxu0 0.0
  %1661 = vmatprep.subr.mxu0 0.0
  %1662 = vmatpush2.msra.mxu0 0.0
  %1663 = vmatprep.subr.mxu0 0.0
  %1664 = vmatpush2.msra.mxu0 0.0
  %1665 = vmatprep.mubr.f32.mxu0 0.0
  %1666 = vmatmul.mubr.f32.gmra.mxu0 %v1448
  %v1667 = vpop.f32.mrf.mxu0
  %v1668 = vadd.f32 %v232, %v1667
  %v1669 = vpop.f32.mrf.mxu0
  %1670 = vdwg.mxu0
  %1671 = vmatprep.subr.mxu0 0.0
  %1672 = vmatpush1.msra.mxu0 0.0
  %1673 = vmatprep.subr.mxu0 0.0
  %1674 = vmatpush1.msra.mxu0 0.0
  %1675 = vmatprep.subr.mxu0 0.0
  %1676 = vmatpush1.msra.mxu0 0.0
  %1677 = vmatprep.subr.mxu0 0.0
  %1678 = vmatpush1.msra.mxu0 0.0
  %1679 = vmatprep.subr.mxu0 0.0
  %1680 = vmatpush1.msra.mxu0 0.0
  %1681 = vmatprep.subr.mxu0 0.0
  %1682 = vmatpush1.msra.mxu0 0.0
  %1683 = vmatprep.subr.mxu0 0.0
  %1684 = vmatpush1.msra.mxu0 0.0
  %1685 = vmatprep.subr.mxu0 0.0
  %1686 = vmatpush1.msra.mxu0 0.0
  %1687 = vmatprep.subr.mxu0 0.0
  %1688 = vmatpush1.msra.mxu0 0.0
  %1689 = vmatprep.subr.mxu0 0.0
  %1690 = vmatpush1.msra.mxu0 0.0
  %1691 = vmatprep.subr.mxu0 0.0
  %1692 = vmatpush1.msra.mxu0 0.0
  %1693 = vmatprep.subr.mxu0 0.0
  %1694 = vmatpush1.msra.mxu0 0.0
  %1695 = vmatprep.subr.mxu0 0.0
  %1696 = vmatpush1.msra.mxu0 0.0
  %1697 = vmatprep.subr.mxu0 0.0
  %1698 = vmatpush1.msra.mxu0 0.0
  %1699 = vmatprep.subr.mxu0 0.0
  %1700 = vmatpush1.msra.mxu0 %v305
  %1701 = vmatprep.subr.mxu0 0.0
  %1702 = vmatpush1.msra.mxu0 %v304
  %1703 = vmatprep.subr.mxu0 0.0
  %1704 = vmatpush2.msra.mxu0 0.0
  %1705 = vmatprep.subr.mxu0 0.0
  %1706 = vmatpush2.msra.mxu0 0.0
  %1707 = vmatprep.subr.mxu0 0.0
  %1708 = vmatpush2.msra.mxu0 0.0
  %1709 = vmatprep.subr.mxu0 0.0
  %1710 = vmatpush2.msra.mxu0 0.0
  %1711 = vmatprep.subr.mxu0 0.0
  %1712 = vmatpush2.msra.mxu0 0.0
  %1713 = vmatprep.subr.mxu0 0.0
  %1714 = vmatpush2.msra.mxu0 0.0
  %1715 = vmatprep.subr.mxu0 0.0
  %1716 = vmatpush2.msra.mxu0 0.0
  %1717 = vmatprep.subr.mxu0 0.0
  %1718 = vmatpush2.msra.mxu0 0.0
  %1719 = vmatprep.subr.mxu0 0.0
  %1720 = vmatpush2.msra.mxu0 0.0
  %1721 = vmatprep.subr.mxu0 0.0
  %1722 = vmatpush2.msra.mxu0 0.0
  %1723 = vmatprep.subr.mxu0 0.0
  %1724 = vmatpush2.msra.mxu0 0.0
  %1725 = vmatprep.subr.mxu0 0.0
  %1726 = vmatpush2.msra.mxu0 0.0
  %1727 = vmatprep.subr.mxu0 0.0
  %1728 = vmatpush2.msra.mxu0 0.0
  %1729 = vmatprep.subr.mxu0 0.0
  %1730 = vmatpush2.msra.mxu0 0.0
  %1731 = vmatprep.subr.mxu0 0.0
  %1732 = vmatpush2.msra.mxu0 0.0
  %1733 = vmatprep.subr.mxu0 0.0
  %1734 = vmatpush2.msra.mxu0 0.0
  %1735 = vmatprep.mubr.f32.mxu0 0.0
  %1736 = vmatmul.mubr.f32.gmra.mxu0 %v1522
  %v1737 = vpop.f32.mrf.mxu0
  %v1738 = vadd.f32 %v310, %v1737
  %v1739 = vpop.f32.mrf.mxu0
  %1740 = vdwg.mxu0
  %v1741 = vmul.f32 %v1600, %v1668
  %v1742 = vadd.f32 %v1738, %v1741
  %v1743 = vtanh.pop %v1742
  %1744 = vmatprep.subr.mxu0 0.0
  %1745 = vmatpush1.msra.mxu0 %v400
  %1746 = vmatprep.subr.mxu0 0.0
  %1747 = vmatpush1.msra.mxu0 %v399
  %1748 = vmatprep.subr.mxu0 0.0
  %1749 = vmatpush1.msra.mxu0 %v398
  %1750 = vmatprep.subr.mxu0 0.0
  %1751 = vmatpush1.msra.mxu0 %v397
  %1752 = vmatprep.subr.mxu0 0.0
  %1753 = vmatpush1.msra.mxu0 %v396
  %1754 = vmatprep.subr.mxu0 0.0
  %1755 = vmatpush1.msra.mxu0 %v395
  %1756 = vmatprep.subr.mxu0 0.0
  %1757 = vmatpush1.msra.mxu0 %v394
  %1758 = vmatprep.subr.mxu0 0.0
  %1759 = vmatpush1.msra.mxu0 %v393
  %1760 = vmatprep.subr.mxu0 0.0
  %1761 = vmatpush1.msra.mxu0 %v392
  %1762 = vmatprep.subr.mxu0 0.0
  %1763 = vmatpush1.msra.mxu0 %v391
  %1764 = vmatprep.subr.mxu0 0.0
  %1765 = vmatpush1.msra.mxu0 %v390
  %1766 = vmatprep.subr.mxu0 0.0
  %1767 = vmatpush1.msra.mxu0 %v389
  %1768 = vmatprep.subr.mxu0 0.0
  %1769 = vmatpush1.msra.mxu0 %v388
  %1770 = vmatprep.subr.mxu0 0.0
  %1771 = vmatpush1.msra.mxu0 %v387
  %1772 = vmatprep.subr.mxu0 0.0
  %1773 = vmatpush1.msra.mxu0 %v386
  %1774 = vmatprep.subr.mxu0 0.0
  %1775 = vmatpush1.msra.mxu0 %v385
  %1776 = vmatprep.subr.mxu0 0.0
  %1777 = vmatpush2.msra.mxu0 0.0
  %1778 = vmatprep.subr.mxu0 0.0
  %1779 = vmatpush2.msra.mxu0 0.0
  %1780 = vmatprep.subr.mxu0 0.0
  %1781 = vmatpush2.msra.mxu0 0.0
  %1782 = vmatprep.subr.mxu0 0.0
  %1783 = vmatpush2.msra.mxu0 0.0
  %1784 = vmatprep.subr.mxu0 0.0
  %1785 = vmatpush2.msra.mxu0 0.0
  %1786 = vmatprep.subr.mxu0 0.0
  %1787 = vmatpush2.msra.mxu0 0.0
  %1788 = vmatprep.subr.mxu0 0.0
  %1789 = vmatpush2.msra.mxu0 0.0
  %1790 = vmatprep.subr.mxu0 0.0
  %1791 = vmatpush2.msra.mxu0 0.0
  %1792 = vmatprep.subr.mxu0 0.0
  %1793 = vmatpush2.msra.mxu0 0.0
  %1794 = vmatprep.subr.mxu0 0.0
  %1795 = vmatpush2.msra.mxu0 0.0
  %1796 = vmatprep.subr.mxu0 0.0
  %1797 = vmatpush2.msra.mxu0 0.0
  %1798 = vmatprep.subr.mxu0 0.0
  %1799 = vmatpush2.msra.mxu0 0.0
  %1800 = vmatprep.subr.mxu0 0.0
  %1801 = vmatpush2.msra.mxu0 0.0
  %1802 = vmatprep.subr.mxu0 0.0
  %1803 = vmatpush2.msra.mxu0 0.0
  %1804 = vmatprep.subr.mxu0 0.0
  %1805 = vmatpush2.msra.mxu0 0.0
  %1806 = vmatprep.subr.mxu0 0.0
  %1807 = vmatpush2.msra.mxu0 0.0
  %1808 = vmatprep.mubr.f32.mxu0 0.0
  %1809 = vmatmul.mubr.f32.gmra.mxu0 %v1448
  %v1810 = vpop.f32.mrf.mxu0
  %v1811 = vadd.f32 0.0, %v1810
  %v1812 = vpop.f32.mrf.mxu0
  %1813 = vdwg.mxu0
  %1814 = vmatprep.subr.mxu0 0.0
  %1815 = vmatpush1.msra.mxu0 0.0
  %1816 = vmatprep.subr.mxu0 0.0
  %1817 = vmatpush1.msra.mxu0 0.0
  %1818 = vmatprep.subr.mxu0 0.0
  %1819 = vmatpush1.msra.mxu0 0.0
  %1820 = vmatprep.subr.mxu0 0.0
  %1821 = vmatpush1.msra.mxu0 0.0
  %1822 = vmatprep.subr.mxu0 0.0
  %1823 = vmatpush1.msra.mxu0 0.0
  %1824 = vmatprep.subr.mxu0 0.0
  %1825 = vmatpush1.msra.mxu0 0.0
  %1826 = vmatprep.subr.mxu0 0.0
  %1827 = vmatpush1.msra.mxu0 0.0
  %1828 = vmatprep.subr.mxu0 0.0
  %1829 = vmatpush1.msra.mxu0 0.0
  %1830 = vmatprep.subr.mxu0 0.0
  %1831 = vmatpush1.msra.mxu0 0.0
  %1832 = vmatprep.subr.mxu0 0.0
  %1833 = vmatpush1.msra.mxu0 0.0
  %1834 = vmatprep.subr.mxu0 0.0
  %1835 = vmatpush1.msra.mxu0 0.0
  %1836 = vmatprep.subr.mxu0 0.0
  %1837 = vmatpush1.msra.mxu0 0.0
  %1838 = vmatprep.subr.mxu0 0.0
  %1839 = vmatpush1.msra.mxu0 0.0
  %1840 = vmatprep.subr.mxu0 0.0
  %1841 = vmatpush1.msra.mxu0 0.0
  %1842 = vmatprep.subr.mxu0 0.0
  %1843 = vmatpush1.msra.mxu0 %v472
  %1844 = vmatprep.subr.mxu0 0.0
  %1845 = vmatpush1.msra.mxu0 %v471
  %1846 = vmatprep.subr.mxu0 0.0
  %1847 = vmatpush2.msra.mxu0 0.0
  %1848 = vmatprep.subr.mxu0 0.0
  %1849 = vmatpush2.msra.mxu0 0.0
  %1850 = vmatprep.subr.mxu0 0.0
  %1851 = vmatpush2.msra.mxu0 0.0
  %1852 = vmatprep.subr.mxu0 0.0
  %1853 = vmatpush2.msra.mxu0 0.0
  %1854 = vmatprep.subr.mxu0 0.0
  %1855 = vmatpush2.msra.mxu0 0.0
  %1856 = vmatprep.subr.mxu0 0.0
  %1857 = vmatpush2.msra.mxu0 0.0
  %1858 = vmatprep.subr.mxu0 0.0
  %1859 = vmatpush2.msra.mxu0 0.0
  %1860 = vmatprep.subr.mxu0 0.0
  %1861 = vmatpush2.msra.mxu0 0.0
  %1862 = vmatprep.subr.mxu0 0.0
  %1863 = vmatpush2.msra.mxu0 0.0
  %1864 = vmatprep.subr.mxu0 0.0
  %1865 = vmatpush2.msra.mxu0 0.0
  %1866 = vmatprep.subr.mxu0 0.0
  %1867 = vmatpush2.msra.mxu0 0.0
  %1868 = vmatprep.subr.mxu0 0.0
  %1869 = vmatpush2.msra.mxu0 0.0
  %1870 = vmatprep.subr.mxu0 0.0
  %1871 = vmatpush2.msra.mxu0 0.0
  %1872 = vmatprep.subr.mxu0 0.0
  %1873 = vmatpush2.msra.mxu0 0.0
  %1874 = vmatprep.subr.mxu0 0.0
  %1875 = vmatpush2.msra.mxu0 0.0
  %1876 = vmatprep.subr.mxu0 0.0
  %1877 = vmatpush2.msra.mxu0 0.0
  %1878 = vmatprep.mubr.f32.mxu0 0.0
  %1879 = vmatmul.mubr.f32.gmra.mxu0 %v1522
  %v1880 = vpop.f32.mrf.mxu0
  %v1881 = vadd.f32 %v477, %v1880
  %v1882 = vpop.f32.mrf.mxu0
  %1883 = vdwg.mxu0
  %v1884 = vadd.f32 %v1881, %v1811
  %v1885 = vxor.u32 %v1884, 2147483648
  %v1886 = vmul.f32 %v1885, 1.442695
  %v1887 = vpow.pop %v1886
  %v1888 = vadd.f32 %v1887, 1.0
  %v1889 = vrcp.pop %v1888
  %v1890 = vmul.f32 1.0, %v1889
  %v1891 = vsub.f32 %v1448, %v1743
  %v1892 = vmul.f32 %v1890, %v1891
  %v1893 = vadd.f32 %v1743, %v1892
  %s1894 = scalar_lea.vmem %s0, 32
  %v1895 = vld [vmem:[%s1894] sm:$0xff]
  %1896 = vmatprep.subr.mxu0 0.0
  %1897 = vmatpush1.msra.mxu0 %v52
  %1898 = vmatprep.subr.mxu0 0.0
  %1899 = vmatpush1.msra.mxu0 %v51
  %1900 = vmatprep.subr.mxu0 0.0
  %1901 = vmatpush1.msra.mxu0 %v50
  %1902 = vmatprep.subr.mxu0 0.0
  %1903 = vmatpush1.msra.mxu0 %v49
  %1904 = vmatprep.subr.mxu0 0.0
  %1905 = vmatpush1.msra.mxu0 %v48
  %1906 = vmatprep.subr.mxu0 0.0
  %1907 = vmatpush1.msra.mxu0 %v47
  %1908 = vmatprep.subr.mxu0 0.0
  %1909 = vmatpush1.msra.mxu0 %v46
  %1910 = vmatprep.subr.mxu0 0.0
  %1911 = vmatpush1.msra.mxu0 %v45
  %1912 = vmatprep.subr.mxu0 0.0
  %1913 = vmatpush1.msra.mxu0 %v44
  %1914 = vmatprep.subr.mxu0 0.0
  %1915 = vmatpush1.msra.mxu0 %v43
  %1916 = vmatprep.subr.mxu0 0.0
  %1917 = vmatpush1.msra.mxu0 %v42
  %1918 = vmatprep.subr.mxu0 0.0
  %1919 = vmatpush1.msra.mxu0 %v41
  %1920 = vmatprep.subr.mxu0 0.0
  %1921 = vmatpush1.msra.mxu0 %v40
  %1922 = vmatprep.subr.mxu0 0.0
  %1923 = vmatpush1.msra.mxu0 %v39
  %1924 = vmatprep.subr.mxu0 0.0
  %1925 = vmatpush1.msra.mxu0 %v38
  %1926 = vmatprep.subr.mxu0 0.0
  %1927 = vmatpush1.msra.mxu0 %v37
  %1928 = vmatprep.subr.mxu0 0.0
  %1929 = vmatpush2.msra.mxu0 0.0
  %1930 = vmatprep.subr.mxu0 0.0
  %1931 = vmatpush2.msra.mxu0 0.0
  %1932 = vmatprep.subr.mxu0 0.0
  %1933 = vmatpush2.msra.mxu0 0.0
  %1934 = vmatprep.subr.mxu0 0.0
  %1935 = vmatpush2.msra.mxu0 0.0
  %1936 = vmatprep.subr.mxu0 0.0
  %1937 = vmatpush2.msra.mxu0 0.0
  %1938 = vmatprep.subr.mxu0 0.0
  %1939 = vmatpush2.msra.mxu0 0.0
  %1940 = vmatprep.subr.mxu0 0.0
  %1941 = vmatpush2.msra.mxu0 0.0
  %1942 = vmatprep.subr.mxu0 0.0
  %1943 = vmatpush2.msra.mxu0 0.0
  %1944 = vmatprep.subr.mxu0 0.0
  %1945 = vmatpush2.msra.mxu0 0.0
  %1946 = vmatprep.subr.mxu0 0.0
  %1947 = vmatpush2.msra.mxu0 0.0
  %1948 = vmatprep.subr.mxu0 0.0
  %1949 = vmatpush2.msra.mxu0 0.0
  %1950 = vmatprep.subr.mxu0 0.0
  %1951 = vmatpush2.msra.mxu0 0.0
  %1952 = vmatprep.subr.mxu0 0.0
  %1953 = vmatpush2.msra.mxu0 0.0
  %1954 = vmatprep.subr.mxu0 0.0
  %1955 = vmatpush2.msra.mxu0 0.0
  %1956 = vmatprep.subr.mxu0 0.0
  %1957 = vmatpush2.msra.mxu0 0.0
  %1958 = vmatprep.subr.mxu0 0.0
  %1959 = vmatpush2.msra.mxu0 0.0
  %1960 = vmatprep.mubr.f32.mxu0 0.0
  %1961 = vmatmul.mubr.f32.gmra.mxu0 %v1893
  %v1962 = vpop.f32.mrf.mxu0
  %v1963 = vadd.f32 0.0, %v1962
  %v1964 = vpop.f32.mrf.mxu0
  %1965 = vdwg.mxu0
  %v1967 = vsel %vm131, %v1895, 0
  %1969 = vmatprep.subr.mxu0 0.0
  %1970 = vmatpush1.msra.mxu0 0.0
  %1971 = vmatprep.subr.mxu0 0.0
  %1972 = vmatpush1.msra.mxu0 0.0
  %1973 = vmatprep.subr.mxu0 0.0
  %1974 = vmatpush1.msra.mxu0 0.0
  %1975 = vmatprep.subr.mxu0 0.0
  %1976 = vmatpush1.msra.mxu0 0.0
  %1977 = vmatprep.subr.mxu0 0.0
  %1978 = vmatpush1.msra.mxu0 0.0
  %1979 = vmatprep.subr.mxu0 0.0
  %1980 = vmatpush1.msra.mxu0 0.0
  %1981 = vmatprep.subr.mxu0 0.0
  %1982 = vmatpush1.msra.mxu0 0.0
  %1983 = vmatprep.subr.mxu0 0.0
  %1984 = vmatpush1.msra.mxu0 0.0
  %1985 = vmatprep.subr.mxu0 0.0
  %1986 = vmatpush1.msra.mxu0 0.0
  %1987 = vmatprep.subr.mxu0 0.0
  %1988 = vmatpush1.msra.mxu0 0.0
  %1989 = vmatprep.subr.mxu0 0.0
  %1990 = vmatpush1.msra.mxu0 0.0
  %1991 = vmatprep.subr.mxu0 0.0
  %1992 = vmatpush1.msra.mxu0 0.0
  %1993 = vmatprep.subr.mxu0 0.0
  %1994 = vmatpush1.msra.mxu0 0.0
  %1995 = vmatprep.subr.mxu0 0.0
  %1996 = vmatpush1.msra.mxu0 0.0
  %1997 = vmatprep.subr.mxu0 0.0
  %1998 = vmatpush1.msra.mxu0 %v124
  %1999 = vmatprep.subr.mxu0 0.0
  %2000 = vmatpush1.msra.mxu0 %v123
  %2001 = vmatprep.subr.mxu0 0.0
  %2002 = vmatpush2.msra.mxu0 0.0
  %2003 = vmatprep.subr.mxu0 0.0
  %2004 = vmatpush2.msra.mxu0 0.0
  %2005 = vmatprep.subr.mxu0 0.0
  %2006 = vmatpush2.msra.mxu0 0.0
  %2007 = vmatprep.subr.mxu0 0.0
  %2008 = vmatpush2.msra.mxu0 0.0
  %2009 = vmatprep.subr.mxu0 0.0
  %2010 = vmatpush2.msra.mxu0 0.0
  %2011 = vmatprep.subr.mxu0 0.0
  %2012 = vmatpush2.msra.mxu0 0.0
  %2013 = vmatprep.subr.mxu0 0.0
  %2014 = vmatpush2.msra.mxu0 0.0
  %2015 = vmatprep.subr.mxu0 0.0
  %2016 = vmatpush2.msra.mxu0 0.0
  %2017 = vmatprep.subr.mxu0 0.0
  %2018 = vmatpush2.msra.mxu0 0.0
  %2019 = vmatprep.subr.mxu0 0.0
  %2020 = vmatpush2.msra.mxu0 0.0
  %2021 = vmatprep.subr.mxu0 0.0
  %2022 = vmatpush2.msra.mxu0 0.0
  %2023 = vmatprep.subr.mxu0 0.0
  %2024 = vmatpush2.msra.mxu0 0.0
  %2025 = vmatprep.subr.mxu0 0.0
  %2026 = vmatpush2.msra.mxu0 0.0
  %2027 = vmatprep.subr.mxu0 0.0
  %2028 = vmatpush2.msra.mxu0 0.0
  %2029 = vmatprep.subr.mxu0 0.0
  %2030 = vmatpush2.msra.mxu0 0.0
  %2031 = vmatprep.subr.mxu0 0.0
  %2032 = vmatpush2.msra.mxu0 0.0
  %2033 = vmatprep.mubr.f32.mxu0 0.0
  %2034 = vmatmul.mubr.f32.gmra.mxu0 %v1967
  %v2035 = vpop.f32.mrf.mxu0
  %v2036 = vadd.f32 %v129, %v2035
  %v2037 = vpop.f32.mrf.mxu0
  %2038 = vdwg.mxu0
  %v2039 = vadd.f32 %v2036, %v1963
  %v2040 = vxor.u32 %v2039, 2147483648
  %v2041 = vmul.f32 %v2040, 1.442695
  %v2042 = vpow.pop %v2041
  %v2043 = vadd.f32 %v2042, 1.0
  %v2044 = vrcp.pop %v2043
  %v2045 = vmul.f32 1.0, %v2044
  %2046 = vmatprep.subr.mxu0 0.0
  %2047 = vmatpush1.msra.mxu0 %v227
  %2048 = vmatprep.subr.mxu0 0.0
  %2049 = vmatpush1.msra.mxu0 %v226
  %2050 = vmatprep.subr.mxu0 0.0
  %2051 = vmatpush1.msra.mxu0 %v225
  %2052 = vmatprep.subr.mxu0 0.0
  %2053 = vmatpush1.msra.mxu0 %v224
  %2054 = vmatprep.subr.mxu0 0.0
  %2055 = vmatpush1.msra.mxu0 %v223
  %2056 = vmatprep.subr.mxu0 0.0
  %2057 = vmatpush1.msra.mxu0 %v222
  %2058 = vmatprep.subr.mxu0 0.0
  %2059 = vmatpush1.msra.mxu0 %v221
  %2060 = vmatprep.subr.mxu0 0.0
  %2061 = vmatpush1.msra.mxu0 %v220
  %2062 = vmatprep.subr.mxu0 0.0
  %2063 = vmatpush1.msra.mxu0 %v219
  %2064 = vmatprep.subr.mxu0 0.0
  %2065 = vmatpush1.msra.mxu0 %v218
  %2066 = vmatprep.subr.mxu0 0.0
  %2067 = vmatpush1.msra.mxu0 %v217
  %2068 = vmatprep.subr.mxu0 0.0
  %2069 = vmatpush1.msra.mxu0 %v216
  %2070 = vmatprep.subr.mxu0 0.0
  %2071 = vmatpush1.msra.mxu0 %v215
  %2072 = vmatprep.subr.mxu0 0.0
  %2073 = vmatpush1.msra.mxu0 %v214
  %2074 = vmatprep.subr.mxu0 0.0
  %2075 = vmatpush1.msra.mxu0 %v213
  %2076 = vmatprep.subr.mxu0 0.0
  %2077 = vmatpush1.msra.mxu0 %v212
  %2078 = vmatprep.subr.mxu0 0.0
  %2079 = vmatpush2.msra.mxu0 0.0
  %2080 = vmatprep.subr.mxu0 0.0
  %2081 = vmatpush2.msra.mxu0 0.0
  %2082 = vmatprep.subr.mxu0 0.0
  %2083 = vmatpush2.msra.mxu0 0.0
  %2084 = vmatprep.subr.mxu0 0.0
  %2085 = vmatpush2.msra.mxu0 0.0
  %2086 = vmatprep.subr.mxu0 0.0
  %2087 = vmatpush2.msra.mxu0 0.0
  %2088 = vmatprep.subr.mxu0 0.0
  %2089 = vmatpush2.msra.mxu0 0.0
  %2090 = vmatprep.subr.mxu0 0.0
  %2091 = vmatpush2.msra.mxu0 0.0
  %2092 = vmatprep.subr.mxu0 0.0
  %2093 = vmatpush2.msra.mxu0 0.0
  %2094 = vmatprep.subr.mxu0 0.0
  %2095 = vmatpush2.msra.mxu0 0.0
  %2096 = vmatprep.subr.mxu0 0.0
  %2097 = vmatpush2.msra.mxu0 0.0
  %2098 = vmatprep.subr.mxu0 0.0
  %2099 = vmatpush2.msra.mxu0 0.0
  %2100 = vmatprep.subr.mxu0 0.0
  %2101 = vmatpush2.msra.mxu0 0.0
  %2102 = vmatprep.subr.mxu0 0.0
  %2103 = vmatpush2.msra.mxu0 0.0
  %2104 = vmatprep.subr.mxu0 0.0
  %2105 = vmatpush2.msra.mxu0 0.0
  %2106 = vmatprep.subr.mxu0 0.0
  %2107 = vmatpush2.msra.mxu0 0.0
  %2108 = vmatprep.subr.mxu0 0.0
  %2109 = vmatpush2.msra.mxu0 0.0
  %2110 = vmatprep.mubr.f32.mxu0 0.0
  %2111 = vmatmul.mubr.f32.gmra.mxu0 %v1893
  %v2112 = vpop.f32.mrf.mxu0
  %v2113 = vadd.f32 %v232, %v2112
  %v2114 = vpop.f32.mrf.mxu0
  %2115 = vdwg.mxu0
  %2116 = vmatprep.subr.mxu0 0.0
  %2117 = vmatpush1.msra.mxu0 0.0
  %2118 = vmatprep.subr.mxu0 0.0
  %2119 = vmatpush1.msra.mxu0 0.0
  %2120 = vmatprep.subr.mxu0 0.0
  %2121 = vmatpush1.msra.mxu0 0.0
  %2122 = vmatprep.subr.mxu0 0.0
  %2123 = vmatpush1.msra.mxu0 0.0
  %2124 = vmatprep.subr.mxu0 0.0
  %2125 = vmatpush1.msra.mxu0 0.0
  %2126 = vmatprep.subr.mxu0 0.0
  %2127 = vmatpush1.msra.mxu0 0.0
  %2128 = vmatprep.subr.mxu0 0.0
  %2129 = vmatpush1.msra.mxu0 0.0
  %2130 = vmatprep.subr.mxu0 0.0
  %2131 = vmatpush1.msra.mxu0 0.0
  %2132 = vmatprep.subr.mxu0 0.0
  %2133 = vmatpush1.msra.mxu0 0.0
  %2134 = vmatprep.subr.mxu0 0.0
  %2135 = vmatpush1.msra.mxu0 0.0
  %2136 = vmatprep.subr.mxu0 0.0
  %2137 = vmatpush1.msra.mxu0 0.0
  %2138 = vmatprep.subr.mxu0 0.0
  %2139 = vmatpush1.msra.mxu0 0.0
  %2140 = vmatprep.subr.mxu0 0.0
  %2141 = vmatpush1.msra.mxu0 0.0
  %2142 = vmatprep.subr.mxu0 0.0
  %2143 = vmatpush1.msra.mxu0 0.0
  %2144 = vmatprep.subr.mxu0 0.0
  %2145 = vmatpush1.msra.mxu0 %v305
  %2146 = vmatprep.subr.mxu0 0.0
  %2147 = vmatpush1.msra.mxu0 %v304
  %2148 = vmatprep.subr.mxu0 0.0
  %2149 = vmatpush2.msra.mxu0 0.0
  %2150 = vmatprep.subr.mxu0 0.0
  %2151 = vmatpush2.msra.mxu0 0.0
  %2152 = vmatprep.subr.mxu0 0.0
  %2153 = vmatpush2.msra.mxu0 0.0
  %2154 = vmatprep.subr.mxu0 0.0
  %2155 = vmatpush2.msra.mxu0 0.0
  %2156 = vmatprep.subr.mxu0 0.0
  %2157 = vmatpush2.msra.mxu0 0.0
  %2158 = vmatprep.subr.mxu0 0.0
  %2159 = vmatpush2.msra.mxu0 0.0
  %2160 = vmatprep.subr.mxu0 0.0
  %2161 = vmatpush2.msra.mxu0 0.0
  %2162 = vmatprep.subr.mxu0 0.0
  %2163 = vmatpush2.msra.mxu0 0.0
  %2164 = vmatprep.subr.mxu0 0.0
  %2165 = vmatpush2.msra.mxu0 0.0
  %2166 = vmatprep.subr.mxu0 0.0
  %2167 = vmatpush2.msra.mxu0 0.0
  %2168 = vmatprep.subr.mxu0 0.0
  %2169 = vmatpush2.msra.mxu0 0.0
  %2170 = vmatprep.subr.mxu0 0.0
  %2171 = vmatpush2.msra.mxu0 0.0
  %2172 = vmatprep.subr.mxu0 0.0
  %2173 = vmatpush2.msra.mxu0 0.0
  %2174 = vmatprep.subr.mxu0 0.0
  %2175 = vmatpush2.msra.mxu0 0.0
  %2176 = vmatprep.subr.mxu0 0.0
  %2177 = vmatpush2.msra.mxu0 0.0
  %2178 = vmatprep.subr.mxu0 0.0
  %2179 = vmatpush2.msra.mxu0 0.0
  %2180 = vmatprep.mubr.f32.mxu0 0.0
  %2181 = vmatmul.mubr.f32.gmra.mxu0 %v1967
  %v2182 = vpop.f32.mrf.mxu0
  %v2183 = vadd.f32 %v310, %v2182
  %v2184 = vpop.f32.mrf.mxu0
  %2185 = vdwg.mxu0
  %v2186 = vmul.f32 %v2045, %v2113
  %v2187 = vadd.f32 %v2183, %v2186
  %v2188 = vtanh.pop %v2187
  %2189 = vmatprep.subr.mxu0 0.0
  %2190 = vmatpush1.msra.mxu0 %v400
  %2191 = vmatprep.subr.mxu0 0.0
  %2192 = vmatpush1.msra.mxu0 %v399
  %2193 = vmatprep.subr.mxu0 0.0
  %2194 = vmatpush1.msra.mxu0 %v398
  %2195 = vmatprep.subr.mxu0 0.0
  %2196 = vmatpush1.msra.mxu0 %v397
  %2197 = vmatprep.subr.mxu0 0.0
  %2198 = vmatpush1.msra.mxu0 %v396
  %2199 = vmatprep.subr.mxu0 0.0
  %2200 = vmatpush1.msra.mxu0 %v395
  %2201 = vmatprep.subr.mxu0 0.0
  %2202 = vmatpush1.msra.mxu0 %v394
  %2203 = vmatprep.subr.mxu0 0.0
  %2204 = vmatpush1.msra.mxu0 %v393
  %2205 = vmatprep.subr.mxu0 0.0
  %2206 = vmatpush1.msra.mxu0 %v392
  %2207 = vmatprep.subr.mxu0 0.0
  %2208 = vmatpush1.msra.mxu0 %v391
  %2209 = vmatprep.subr.mxu0 0.0
  %2210 = vmatpush1.msra.mxu0 %v390
  %2211 = vmatprep.subr.mxu0 0.0
  %2212 = vmatpush1.msra.mxu0 %v389
  %2213 = vmatprep.subr.mxu0 0.0
  %2214 = vmatpush1.msra.mxu0 %v388
  %2215 = vmatprep.subr.mxu0 0.0
  %2216 = vmatpush1.msra.mxu0 %v387
  %2217 = vmatprep.subr.mxu0 0.0
  %2218 = vmatpush1.msra.mxu0 %v386
  %2219 = vmatprep.subr.mxu0 0.0
  %2220 = vmatpush1.msra.mxu0 %v385
  %2221 = vmatprep.subr.mxu0 0.0
  %2222 = vmatpush2.msra.mxu0 0.0
  %2223 = vmatprep.subr.mxu0 0.0
  %2224 = vmatpush2.msra.mxu0 0.0
  %2225 = vmatprep.subr.mxu0 0.0
  %2226 = vmatpush2.msra.mxu0 0.0
  %2227 = vmatprep.subr.mxu0 0.0
  %2228 = vmatpush2.msra.mxu0 0.0
  %2229 = vmatprep.subr.mxu0 0.0
  %2230 = vmatpush2.msra.mxu0 0.0
  %2231 = vmatprep.subr.mxu0 0.0
  %2232 = vmatpush2.msra.mxu0 0.0
  %2233 = vmatprep.subr.mxu0 0.0
  %2234 = vmatpush2.msra.mxu0 0.0
  %2235 = vmatprep.subr.mxu0 0.0
  %2236 = vmatpush2.msra.mxu0 0.0
  %2237 = vmatprep.subr.mxu0 0.0
  %2238 = vmatpush2.msra.mxu0 0.0
  %2239 = vmatprep.subr.mxu0 0.0
  %2240 = vmatpush2.msra.mxu0 0.0
  %2241 = vmatprep.subr.mxu0 0.0
  %2242 = vmatpush2.msra.mxu0 0.0
  %2243 = vmatprep.subr.mxu0 0.0
  %2244 = vmatpush2.msra.mxu0 0.0
  %2245 = vmatprep.subr.mxu0 0.0
  %2246 = vmatpush2.msra.mxu0 0.0
  %2247 = vmatprep.subr.mxu0 0.0
  %2248 = vmatpush2.msra.mxu0 0.0
  %2249 = vmatprep.subr.mxu0 0.0
  %2250 = vmatpush2.msra.mxu0 0.0
  %2251 = vmatprep.subr.mxu0 0.0
  %2252 = vmatpush2.msra.mxu0 0.0
  %2253 = vmatprep.mubr.f32.mxu0 0.0
  %2254 = vmatmul.mubr.f32.gmra.mxu0 %v1893
  %v2255 = vpop.f32.mrf.mxu0
  %v2256 = vadd.f32 0.0, %v2255
  %v2257 = vpop.f32.mrf.mxu0
  %2258 = vdwg.mxu0
  %2259 = vmatprep.subr.mxu0 0.0
  %2260 = vmatpush1.msra.mxu0 0.0
  %2261 = vmatprep.subr.mxu0 0.0
  %2262 = vmatpush1.msra.mxu0 0.0
  %2263 = vmatprep.subr.mxu0 0.0
  %2264 = vmatpush1.msra.mxu0 0.0
  %2265 = vmatprep.subr.mxu0 0.0
  %2266 = vmatpush1.msra.mxu0 0.0
  %2267 = vmatprep.subr.mxu0 0.0
  %2268 = vmatpush1.msra.mxu0 0.0
  %2269 = vmatprep.subr.mxu0 0.0
  %2270 = vmatpush1.msra.mxu0 0.0
  %2271 = vmatprep.subr.mxu0 0.0
  %2272 = vmatpush1.msra.mxu0 0.0
  %2273 = vmatprep.subr.mxu0 0.0
  %2274 = vmatpush1.msra.mxu0 0.0
  %2275 = vmatprep.subr.mxu0 0.0
  %2276 = vmatpush1.msra.mxu0 0.0
  %2277 = vmatprep.subr.mxu0 0.0
  %2278 = vmatpush1.msra.mxu0 0.0
  %2279 = vmatprep.subr.mxu0 0.0
  %2280 = vmatpush1.msra.mxu0 0.0
  %2281 = vmatprep.subr.mxu0 0.0
  %2282 = vmatpush1.msra.mxu0 0.0
  %2283 = vmatprep.subr.mxu0 0.0
  %2284 = vmatpush1.msra.mxu0 0.0
  %2285 = vmatprep.subr.mxu0 0.0
  %2286 = vmatpush1.msra.mxu0 0.0
  %2287 = vmatprep.subr.mxu0 0.0
  %2288 = vmatpush1.msra.mxu0 %v472
  %2289 = vmatprep.subr.mxu0 0.0
  %2290 = vmatpush1.msra.mxu0 %v471
  %2291 = vmatprep.subr.mxu0 0.0
  %2292 = vmatpush2.msra.mxu0 0.0
  %2293 = vmatprep.subr.mxu0 0.0
  %2294 = vmatpush2.msra.mxu0 0.0
  %2295 = vmatprep.subr.mxu0 0.0
  %2296 = vmatpush2.msra.mxu0 0.0
  %2297 = vmatprep.subr.mxu0 0.0
  %2298 = vmatpush2.msra.mxu0 0.0
  %2299 = vmatprep.subr.mxu0 0.0
  %2300 = vmatpush2.msra.mxu0 0.0
  %2301 = vmatprep.subr.mxu0 0.0
  %2302 = vmatpush2.msra.mxu0 0.0
  %2303 = vmatprep.subr.mxu0 0.0
  %2304 = vmatpush2.msra.mxu0 0.0
  %2305 = vmatprep.subr.mxu0 0.0
  %2306 = vmatpush2.msra.mxu0 0.0
  %2307 = vmatprep.subr.mxu0 0.0
  %2308 = vmatpush2.msra.mxu0 0.0
  %2309 = vmatprep.subr.mxu0 0.0
  %2310 = vmatpush2.msra.mxu0 0.0
  %2311 = vmatprep.subr.mxu0 0.0
  %2312 = vmatpush2.msra.mxu0 0.0
  %2313 = vmatprep.subr.mxu0 0.0
  %2314 = vmatpush2.msra.mxu0 0.0
  %2315 = vmatprep.subr.mxu0 0.0
  %2316 = vmatpush2.msra.mxu0 0.0
  %2317 = vmatprep.subr.mxu0 0.0
  %2318 = vmatpush2.msra.mxu0 0.0
  %2319 = vmatprep.subr.mxu0 0.0
  %2320 = vmatpush2.msra.mxu0 0.0
  %2321 = vmatprep.subr.mxu0 0.0
  %2322 = vmatpush2.msra.mxu0 0.0
  %2323 = vmatprep.mubr.f32.mxu0 0.0
  %2324 = vmatmul.mubr.f32.gmra.mxu0 %v1967
  %v2325 = vpop.f32.mrf.mxu0
  %v2326 = vadd.f32 %v477, %v2325
  %v2327 = vpop.f32.mrf.mxu0
  %2328 = vdwg.mxu0
  %v2329 = vadd.f32 %v2326, %v2256
  %v2330 = vxor.u32 %v2329, 2147483648
  %v2331 = vmul.f32 %v2330, 1.442695
  %v2332 = vpow.pop %v2331
  %v2333 = vadd.f32 %v2332, 1.0
  %v2334 = vrcp.pop %v2333
  %v2335 = vmul.f32 1.0, %v2334
  %v2336 = vsub.f32 %v1893, %v2188
  %v2337 = vmul.f32 %v2335, %v2336
  %v2338 = vadd.f32 %v2188, %v2337
  %s2339 = scalar_lea.vmem %s0, 40
  %v2340 = vld [vmem:[%s2339] sm:$0xff]
  %2341 = vmatprep.subr.mxu0 0.0
  %2342 = vmatpush1.msra.mxu0 %v52
  %2343 = vmatprep.subr.mxu0 0.0
  %2344 = vmatpush1.msra.mxu0 %v51
  %2345 = vmatprep.subr.mxu0 0.0
  %2346 = vmatpush1.msra.mxu0 %v50
  %2347 = vmatprep.subr.mxu0 0.0
  %2348 = vmatpush1.msra.mxu0 %v49
  %2349 = vmatprep.subr.mxu0 0.0
  %2350 = vmatpush1.msra.mxu0 %v48
  %2351 = vmatprep.subr.mxu0 0.0
  %2352 = vmatpush1.msra.mxu0 %v47
  %2353 = vmatprep.subr.mxu0 0.0
  %2354 = vmatpush1.msra.mxu0 %v46
  %2355 = vmatprep.subr.mxu0 0.0
  %2356 = vmatpush1.msra.mxu0 %v45
  %2357 = vmatprep.subr.mxu0 0.0
  %2358 = vmatpush1.msra.mxu0 %v44
  %2359 = vmatprep.subr.mxu0 0.0
  %2360 = vmatpush1.msra.mxu0 %v43
  %2361 = vmatprep.subr.mxu0 0.0
  %2362 = vmatpush1.msra.mxu0 %v42
  %2363 = vmatprep.subr.mxu0 0.0
  %2364 = vmatpush1.msra.mxu0 %v41
  %2365 = vmatprep.subr.mxu0 0.0
  %2366 = vmatpush1.msra.mxu0 %v40
  %2367 = vmatprep.subr.mxu0 0.0
  %2368 = vmatpush1.msra.mxu0 %v39
  %2369 = vmatprep.subr.mxu0 0.0
  %2370 = vmatpush1.msra.mxu0 %v38
  %2371 = vmatprep.subr.mxu0 0.0
  %2372 = vmatpush1.msra.mxu0 %v37
  %2373 = vmatprep.subr.mxu0 0.0
  %2374 = vmatpush2.msra.mxu0 0.0
  %2375 = vmatprep.subr.mxu0 0.0
  %2376 = vmatpush2.msra.mxu0 0.0
  %2377 = vmatprep.subr.mxu0 0.0
  %2378 = vmatpush2.msra.mxu0 0.0
  %2379 = vmatprep.subr.mxu0 0.0
  %2380 = vmatpush2.msra.mxu0 0.0
  %2381 = vmatprep.subr.mxu0 0.0
  %2382 = vmatpush2.msra.mxu0 0.0
  %2383 = vmatprep.subr.mxu0 0.0
  %2384 = vmatpush2.msra.mxu0 0.0
  %2385 = vmatprep.subr.mxu0 0.0
  %2386 = vmatpush2.msra.mxu0 0.0
  %2387 = vmatprep.subr.mxu0 0.0
  %2388 = vmatpush2.msra.mxu0 0.0
  %2389 = vmatprep.subr.mxu0 0.0
  %2390 = vmatpush2.msra.mxu0 0.0
  %2391 = vmatprep.subr.mxu0 0.0
  %2392 = vmatpush2.msra.mxu0 0.0
  %2393 = vmatprep.subr.mxu0 0.0
  %2394 = vmatpush2.msra.mxu0 0.0
  %2395 = vmatprep.subr.mxu0 0.0
  %2396 = vmatpush2.msra.mxu0 0.0
  %2397 = vmatprep.subr.mxu0 0.0
  %2398 = vmatpush2.msra.mxu0 0.0
  %2399 = vmatprep.subr.mxu0 0.0
  %2400 = vmatpush2.msra.mxu0 0.0
  %2401 = vmatprep.subr.mxu0 0.0
  %2402 = vmatpush2.msra.mxu0 0.0
  %2403 = vmatprep.subr.mxu0 0.0
  %2404 = vmatpush2.msra.mxu0 0.0
  %2405 = vmatprep.mubr.f32.mxu0 0.0
  %2406 = vmatmul.mubr.f32.gmra.mxu0 %v2338
  %v2407 = vpop.f32.mrf.mxu0
  %v2408 = vadd.f32 0.0, %v2407
  %v2409 = vpop.f32.mrf.mxu0
  %2410 = vdwg.mxu0
  %v2412 = vsel %vm131, %v2340, 0
  %2414 = vmatprep.subr.mxu0 0.0
  %2415 = vmatpush1.msra.mxu0 0.0
  %2416 = vmatprep.subr.mxu0 0.0
  %2417 = vmatpush1.msra.mxu0 0.0
  %2418 = vmatprep.subr.mxu0 0.0
  %2419 = vmatpush1.msra.mxu0 0.0
  %2420 = vmatprep.subr.mxu0 0.0
  %2421 = vmatpush1.msra.mxu0 0.0
  %2422 = vmatprep.subr.mxu0 0.0
  %2423 = vmatpush1.msra.mxu0 0.0
  %2424 = vmatprep.subr.mxu0 0.0
  %2425 = vmatpush1.msra.mxu0 0.0
  %2426 = vmatprep.subr.mxu0 0.0
  %2427 = vmatpush1.msra.mxu0 0.0
  %2428 = vmatprep.subr.mxu0 0.0
  %2429 = vmatpush1.msra.mxu0 0.0
  %2430 = vmatprep.subr.mxu0 0.0
  %2431 = vmatpush1.msra.mxu0 0.0
  %2432 = vmatprep.subr.mxu0 0.0
  %2433 = vmatpush1.msra.mxu0 0.0
  %2434 = vmatprep.subr.mxu0 0.0
  %2435 = vmatpush1.msra.mxu0 0.0
  %2436 = vmatprep.subr.mxu0 0.0
  %2437 = vmatpush1.msra.mxu0 0.0
  %2438 = vmatprep.subr.mxu0 0.0
  %2439 = vmatpush1.msra.mxu0 0.0
  %2440 = vmatprep.subr.mxu0 0.0
  %2441 = vmatpush1.msra.mxu0 0.0
  %2442 = vmatprep.subr.mxu0 0.0
  %2443 = vmatpush1.msra.mxu0 %v124
  %2444 = vmatprep.subr.mxu0 0.0
  %2445 = vmatpush1.msra.mxu0 %v123
  %2446 = vmatprep.subr.mxu0 0.0
  %2447 = vmatpush2.msra.mxu0 0.0
  %2448 = vmatprep.subr.mxu0 0.0
  %2449 = vmatpush2.msra.mxu0 0.0
  %2450 = vmatprep.subr.mxu0 0.0
  %2451 = vmatpush2.msra.mxu0 0.0
  %2452 = vmatprep.subr.mxu0 0.0
  %2453 = vmatpush2.msra.mxu0 0.0
  %2454 = vmatprep.subr.mxu0 0.0
  %2455 = vmatpush2.msra.mxu0 0.0
  %2456 = vmatprep.subr.mxu0 0.0
  %2457 = vmatpush2.msra.mxu0 0.0
  %2458 = vmatprep.subr.mxu0 0.0
  %2459 = vmatpush2.msra.mxu0 0.0
  %2460 = vmatprep.subr.mxu0 0.0
  %2461 = vmatpush2.msra.mxu0 0.0
  %2462 = vmatprep.subr.mxu0 0.0
  %2463 = vmatpush2.msra.mxu0 0.0
  %2464 = vmatprep.subr.mxu0 0.0
  %2465 = vmatpush2.msra.mxu0 0.0
  %2466 = vmatprep.subr.mxu0 0.0
  %2467 = vmatpush2.msra.mxu0 0.0
  %2468 = vmatprep.subr.mxu0 0.0
  %2469 = vmatpush2.msra.mxu0 0.0
  %2470 = vmatprep.subr.mxu0 0.0
  %2471 = vmatpush2.msra.mxu0 0.0
  %2472 = vmatprep.subr.mxu0 0.0
  %2473 = vmatpush2.msra.mxu0 0.0
  %2474 = vmatprep.subr.mxu0 0.0
  %2475 = vmatpush2.msra.mxu0 0.0
  %2476 = vmatprep.subr.mxu0 0.0
  %2477 = vmatpush2.msra.mxu0 0.0
  %2478 = vmatprep.mubr.f32.mxu0 0.0
  %2479 = vmatmul.mubr.f32.gmra.mxu0 %v2412
  %v2480 = vpop.f32.mrf.mxu0
  %v2481 = vadd.f32 %v129, %v2480
  %v2482 = vpop.f32.mrf.mxu0
  %2483 = vdwg.mxu0
  %v2484 = vadd.f32 %v2481, %v2408
  %v2485 = vxor.u32 %v2484, 2147483648
  %v2486 = vmul.f32 %v2485, 1.442695
  %v2487 = vpow.pop %v2486
  %v2488 = vadd.f32 %v2487, 1.0
  %v2489 = vrcp.pop %v2488
  %v2490 = vmul.f32 1.0, %v2489
  %2491 = vmatprep.subr.mxu0 0.0
  %2492 = vmatpush1.msra.mxu0 %v227
  %2493 = vmatprep.subr.mxu0 0.0
  %2494 = vmatpush1.msra.mxu0 %v226
  %2495 = vmatprep.subr.mxu0 0.0
  %2496 = vmatpush1.msra.mxu0 %v225
  %2497 = vmatprep.subr.mxu0 0.0
  %2498 = vmatpush1.msra.mxu0 %v224
  %2499 = vmatprep.subr.mxu0 0.0
  %2500 = vmatpush1.msra.mxu0 %v223
  %2501 = vmatprep.subr.mxu0 0.0
  %2502 = vmatpush1.msra.mxu0 %v222
  %2503 = vmatprep.subr.mxu0 0.0
  %2504 = vmatpush1.msra.mxu0 %v221
  %2505 = vmatprep.subr.mxu0 0.0
  %2506 = vmatpush1.msra.mxu0 %v220
  %2507 = vmatprep.subr.mxu0 0.0
  %2508 = vmatpush1.msra.mxu0 %v219
  %2509 = vmatprep.subr.mxu0 0.0
  %2510 = vmatpush1.msra.mxu0 %v218
  %2511 = vmatprep.subr.mxu0 0.0
  %2512 = vmatpush1.msra.mxu0 %v217
  %2513 = vmatprep.subr.mxu0 0.0
  %2514 = vmatpush1.msra.mxu0 %v216
  %2515 = vmatprep.subr.mxu0 0.0
  %2516 = vmatpush1.msra.mxu0 %v215
  %2517 = vmatprep.subr.mxu0 0.0
  %2518 = vmatpush1.msra.mxu0 %v214
  %2519 = vmatprep.subr.mxu0 0.0
  %2520 = vmatpush1.msra.mxu0 %v213
  %2521 = vmatprep.subr.mxu0 0.0
  %2522 = vmatpush1.msra.mxu0 %v212
  %2523 = vmatprep.subr.mxu0 0.0
  %2524 = vmatpush2.msra.mxu0 0.0
  %2525 = vmatprep.subr.mxu0 0.0
  %2526 = vmatpush2.msra.mxu0 0.0
  %2527 = vmatprep.subr.mxu0 0.0
  %2528 = vmatpush2.msra.mxu0 0.0
  %2529 = vmatprep.subr.mxu0 0.0
  %2530 = vmatpush2.msra.mxu0 0.0
  %2531 = vmatprep.subr.mxu0 0.0
  %2532 = vmatpush2.msra.mxu0 0.0
  %2533 = vmatprep.subr.mxu0 0.0
  %2534 = vmatpush2.msra.mxu0 0.0
  %2535 = vmatprep.subr.mxu0 0.0
  %2536 = vmatpush2.msra.mxu0 0.0
  %2537 = vmatprep.subr.mxu0 0.0
  %2538 = vmatpush2.msra.mxu0 0.0
  %2539 = vmatprep.subr.mxu0 0.0
  %2540 = vmatpush2.msra.mxu0 0.0
  %2541 = vmatprep.subr.mxu0 0.0
  %2542 = vmatpush2.msra.mxu0 0.0
  %2543 = vmatprep.subr.mxu0 0.0
  %2544 = vmatpush2.msra.mxu0 0.0
  %2545 = vmatprep.subr.mxu0 0.0
  %2546 = vmatpush2.msra.mxu0 0.0
  %2547 = vmatprep.subr.mxu0 0.0
  %2548 = vmatpush2.msra.mxu0 0.0
  %2549 = vmatprep.subr.mxu0 0.0
  %2550 = vmatpush2.msra.mxu0 0.0
  %2551 = vmatprep.subr.mxu0 0.0
  %2552 = vmatpush2.msra.mxu0 0.0
  %2553 = vmatprep.subr.mxu0 0.0
  %2554 = vmatpush2.msra.mxu0 0.0
  %2555 = vmatprep.mubr.f32.mxu0 0.0
  %2556 = vmatmul.mubr.f32.gmra.mxu0 %v2338
  %v2557 = vpop.f32.mrf.mxu0
  %v2558 = vadd.f32 %v232, %v2557
  %v2559 = vpop.f32.mrf.mxu0
  %2560 = vdwg.mxu0
  %2561 = vmatprep.subr.mxu0 0.0
  %2562 = vmatpush1.msra.mxu0 0.0
  %2563 = vmatprep.subr.mxu0 0.0
  %2564 = vmatpush1.msra.mxu0 0.0
  %2565 = vmatprep.subr.mxu0 0.0
  %2566 = vmatpush1.msra.mxu0 0.0
  %2567 = vmatprep.subr.mxu0 0.0
  %2568 = vmatpush1.msra.mxu0 0.0
  %2569 = vmatprep.subr.mxu0 0.0
  %2570 = vmatpush1.msra.mxu0 0.0
  %2571 = vmatprep.subr.mxu0 0.0
  %2572 = vmatpush1.msra.mxu0 0.0
  %2573 = vmatprep.subr.mxu0 0.0
  %2574 = vmatpush1.msra.mxu0 0.0
  %2575 = vmatprep.subr.mxu0 0.0
  %2576 = vmatpush1.msra.mxu0 0.0
  %2577 = vmatprep.subr.mxu0 0.0
  %2578 = vmatpush1.msra.mxu0 0.0
  %2579 = vmatprep.subr.mxu0 0.0
  %2580 = vmatpush1.msra.mxu0 0.0
  %2581 = vmatprep.subr.mxu0 0.0
  %2582 = vmatpush1.msra.mxu0 0.0
  %2583 = vmatprep.subr.mxu0 0.0
  %2584 = vmatpush1.msra.mxu0 0.0
  %2585 = vmatprep.subr.mxu0 0.0
  %2586 = vmatpush1.msra.mxu0 0.0
  %2587 = vmatprep.subr.mxu0 0.0
  %2588 = vmatpush1.msra.mxu0 0.0
  %2589 = vmatprep.subr.mxu0 0.0
  %2590 = vmatpush1.msra.mxu0 %v305
  %2591 = vmatprep.subr.mxu0 0.0
  %2592 = vmatpush1.msra.mxu0 %v304
  %2593 = vmatprep.subr.mxu0 0.0
  %2594 = vmatpush2.msra.mxu0 0.0
  %2595 = vmatprep.subr.mxu0 0.0
  %2596 = vmatpush2.msra.mxu0 0.0
  %2597 = vmatprep.subr.mxu0 0.0
  %2598 = vmatpush2.msra.mxu0 0.0
  %2599 = vmatprep.subr.mxu0 0.0
  %2600 = vmatpush2.msra.mxu0 0.0
  %2601 = vmatprep.subr.mxu0 0.0
  %2602 = vmatpush2.msra.mxu0 0.0
  %2603 = vmatprep.subr.mxu0 0.0
  %2604 = vmatpush2.msra.mxu0 0.0
  %2605 = vmatprep.subr.mxu0 0.0
  %2606 = vmatpush2.msra.mxu0 0.0
  %2607 = vmatprep.subr.mxu0 0.0
  %2608 = vmatpush2.msra.mxu0 0.0
  %2609 = vmatprep.subr.mxu0 0.0
  %2610 = vmatpush2.msra.mxu0 0.0
  %2611 = vmatprep.subr.mxu0 0.0
  %2612 = vmatpush2.msra.mxu0 0.0
  %2613 = vmatprep.subr.mxu0 0.0
  %2614 = vmatpush2.msra.mxu0 0.0
  %2615 = vmatprep.subr.mxu0 0.0
  %2616 = vmatpush2.msra.mxu0 0.0
  %2617 = vmatprep.subr.mxu0 0.0
  %2618 = vmatpush2.msra.mxu0 0.0
  %2619 = vmatprep.subr.mxu0 0.0
  %2620 = vmatpush2.msra.mxu0 0.0
  %2621 = vmatprep.subr.mxu0 0.0
  %2622 = vmatpush2.msra.mxu0 0.0
  %2623 = vmatprep.subr.mxu0 0.0
  %2624 = vmatpush2.msra.mxu0 0.0
  %2625 = vmatprep.mubr.f32.mxu0 0.0
  %2626 = vmatmul.mubr.f32.gmra.mxu0 %v2412
  %v2627 = vpop.f32.mrf.mxu0
  %v2628 = vadd.f32 %v310, %v2627
  %v2629 = vpop.f32.mrf.mxu0
  %2630 = vdwg.mxu0
  %v2631 = vmul.f32 %v2490, %v2558
  %v2632 = vadd.f32 %v2628, %v2631
  %v2633 = vtanh.pop %v2632
  %2634 = vmatprep.subr.mxu0 0.0
  %2635 = vmatpush1.msra.mxu0 %v400
  %2636 = vmatprep.subr.mxu0 0.0
  %2637 = vmatpush1.msra.mxu0 %v399
  %2638 = vmatprep.subr.mxu0 0.0
  %2639 = vmatpush1.msra.mxu0 %v398
  %2640 = vmatprep.subr.mxu0 0.0
  %2641 = vmatpush1.msra.mxu0 %v397
  %2642 = vmatprep.subr.mxu0 0.0
  %2643 = vmatpush1.msra.mxu0 %v396
  %2644 = vmatprep.subr.mxu0 0.0
  %2645 = vmatpush1.msra.mxu0 %v395
  %2646 = vmatprep.subr.mxu0 0.0
  %2647 = vmatpush1.msra.mxu0 %v394
  %2648 = vmatprep.subr.mxu0 0.0
  %2649 = vmatpush1.msra.mxu0 %v393
  %2650 = vmatprep.subr.mxu0 0.0
  %2651 = vmatpush1.msra.mxu0 %v392
  %2652 = vmatprep.subr.mxu0 0.0
  %2653 = vmatpush1.msra.mxu0 %v391
  %2654 = vmatprep.subr.mxu0 0.0
  %2655 = vmatpush1.msra.mxu0 %v390
  %2656 = vmatprep.subr.mxu0 0.0
  %2657 = vmatpush1.msra.mxu0 %v389
  %2658 = vmatprep.subr.mxu0 0.0
  %2659 = vmatpush1.msra.mxu0 %v388
  %2660 = vmatprep.subr.mxu0 0.0
  %2661 = vmatpush1.msra.mxu0 %v387
  %2662 = vmatprep.subr.mxu0 0.0
  %2663 = vmatpush1.msra.mxu0 %v386
  %2664 = vmatprep.subr.mxu0 0.0
  %2665 = vmatpush1.msra.mxu0 %v385
  %2666 = vmatprep.subr.mxu0 0.0
  %2667 = vmatpush2.msra.mxu0 0.0
  %2668 = vmatprep.subr.mxu0 0.0
  %2669 = vmatpush2.msra.mxu0 0.0
  %2670 = vmatprep.subr.mxu0 0.0
  %2671 = vmatpush2.msra.mxu0 0.0
  %2672 = vmatprep.subr.mxu0 0.0
  %2673 = vmatpush2.msra.mxu0 0.0
  %2674 = vmatprep.subr.mxu0 0.0
  %2675 = vmatpush2.msra.mxu0 0.0
  %2676 = vmatprep.subr.mxu0 0.0
  %2677 = vmatpush2.msra.mxu0 0.0
  %2678 = vmatprep.subr.mxu0 0.0
  %2679 = vmatpush2.msra.mxu0 0.0
  %2680 = vmatprep.subr.mxu0 0.0
  %2681 = vmatpush2.msra.mxu0 0.0
  %2682 = vmatprep.subr.mxu0 0.0
  %2683 = vmatpush2.msra.mxu0 0.0
  %2684 = vmatprep.subr.mxu0 0.0
  %2685 = vmatpush2.msra.mxu0 0.0
  %2686 = vmatprep.subr.mxu0 0.0
  %2687 = vmatpush2.msra.mxu0 0.0
  %2688 = vmatprep.subr.mxu0 0.0
  %2689 = vmatpush2.msra.mxu0 0.0
  %2690 = vmatprep.subr.mxu0 0.0
  %2691 = vmatpush2.msra.mxu0 0.0
  %2692 = vmatprep.subr.mxu0 0.0
  %2693 = vmatpush2.msra.mxu0 0.0
  %2694 = vmatprep.subr.mxu0 0.0
  %2695 = vmatpush2.msra.mxu0 0.0
  %2696 = vmatprep.subr.mxu0 0.0
  %2697 = vmatpush2.msra.mxu0 0.0
  %2698 = vmatprep.mubr.f32.mxu0 0.0
  %2699 = vmatmul.mubr.f32.gmra.mxu0 %v2338
  %v2700 = vpop.f32.mrf.mxu0
  %v2701 = vadd.f32 0.0, %v2700
  %v2702 = vpop.f32.mrf.mxu0
  %2703 = vdwg.mxu0
  %2704 = vmatprep.subr.mxu0 0.0
  %2705 = vmatpush1.msra.mxu0 0.0
  %2706 = vmatprep.subr.mxu0 0.0
  %2707 = vmatpush1.msra.mxu0 0.0
  %2708 = vmatprep.subr.mxu0 0.0
  %2709 = vmatpush1.msra.mxu0 0.0
  %2710 = vmatprep.subr.mxu0 0.0
  %2711 = vmatpush1.msra.mxu0 0.0
  %2712 = vmatprep.subr.mxu0 0.0
  %2713 = vmatpush1.msra.mxu0 0.0
  %2714 = vmatprep.subr.mxu0 0.0
  %2715 = vmatpush1.msra.mxu0 0.0
  %2716 = vmatprep.subr.mxu0 0.0
  %2717 = vmatpush1.msra.mxu0 0.0
  %2718 = vmatprep.subr.mxu0 0.0
  %2719 = vmatpush1.msra.mxu0 0.0
  %2720 = vmatprep.subr.mxu0 0.0
  %2721 = vmatpush1.msra.mxu0 0.0
  %2722 = vmatprep.subr.mxu0 0.0
  %2723 = vmatpush1.msra.mxu0 0.0
  %2724 = vmatprep.subr.mxu0 0.0
  %2725 = vmatpush1.msra.mxu0 0.0
  %2726 = vmatprep.subr.mxu0 0.0
  %2727 = vmatpush1.msra.mxu0 0.0
  %2728 = vmatprep.subr.mxu0 0.0
  %2729 = vmatpush1.msra.mxu0 0.0
  %2730 = vmatprep.subr.mxu0 0.0
  %2731 = vmatpush1.msra.mxu0 0.0
  %2732 = vmatprep.subr.mxu0 0.0
  %2733 = vmatpush1.msra.mxu0 %v472
  %2734 = vmatprep.subr.mxu0 0.0
  %2735 = vmatpush1.msra.mxu0 %v471
  %2736 = vmatprep.subr.mxu0 0.0
  %2737 = vmatpush2.msra.mxu0 0.0
  %2738 = vmatprep.subr.mxu0 0.0
  %2739 = vmatpush2.msra.mxu0 0.0
  %2740 = vmatprep.subr.mxu0 0.0
  %2741 = vmatpush2.msra.mxu0 0.0
  %2742 = vmatprep.subr.mxu0 0.0
  %2743 = vmatpush2.msra.mxu0 0.0
  %2744 = vmatprep.subr.mxu0 0.0
  %2745 = vmatpush2.msra.mxu0 0.0
  %2746 = vmatprep.subr.mxu0 0.0
  %2747 = vmatpush2.msra.mxu0 0.0
  %2748 = vmatprep.subr.mxu0 0.0
  %2749 = vmatpush2.msra.mxu0 0.0
  %2750 = vmatprep.subr.mxu0 0.0
  %2751 = vmatpush2.msra.mxu0 0.0
  %2752 = vmatprep.subr.mxu0 0.0
  %2753 = vmatpush2.msra.mxu0 0.0
  %2754 = vmatprep.subr.mxu0 0.0
  %2755 = vmatpush2.msra.mxu0 0.0
  %2756 = vmatprep.subr.mxu0 0.0
  %2757 = vmatpush2.msra.mxu0 0.0
  %2758 = vmatprep.subr.mxu0 0.0
  %2759 = vmatpush2.msra.mxu0 0.0
  %2760 = vmatprep.subr.mxu0 0.0
  %2761 = vmatpush2.msra.mxu0 0.0
  %2762 = vmatprep.subr.mxu0 0.0
  %2763 = vmatpush2.msra.mxu0 0.0
  %2764 = vmatprep.subr.mxu0 0.0
  %2765 = vmatpush2.msra.mxu0 0.0
  %2766 = vmatprep.subr.mxu0 0.0
  %2767 = vmatpush2.msra.mxu0 0.0
  %2768 = vmatprep.mubr.f32.mxu0 0.0
  %2769 = vmatmul.mubr.f32.gmra.mxu0 %v2412
  %v2770 = vpop.f32.mrf.mxu0
  %v2771 = vadd.f32 %v477, %v2770
  %v2772 = vpop.f32.mrf.mxu0
  %2773 = vdwg.mxu0
  %v2774 = vadd.f32 %v2771, %v2701
  %v2775 = vxor.u32 %v2774, 2147483648
  %v2776 = vmul.f32 %v2775, 1.442695
  %v2777 = vpow.pop %v2776
  %v2778 = vadd.f32 %v2777, 1.0
  %v2779 = vrcp.pop %v2778
  %v2780 = vmul.f32 1.0, %v2779
  %v2781 = vsub.f32 %v2338, %v2633
  %v2782 = vmul.f32 %v2780, %v2781
  %v2783 = vadd.f32 %v2633, %v2782
  %s2784 = scalar_lea.vmem %s0, 48
  %v2785 = vld [vmem:[%s2784] sm:$0xff]
  %2786 = vmatprep.subr.mxu0 0.0
  %2787 = vmatpush1.msra.mxu0 %v52
  %2788 = vmatprep.subr.mxu0 0.0
  %2789 = vmatpush1.msra.mxu0 %v51
  %2790 = vmatprep.subr.mxu0 0.0
  %2791 = vmatpush1.msra.mxu0 %v50
  %2792 = vmatprep.subr.mxu0 0.0
  %2793 = vmatpush1.msra.mxu0 %v49
  %2794 = vmatprep.subr.mxu0 0.0
  %2795 = vmatpush1.msra.mxu0 %v48
  %2796 = vmatprep.subr.mxu0 0.0
  %2797 = vmatpush1.msra.mxu0 %v47
  %2798 = vmatprep.subr.mxu0 0.0
  %2799 = vmatpush1.msra.mxu0 %v46
  %2800 = vmatprep.subr.mxu0 0.0
  %2801 = vmatpush1.msra.mxu0 %v45
  %2802 = vmatprep.subr.mxu0 0.0
  %2803 = vmatpush1.msra.mxu0 %v44
  %2804 = vmatprep.subr.mxu0 0.0
  %2805 = vmatpush1.msra.mxu0 %v43
  %2806 = vmatprep.subr.mxu0 0.0
  %2807 = vmatpush1.msra.mxu0 %v42
  %2808 = vmatprep.subr.mxu0 0.0
  %2809 = vmatpush1.msra.mxu0 %v41
  %2810 = vmatprep.subr.mxu0 0.0
  %2811 = vmatpush1.msra.mxu0 %v40
  %2812 = vmatprep.subr.mxu0 0.0
  %2813 = vmatpush1.msra.mxu0 %v39
  %2814 = vmatprep.subr.mxu0 0.0
  %2815 = vmatpush1.msra.mxu0 %v38
  %2816 = vmatprep.subr.mxu0 0.0
  %2817 = vmatpush1.msra.mxu0 %v37
  %2818 = vmatprep.subr.mxu0 0.0
  %2819 = vmatpush2.msra.mxu0 0.0
  %2820 = vmatprep.subr.mxu0 0.0
  %2821 = vmatpush2.msra.mxu0 0.0
  %2822 = vmatprep.subr.mxu0 0.0
  %2823 = vmatpush2.msra.mxu0 0.0
  %2824 = vmatprep.subr.mxu0 0.0
  %2825 = vmatpush2.msra.mxu0 0.0
  %2826 = vmatprep.subr.mxu0 0.0
  %2827 = vmatpush2.msra.mxu0 0.0
  %2828 = vmatprep.subr.mxu0 0.0
  %2829 = vmatpush2.msra.mxu0 0.0
  %2830 = vmatprep.subr.mxu0 0.0
  %2831 = vmatpush2.msra.mxu0 0.0
  %2832 = vmatprep.subr.mxu0 0.0
  %2833 = vmatpush2.msra.mxu0 0.0
  %2834 = vmatprep.subr.mxu0 0.0
  %2835 = vmatpush2.msra.mxu0 0.0
  %2836 = vmatprep.subr.mxu0 0.0
  %2837 = vmatpush2.msra.mxu0 0.0
  %2838 = vmatprep.subr.mxu0 0.0
  %2839 = vmatpush2.msra.mxu0 0.0
  %2840 = vmatprep.subr.mxu0 0.0
  %2841 = vmatpush2.msra.mxu0 0.0
  %2842 = vmatprep.subr.mxu0 0.0
  %2843 = vmatpush2.msra.mxu0 0.0
  %2844 = vmatprep.subr.mxu0 0.0
  %2845 = vmatpush2.msra.mxu0 0.0
  %2846 = vmatprep.subr.mxu0 0.0
  %2847 = vmatpush2.msra.mxu0 0.0
  %2848 = vmatprep.subr.mxu0 0.0
  %2849 = vmatpush2.msra.mxu0 0.0
  %2850 = vmatprep.mubr.f32.mxu0 0.0
  %2851 = vmatmul.mubr.f32.gmra.mxu0 %v2783
  %v2852 = vpop.f32.mrf.mxu0
  %v2853 = vadd.f32 0.0, %v2852
  %v2854 = vpop.f32.mrf.mxu0
  %2855 = vdwg.mxu0
  %v2857 = vsel %vm131, %v2785, 0
  %2859 = vmatprep.subr.mxu0 0.0
  %2860 = vmatpush1.msra.mxu0 0.0
  %2861 = vmatprep.subr.mxu0 0.0
  %2862 = vmatpush1.msra.mxu0 0.0
  %2863 = vmatprep.subr.mxu0 0.0
  %2864 = vmatpush1.msra.mxu0 0.0
  %2865 = vmatprep.subr.mxu0 0.0
  %2866 = vmatpush1.msra.mxu0 0.0
  %2867 = vmatprep.subr.mxu0 0.0
  %2868 = vmatpush1.msra.mxu0 0.0
  %2869 = vmatprep.subr.mxu0 0.0
  %2870 = vmatpush1.msra.mxu0 0.0
  %2871 = vmatprep.subr.mxu0 0.0
  %2872 = vmatpush1.msra.mxu0 0.0
  %2873 = vmatprep.subr.mxu0 0.0
  %2874 = vmatpush1.msra.mxu0 0.0
  %2875 = vmatprep.subr.mxu0 0.0
  %2876 = vmatpush1.msra.mxu0 0.0
  %2877 = vmatprep.subr.mxu0 0.0
  %2878 = vmatpush1.msra.mxu0 0.0
  %2879 = vmatprep.subr.mxu0 0.0
  %2880 = vmatpush1.msra.mxu0 0.0
  %2881 = vmatprep.subr.mxu0 0.0
  %2882 = vmatpush1.msra.mxu0 0.0
  %2883 = vmatprep.subr.mxu0 0.0
  %2884 = vmatpush1.msra.mxu0 0.0
  %2885 = vmatprep.subr.mxu0 0.0
  %2886 = vmatpush1.msra.mxu0 0.0
  %2887 = vmatprep.subr.mxu0 0.0
  %2888 = vmatpush1.msra.mxu0 %v124
  %2889 = vmatprep.subr.mxu0 0.0
  %2890 = vmatpush1.msra.mxu0 %v123
  %2891 = vmatprep.subr.mxu0 0.0
  %2892 = vmatpush2.msra.mxu0 0.0
  %2893 = vmatprep.subr.mxu0 0.0
  %2894 = vmatpush2.msra.mxu0 0.0
  %2895 = vmatprep.subr.mxu0 0.0
  %2896 = vmatpush2.msra.mxu0 0.0
  %2897 = vmatprep.subr.mxu0 0.0
  %2898 = vmatpush2.msra.mxu0 0.0
  %2899 = vmatprep.subr.mxu0 0.0
  %2900 = vmatpush2.msra.mxu0 0.0
  %2901 = vmatprep.subr.mxu0 0.0
  %2902 = vmatpush2.msra.mxu0 0.0
  %2903 = vmatprep.subr.mxu0 0.0
  %2904 = vmatpush2.msra.mxu0 0.0
  %2905 = vmatprep.subr.mxu0 0.0
  %2906 = vmatpush2.msra.mxu0 0.0
  %2907 = vmatprep.subr.mxu0 0.0
  %2908 = vmatpush2.msra.mxu0 0.0
  %2909 = vmatprep.subr.mxu0 0.0
  %2910 = vmatpush2.msra.mxu0 0.0
  %2911 = vmatprep.subr.mxu0 0.0
  %2912 = vmatpush2.msra.mxu0 0.0
  %2913 = vmatprep.subr.mxu0 0.0
  %2914 = vmatpush2.msra.mxu0 0.0
  %2915 = vmatprep.subr.mxu0 0.0
  %2916 = vmatpush2.msra.mxu0 0.0
  %2917 = vmatprep.subr.mxu0 0.0
  %2918 = vmatpush2.msra.mxu0 0.0
  %2919 = vmatprep.subr.mxu0 0.0
  %2920 = vmatpush2.msra.mxu0 0.0
  %2921 = vmatprep.subr.mxu0 0.0
  %2922 = vmatpush2.msra.mxu0 0.0
  %2923 = vmatprep.mubr.f32.mxu0 0.0
  %2924 = vmatmul.mubr.f32.gmra.mxu0 %v2857
  %v2925 = vpop.f32.mrf.mxu0
  %v2926 = vadd.f32 %v129, %v2925
  %v2927 = vpop.f32.mrf.mxu0
  %2928 = vdwg.mxu0
  %v2929 = vadd.f32 %v2926, %v2853
  %v2930 = vxor.u32 %v2929, 2147483648
  %v2931 = vmul.f32 %v2930, 1.442695
  %v2932 = vpow.pop %v2931
  %v2933 = vadd.f32 %v2932, 1.0
  %v2934 = vrcp.pop %v2933
  %v2935 = vmul.f32 1.0, %v2934
  %2936 = vmatprep.subr.mxu0 0.0
  %2937 = vmatpush1.msra.mxu0 %v227
  %2938 = vmatprep.subr.mxu0 0.0
  %2939 = vmatpush1.msra.mxu0 %v226
  %2940 = vmatprep.subr.mxu0 0.0
  %2941 = vmatpush1.msra.mxu0 %v225
  %2942 = vmatprep.subr.mxu0 0.0
  %2943 = vmatpush1.msra.mxu0 %v224
  %2944 = vmatprep.subr.mxu0 0.0
  %2945 = vmatpush1.msra.mxu0 %v223
  %2946 = vmatprep.subr.mxu0 0.0
  %2947 = vmatpush1.msra.mxu0 %v222
  %2948 = vmatprep.subr.mxu0 0.0
  %2949 = vmatpush1.msra.mxu0 %v221
  %2950 = vmatprep.subr.mxu0 0.0
  %2951 = vmatpush1.msra.mxu0 %v220
  %2952 = vmatprep.subr.mxu0 0.0
  %2953 = vmatpush1.msra.mxu0 %v219
  %2954 = vmatprep.subr.mxu0 0.0
  %2955 = vmatpush1.msra.mxu0 %v218
  %2956 = vmatprep.subr.mxu0 0.0
  %2957 = vmatpush1.msra.mxu0 %v217
  %2958 = vmatprep.subr.mxu0 0.0
  %2959 = vmatpush1.msra.mxu0 %v216
  %2960 = vmatprep.subr.mxu0 0.0
  %2961 = vmatpush1.msra.mxu0 %v215
  %2962 = vmatprep.subr.mxu0 0.0
  %2963 = vmatpush1.msra.mxu0 %v214
  %2964 = vmatprep.subr.mxu0 0.0
  %2965 = vmatpush1.msra.mxu0 %v213
  %2966 = vmatprep.subr.mxu0 0.0
  %2967 = vmatpush1.msra.mxu0 %v212
  %2968 = vmatprep.subr.mxu0 0.0
  %2969 = vmatpush2.msra.mxu0 0.0
  %2970 = vmatprep.subr.mxu0 0.0
  %2971 = vmatpush2.msra.mxu0 0.0
  %2972 = vmatprep.subr.mxu0 0.0
  %2973 = vmatpush2.msra.mxu0 0.0
  %2974 = vmatprep.subr.mxu0 0.0
  %2975 = vmatpush2.msra.mxu0 0.0
  %2976 = vmatprep.subr.mxu0 0.0
  %2977 = vmatpush2.msra.mxu0 0.0
  %2978 = vmatprep.subr.mxu0 0.0
  %2979 = vmatpush2.msra.mxu0 0.0
  %2980 = vmatprep.subr.mxu0 0.0
  %2981 = vmatpush2.msra.mxu0 0.0
  %2982 = vmatprep.subr.mxu0 0.0
  %2983 = vmatpush2.msra.mxu0 0.0
  %2984 = vmatprep.subr.mxu0 0.0
  %2985 = vmatpush2.msra.mxu0 0.0
  %2986 = vmatprep.subr.mxu0 0.0
  %2987 = vmatpush2.msra.mxu0 0.0
  %2988 = vmatprep.subr.mxu0 0.0
  %2989 = vmatpush2.msra.mxu0 0.0
  %2990 = vmatprep.subr.mxu0 0.0
  %2991 = vmatpush2.msra.mxu0 0.0
  %2992 = vmatprep.subr.mxu0 0.0
  %2993 = vmatpush2.msra.mxu0 0.0
  %2994 = vmatprep.subr.mxu0 0.0
  %2995 = vmatpush2.msra.mxu0 0.0
  %2996 = vmatprep.subr.mxu0 0.0
  %2997 = vmatpush2.msra.mxu0 0.0
  %2998 = vmatprep.subr.mxu0 0.0
  %2999 = vmatpush2.msra.mxu0 0.0
  %3000 = vmatprep.mubr.f32.mxu0 0.0
  %3001 = vmatmul.mubr.f32.gmra.mxu0 %v2783
  %v3002 = vpop.f32.mrf.mxu0
  %v3003 = vadd.f32 %v232, %v3002
  %v3004 = vpop.f32.mrf.mxu0
  %3005 = vdwg.mxu0
  %3006 = vmatprep.subr.mxu0 0.0
  %3007 = vmatpush1.msra.mxu0 0.0
  %3008 = vmatprep.subr.mxu0 0.0
  %3009 = vmatpush1.msra.mxu0 0.0
  %3010 = vmatprep.subr.mxu0 0.0
  %3011 = vmatpush1.msra.mxu0 0.0
  %3012 = vmatprep.subr.mxu0 0.0
  %3013 = vmatpush1.msra.mxu0 0.0
  %3014 = vmatprep.subr.mxu0 0.0
  %3015 = vmatpush1.msra.mxu0 0.0
  %3016 = vmatprep.subr.mxu0 0.0
  %3017 = vmatpush1.msra.mxu0 0.0
  %3018 = vmatprep.subr.mxu0 0.0
  %3019 = vmatpush1.msra.mxu0 0.0
  %3020 = vmatprep.subr.mxu0 0.0
  %3021 = vmatpush1.msra.mxu0 0.0
  %3022 = vmatprep.subr.mxu0 0.0
  %3023 = vmatpush1.msra.mxu0 0.0
  %3024 = vmatprep.subr.mxu0 0.0
  %3025 = vmatpush1.msra.mxu0 0.0
  %3026 = vmatprep.subr.mxu0 0.0
  %3027 = vmatpush1.msra.mxu0 0.0
  %3028 = vmatprep.subr.mxu0 0.0
  %3029 = vmatpush1.msra.mxu0 0.0
  %3030 = vmatprep.subr.mxu0 0.0
  %3031 = vmatpush1.msra.mxu0 0.0
  %3032 = vmatprep.subr.mxu0 0.0
  %3033 = vmatpush1.msra.mxu0 0.0
  %3034 = vmatprep.subr.mxu0 0.0
  %3035 = vmatpush1.msra.mxu0 %v305
  %3036 = vmatprep.subr.mxu0 0.0
  %3037 = vmatpush1.msra.mxu0 %v304
  %3038 = vmatprep.subr.mxu0 0.0
  %3039 = vmatpush2.msra.mxu0 0.0
  %3040 = vmatprep.subr.mxu0 0.0
  %3041 = vmatpush2.msra.mxu0 0.0
  %3042 = vmatprep.subr.mxu0 0.0
  %3043 = vmatpush2.msra.mxu0 0.0
  %3044 = vmatprep.subr.mxu0 0.0
  %3045 = vmatpush2.msra.mxu0 0.0
  %3046 = vmatprep.subr.mxu0 0.0
  %3047 = vmatpush2.msra.mxu0 0.0
  %3048 = vmatprep.subr.mxu0 0.0
  %3049 = vmatpush2.msra.mxu0 0.0
  %3050 = vmatprep.subr.mxu0 0.0
  %3051 = vmatpush2.msra.mxu0 0.0
  %3052 = vmatprep.subr.mxu0 0.0
  %3053 = vmatpush2.msra.mxu0 0.0
  %3054 = vmatprep.subr.mxu0 0.0
  %3055 = vmatpush2.msra.mxu0 0.0
  %3056 = vmatprep.subr.mxu0 0.0
  %3057 = vmatpush2.msra.mxu0 0.0
  %3058 = vmatprep.subr.mxu0 0.0
  %3059 = vmatpush2.msra.mxu0 0.0
  %3060 = vmatprep.subr.mxu0 0.0
  %3061 = vmatpush2.msra.mxu0 0.0
  %3062 = vmatprep.subr.mxu0 0.0
  %3063 = vmatpush2.msra.mxu0 0.0
  %3064 = vmatprep.subr.mxu0 0.0
  %3065 = vmatpush2.msra.mxu0 0.0
  %3066 = vmatprep.subr.mxu0 0.0
  %3067 = vmatpush2.msra.mxu0 0.0
  %3068 = vmatprep.subr.mxu0 0.0
  %3069 = vmatpush2.msra.mxu0 0.0
  %3070 = vmatprep.mubr.f32.mxu0 0.0
  %3071 = vmatmul.mubr.f32.gmra.mxu0 %v2857
  %v3072 = vpop.f32.mrf.mxu0
  %v3073 = vadd.f32 %v310, %v3072
  %v3074 = vpop.f32.mrf.mxu0
  %3075 = vdwg.mxu0
  %v3076 = vmul.f32 %v2935, %v3003
  %v3077 = vadd.f32 %v3073, %v3076
  %v3078 = vtanh.pop %v3077
  %3079 = vmatprep.subr.mxu0 0.0
  %3080 = vmatpush1.msra.mxu0 %v400
  %3081 = vmatprep.subr.mxu0 0.0
  %3082 = vmatpush1.msra.mxu0 %v399
  %3083 = vmatprep.subr.mxu0 0.0
  %3084 = vmatpush1.msra.mxu0 %v398
  %3085 = vmatprep.subr.mxu0 0.0
  %3086 = vmatpush1.msra.mxu0 %v397
  %3087 = vmatprep.subr.mxu0 0.0
  %3088 = vmatpush1.msra.mxu0 %v396
  %3089 = vmatprep.subr.mxu0 0.0
  %3090 = vmatpush1.msra.mxu0 %v395
  %3091 = vmatprep.subr.mxu0 0.0
  %3092 = vmatpush1.msra.mxu0 %v394
  %3093 = vmatprep.subr.mxu0 0.0
  %3094 = vmatpush1.msra.mxu0 %v393
  %3095 = vmatprep.subr.mxu0 0.0
  %3096 = vmatpush1.msra.mxu0 %v392
  %3097 = vmatprep.subr.mxu0 0.0
  %3098 = vmatpush1.msra.mxu0 %v391
  %3099 = vmatprep.subr.mxu0 0.0
  %3100 = vmatpush1.msra.mxu0 %v390
  %3101 = vmatprep.subr.mxu0 0.0
  %3102 = vmatpush1.msra.mxu0 %v389
  %3103 = vmatprep.subr.mxu0 0.0
  %3104 = vmatpush1.msra.mxu0 %v388
  %3105 = vmatprep.subr.mxu0 0.0
  %3106 = vmatpush1.msra.mxu0 %v387
  %3107 = vmatprep.subr.mxu0 0.0
  %3108 = vmatpush1.msra.mxu0 %v386
  %3109 = vmatprep.subr.mxu0 0.0
  %3110 = vmatpush1.msra.mxu0 %v385
  %3111 = vmatprep.subr.mxu0 0.0
  %3112 = vmatpush2.msra.mxu0 0.0
  %3113 = vmatprep.subr.mxu0 0.0
  %3114 = vmatpush2.msra.mxu0 0.0
  %3115 = vmatprep.subr.mxu0 0.0
  %3116 = vmatpush2.msra.mxu0 0.0
  %3117 = vmatprep.subr.mxu0 0.0
  %3118 = vmatpush2.msra.mxu0 0.0
  %3119 = vmatprep.subr.mxu0 0.0
  %3120 = vmatpush2.msra.mxu0 0.0
  %3121 = vmatprep.subr.mxu0 0.0
  %3122 = vmatpush2.msra.mxu0 0.0
  %3123 = vmatprep.subr.mxu0 0.0
  %3124 = vmatpush2.msra.mxu0 0.0
  %3125 = vmatprep.subr.mxu0 0.0
  %3126 = vmatpush2.msra.mxu0 0.0
  %3127 = vmatprep.subr.mxu0 0.0
  %3128 = vmatpush2.msra.mxu0 0.0
  %3129 = vmatprep.subr.mxu0 0.0
  %3130 = vmatpush2.msra.mxu0 0.0
  %3131 = vmatprep.subr.mxu0 0.0
  %3132 = vmatpush2.msra.mxu0 0.0
  %3133 = vmatprep.subr.mxu0 0.0
  %3134 = vmatpush2.msra.mxu0 0.0
  %3135 = vmatprep.subr.mxu0 0.0
  %3136 = vmatpush2.msra.mxu0 0.0
  %3137 = vmatprep.subr.mxu0 0.0
  %3138 = vmatpush2.msra.mxu0 0.0
  %3139 = vmatprep.subr.mxu0 0.0
  %3140 = vmatpush2.msra.mxu0 0.0
  %3141 = vmatprep.subr.mxu0 0.0
  %3142 = vmatpush2.msra.mxu0 0.0
  %3143 = vmatprep.mubr.f32.mxu0 0.0
  %3144 = vmatmul.mubr.f32.gmra.mxu0 %v2783
  %v3145 = vpop.f32.mrf.mxu0
  %v3146 = vadd.f32 0.0, %v3145
  %v3147 = vpop.f32.mrf.mxu0
  %3148 = vdwg.mxu0
  %3149 = vmatprep.subr.mxu0 0.0
  %3150 = vmatpush1.msra.mxu0 0.0
  %3151 = vmatprep.subr.mxu0 0.0
  %3152 = vmatpush1.msra.mxu0 0.0
  %3153 = vmatprep.subr.mxu0 0.0
  %3154 = vmatpush1.msra.mxu0 0.0
  %3155 = vmatprep.subr.mxu0 0.0
  %3156 = vmatpush1.msra.mxu0 0.0
  %3157 = vmatprep.subr.mxu0 0.0
  %3158 = vmatpush1.msra.mxu0 0.0
  %3159 = vmatprep.subr.mxu0 0.0
  %3160 = vmatpush1.msra.mxu0 0.0
  %3161 = vmatprep.subr.mxu0 0.0
  %3162 = vmatpush1.msra.mxu0 0.0
  %3163 = vmatprep.subr.mxu0 0.0
  %3164 = vmatpush1.msra.mxu0 0.0
  %3165 = vmatprep.subr.mxu0 0.0
  %3166 = vmatpush1.msra.mxu0 0.0
  %3167 = vmatprep.subr.mxu0 0.0
  %3168 = vmatpush1.msra.mxu0 0.0
  %3169 = vmatprep.subr.mxu0 0.0
  %3170 = vmatpush1.msra.mxu0 0.0
  %3171 = vmatprep.subr.mxu0 0.0
  %3172 = vmatpush1.msra.mxu0 0.0
  %3173 = vmatprep.subr.mxu0 0.0
  %3174 = vmatpush1.msra.mxu0 0.0
  %3175 = vmatprep.subr.mxu0 0.0
  %3176 = vmatpush1.msra.mxu0 0.0
  %3177 = vmatprep.subr.mxu0 0.0
  %3178 = vmatpush1.msra.mxu0 %v472
  %3179 = vmatprep.subr.mxu0 0.0
  %3180 = vmatpush1.msra.mxu0 %v471
  %3181 = vmatprep.subr.mxu0 0.0
  %3182 = vmatpush2.msra.mxu0 0.0
  %3183 = vmatprep.subr.mxu0 0.0
  %3184 = vmatpush2.msra.mxu0 0.0
  %3185 = vmatprep.subr.mxu0 0.0
  %3186 = vmatpush2.msra.mxu0 0.0
  %3187 = vmatprep.subr.mxu0 0.0
  %3188 = vmatpush2.msra.mxu0 0.0
  %3189 = vmatprep.subr.mxu0 0.0
  %3190 = vmatpush2.msra.mxu0 0.0
  %3191 = vmatprep.subr.mxu0 0.0
  %3192 = vmatpush2.msra.mxu0 0.0
  %3193 = vmatprep.subr.mxu0 0.0
  %3194 = vmatpush2.msra.mxu0 0.0
  %3195 = vmatprep.subr.mxu0 0.0
  %3196 = vmatpush2.msra.mxu0 0.0
  %3197 = vmatprep.subr.mxu0 0.0
  %3198 = vmatpush2.msra.mxu0 0.0
  %3199 = vmatprep.subr.mxu0 0.0
  %3200 = vmatpush2.msra.mxu0 0.0
  %3201 = vmatprep.subr.mxu0 0.0
  %3202 = vmatpush2.msra.mxu0 0.0
  %3203 = vmatprep.subr.mxu0 0.0
  %3204 = vmatpush2.msra.mxu0 0.0
  %3205 = vmatprep.subr.mxu0 0.0
  %3206 = vmatpush2.msra.mxu0 0.0
  %3207 = vmatprep.subr.mxu0 0.0
  %3208 = vmatpush2.msra.mxu0 0.0
  %3209 = vmatprep.subr.mxu0 0.0
  %3210 = vmatpush2.msra.mxu0 0.0
  %3211 = vmatprep.subr.mxu0 0.0
  %3212 = vmatpush2.msra.mxu0 0.0
  %3213 = vmatprep.mubr.f32.mxu0 0.0
  %3214 = vmatmul.mubr.f32.gmra.mxu0 %v2857
  %v3215 = vpop.f32.mrf.mxu0
  %v3216 = vadd.f32 %v477, %v3215
  %v3217 = vpop.f32.mrf.mxu0
  %3218 = vdwg.mxu0
  %v3219 = vadd.f32 %v3216, %v3146
  %v3220 = vxor.u32 %v3219, 2147483648
  %v3221 = vmul.f32 %v3220, 1.442695
  %v3222 = vpow.pop %v3221
  %v3223 = vadd.f32 %v3222, 1.0
  %v3224 = vrcp.pop %v3223
  %v3225 = vmul.f32 1.0, %v3224
  %v3226 = vsub.f32 %v2783, %v3078
  %v3227 = vmul.f32 %v3225, %v3226
  %v3228 = vadd.f32 %v3078, %v3227
  %s3229 = scalar_lea.vmem %s0, 56
  %v3230 = vld [vmem:[%s3229] sm:$0xff]
  %3231 = vmatprep.subr.mxu0 0.0
  %3232 = vmatpush1.msra.mxu0 %v52
  %3233 = vmatprep.subr.mxu0 0.0
  %3234 = vmatpush1.msra.mxu0 %v51
  %3235 = vmatprep.subr.mxu0 0.0
  %3236 = vmatpush1.msra.mxu0 %v50
  %3237 = vmatprep.subr.mxu0 0.0
  %3238 = vmatpush1.msra.mxu0 %v49
  %3239 = vmatprep.subr.mxu0 0.0
  %3240 = vmatpush1.msra.mxu0 %v48
  %3241 = vmatprep.subr.mxu0 0.0
  %3242 = vmatpush1.msra.mxu0 %v47
  %3243 = vmatprep.subr.mxu0 0.0
  %3244 = vmatpush1.msra.mxu0 %v46
  %3245 = vmatprep.subr.mxu0 0.0
  %3246 = vmatpush1.msra.mxu0 %v45
  %3247 = vmatprep.subr.mxu0 0.0
  %3248 = vmatpush1.msra.mxu0 %v44
  %3249 = vmatprep.subr.mxu0 0.0
  %3250 = vmatpush1.msra.mxu0 %v43
  %3251 = vmatprep.subr.mxu0 0.0
  %3252 = vmatpush1.msra.mxu0 %v42
  %3253 = vmatprep.subr.mxu0 0.0
  %3254 = vmatpush1.msra.mxu0 %v41
  %3255 = vmatprep.subr.mxu0 0.0
  %3256 = vmatpush1.msra.mxu0 %v40
  %3257 = vmatprep.subr.mxu0 0.0
  %3258 = vmatpush1.msra.mxu0 %v39
  %3259 = vmatprep.subr.mxu0 0.0
  %3260 = vmatpush1.msra.mxu0 %v38
  %3261 = vmatprep.subr.mxu0 0.0
  %3262 = vmatpush1.msra.mxu0 %v37
  %3263 = vmatprep.subr.mxu0 0.0
  %3264 = vmatpush2.msra.mxu0 0.0
  %3265 = vmatprep.subr.mxu0 0.0
  %3266 = vmatpush2.msra.mxu0 0.0
  %3267 = vmatprep.subr.mxu0 0.0
  %3268 = vmatpush2.msra.mxu0 0.0
  %3269 = vmatprep.subr.mxu0 0.0
  %3270 = vmatpush2.msra.mxu0 0.0
  %3271 = vmatprep.subr.mxu0 0.0
  %3272 = vmatpush2.msra.mxu0 0.0
  %3273 = vmatprep.subr.mxu0 0.0
  %3274 = vmatpush2.msra.mxu0 0.0
  %3275 = vmatprep.subr.mxu0 0.0
  %3276 = vmatpush2.msra.mxu0 0.0
  %3277 = vmatprep.subr.mxu0 0.0
  %3278 = vmatpush2.msra.mxu0 0.0
  %3279 = vmatprep.subr.mxu0 0.0
  %3280 = vmatpush2.msra.mxu0 0.0
  %3281 = vmatprep.subr.mxu0 0.0
  %3282 = vmatpush2.msra.mxu0 0.0
  %3283 = vmatprep.subr.mxu0 0.0
  %3284 = vmatpush2.msra.mxu0 0.0
  %3285 = vmatprep.subr.mxu0 0.0
  %3286 = vmatpush2.msra.mxu0 0.0
  %3287 = vmatprep.subr.mxu0 0.0
  %3288 = vmatpush2.msra.mxu0 0.0
  %3289 = vmatprep.subr.mxu0 0.0
  %3290 = vmatpush2.msra.mxu0 0.0
  %3291 = vmatprep.subr.mxu0 0.0
  %3292 = vmatpush2.msra.mxu0 0.0
  %3293 = vmatprep.subr.mxu0 0.0
  %3294 = vmatpush2.msra.mxu0 0.0
  %3295 = vmatprep.mubr.f32.mxu0 0.0
  %3296 = vmatmul.mubr.f32.gmra.mxu0 %v3228
  %v3297 = vpop.f32.mrf.mxu0
  %v3298 = vadd.f32 0.0, %v3297
  %v3299 = vpop.f32.mrf.mxu0
  %3300 = vdwg.mxu0
  %v3302 = vsel %vm131, %v3230, 0
  %3304 = vmatprep.subr.mxu0 0.0
  %3305 = vmatpush1.msra.mxu0 0.0
  %3306 = vmatprep.subr.mxu0 0.0
  %3307 = vmatpush1.msra.mxu0 0.0
  %3308 = vmatprep.subr.mxu0 0.0
  %3309 = vmatpush1.msra.mxu0 0.0
  %3310 = vmatprep.subr.mxu0 0.0
  %3311 = vmatpush1.msra.mxu0 0.0
  %3312 = vmatprep.subr.mxu0 0.0
  %3313 = vmatpush1.msra.mxu0 0.0
  %3314 = vmatprep.subr.mxu0 0.0
  %3315 = vmatpush1.msra.mxu0 0.0
  %3316 = vmatprep.subr.mxu0 0.0
  %3317 = vmatpush1.msra.mxu0 0.0
  %3318 = vmatprep.subr.mxu0 0.0
  %3319 = vmatpush1.msra.mxu0 0.0
  %3320 = vmatprep.subr.mxu0 0.0
  %3321 = vmatpush1.msra.mxu0 0.0
  %3322 = vmatprep.subr.mxu0 0.0
  %3323 = vmatpush1.msra.mxu0 0.0
  %3324 = vmatprep.subr.mxu0 0.0
  %3325 = vmatpush1.msra.mxu0 0.0
  %3326 = vmatprep.subr.mxu0 0.0
  %3327 = vmatpush1.msra.mxu0 0.0
  %3328 = vmatprep.subr.mxu0 0.0
  %3329 = vmatpush1.msra.mxu0 0.0
  %3330 = vmatprep.subr.mxu0 0.0
  %3331 = vmatpush1.msra.mxu0 0.0
  %3332 = vmatprep.subr.mxu0 0.0
  %3333 = vmatpush1.msra.mxu0 %v124
  %3334 = vmatprep.subr.mxu0 0.0
  %3335 = vmatpush1.msra.mxu0 %v123
  %3336 = vmatprep.subr.mxu0 0.0
  %3337 = vmatpush2.msra.mxu0 0.0
  %3338 = vmatprep.subr.mxu0 0.0
  %3339 = vmatpush2.msra.mxu0 0.0
  %3340 = vmatprep.subr.mxu0 0.0
  %3341 = vmatpush2.msra.mxu0 0.0
  %3342 = vmatprep.subr.mxu0 0.0
  %3343 = vmatpush2.msra.mxu0 0.0
  %3344 = vmatprep.subr.mxu0 0.0
  %3345 = vmatpush2.msra.mxu0 0.0
  %3346 = vmatprep.subr.mxu0 0.0
  %3347 = vmatpush2.msra.mxu0 0.0
  %3348 = vmatprep.subr.mxu0 0.0
  %3349 = vmatpush2.msra.mxu0 0.0
  %3350 = vmatprep.subr.mxu0 0.0
  %3351 = vmatpush2.msra.mxu0 0.0
  %3352 = vmatprep.subr.mxu0 0.0
  %3353 = vmatpush2.msra.mxu0 0.0
  %3354 = vmatprep.subr.mxu0 0.0
  %3355 = vmatpush2.msra.mxu0 0.0
  %3356 = vmatprep.subr.mxu0 0.0
  %3357 = vmatpush2.msra.mxu0 0.0
  %3358 = vmatprep.subr.mxu0 0.0
  %3359 = vmatpush2.msra.mxu0 0.0
  %3360 = vmatprep.subr.mxu0 0.0
  %3361 = vmatpush2.msra.mxu0 0.0
  %3362 = vmatprep.subr.mxu0 0.0
  %3363 = vmatpush2.msra.mxu0 0.0
  %3364 = vmatprep.subr.mxu0 0.0
  %3365 = vmatpush2.msra.mxu0 0.0
  %3366 = vmatprep.subr.mxu0 0.0
  %3367 = vmatpush2.msra.mxu0 0.0
  %3368 = vmatprep.mubr.f32.mxu0 0.0
  %3369 = vmatmul.mubr.f32.gmra.mxu0 %v3302
  %v3370 = vpop.f32.mrf.mxu0
  %v3371 = vadd.f32 %v129, %v3370
  %v3372 = vpop.f32.mrf.mxu0
  %3373 = vdwg.mxu0
  %v3374 = vadd.f32 %v3371, %v3298
  %v3375 = vxor.u32 %v3374, 2147483648
  %v3376 = vmul.f32 %v3375, 1.442695
  %v3377 = vpow.pop %v3376
  %v3378 = vadd.f32 %v3377, 1.0
  %v3379 = vrcp.pop %v3378
  %v3380 = vmul.f32 1.0, %v3379
  %3381 = vmatprep.subr.mxu0 0.0
  %3382 = vmatpush1.msra.mxu0 %v227
  %3383 = vmatprep.subr.mxu0 0.0
  %3384 = vmatpush1.msra.mxu0 %v226
  %3385 = vmatprep.subr.mxu0 0.0
  %3386 = vmatpush1.msra.mxu0 %v225
  %3387 = vmatprep.subr.mxu0 0.0
  %3388 = vmatpush1.msra.mxu0 %v224
  %3389 = vmatprep.subr.mxu0 0.0
  %3390 = vmatpush1.msra.mxu0 %v223
  %3391 = vmatprep.subr.mxu0 0.0
  %3392 = vmatpush1.msra.mxu0 %v222
  %3393 = vmatprep.subr.mxu0 0.0
  %3394 = vmatpush1.msra.mxu0 %v221
  %3395 = vmatprep.subr.mxu0 0.0
  %3396 = vmatpush1.msra.mxu0 %v220
  %3397 = vmatprep.subr.mxu0 0.0
  %3398 = vmatpush1.msra.mxu0 %v219
  %3399 = vmatprep.subr.mxu0 0.0
  %3400 = vmatpush1.msra.mxu0 %v218
  %3401 = vmatprep.subr.mxu0 0.0
  %3402 = vmatpush1.msra.mxu0 %v217
  %3403 = vmatprep.subr.mxu0 0.0
  %3404 = vmatpush1.msra.mxu0 %v216
  %3405 = vmatprep.subr.mxu0 0.0
  %3406 = vmatpush1.msra.mxu0 %v215
  %3407 = vmatprep.subr.mxu0 0.0
  %3408 = vmatpush1.msra.mxu0 %v214
  %3409 = vmatprep.subr.mxu0 0.0
  %3410 = vmatpush1.msra.mxu0 %v213
  %3411 = vmatprep.subr.mxu0 0.0
  %3412 = vmatpush1.msra.mxu0 %v212
  %3413 = vmatprep.subr.mxu0 0.0
  %3414 = vmatpush2.msra.mxu0 0.0
  %3415 = vmatprep.subr.mxu0 0.0
  %3416 = vmatpush2.msra.mxu0 0.0
  %3417 = vmatprep.subr.mxu0 0.0
  %3418 = vmatpush2.msra.mxu0 0.0
  %3419 = vmatprep.subr.mxu0 0.0
  %3420 = vmatpush2.msra.mxu0 0.0
  %3421 = vmatprep.subr.mxu0 0.0
  %3422 = vmatpush2.msra.mxu0 0.0
  %3423 = vmatprep.subr.mxu0 0.0
  %3424 = vmatpush2.msra.mxu0 0.0
  %3425 = vmatprep.subr.mxu0 0.0
  %3426 = vmatpush2.msra.mxu0 0.0
  %3427 = vmatprep.subr.mxu0 0.0
  %3428 = vmatpush2.msra.mxu0 0.0
  %3429 = vmatprep.subr.mxu0 0.0
  %3430 = vmatpush2.msra.mxu0 0.0
  %3431 = vmatprep.subr.mxu0 0.0
  %3432 = vmatpush2.msra.mxu0 0.0
  %3433 = vmatprep.subr.mxu0 0.0
  %3434 = vmatpush2.msra.mxu0 0.0
  %3435 = vmatprep.subr.mxu0 0.0
  %3436 = vmatpush2.msra.mxu0 0.0
  %3437 = vmatprep.subr.mxu0 0.0
  %3438 = vmatpush2.msra.mxu0 0.0
  %3439 = vmatprep.subr.mxu0 0.0
  %3440 = vmatpush2.msra.mxu0 0.0
  %3441 = vmatprep.subr.mxu0 0.0
  %3442 = vmatpush2.msra.mxu0 0.0
  %3443 = vmatprep.subr.mxu0 0.0
  %3444 = vmatpush2.msra.mxu0 0.0
  %3445 = vmatprep.mubr.f32.mxu0 0.0
  %3446 = vmatmul.mubr.f32.gmra.mxu0 %v3228
  %v3447 = vpop.f32.mrf.mxu0
  %v3448 = vadd.f32 %v232, %v3447
  %v3449 = vpop.f32.mrf.mxu0
  %3450 = vdwg.mxu0
  %3451 = vmatprep.subr.mxu0 0.0
  %3452 = vmatpush1.msra.mxu0 0.0
  %3453 = vmatprep.subr.mxu0 0.0
  %3454 = vmatpush1.msra.mxu0 0.0
  %3455 = vmatprep.subr.mxu0 0.0
  %3456 = vmatpush1.msra.mxu0 0.0
  %3457 = vmatprep.subr.mxu0 0.0
  %3458 = vmatpush1.msra.mxu0 0.0
  %3459 = vmatprep.subr.mxu0 0.0
  %3460 = vmatpush1.msra.mxu0 0.0
  %3461 = vmatprep.subr.mxu0 0.0
  %3462 = vmatpush1.msra.mxu0 0.0
  %3463 = vmatprep.subr.mxu0 0.0
  %3464 = vmatpush1.msra.mxu0 0.0
  %3465 = vmatprep.subr.mxu0 0.0
  %3466 = vmatpush1.msra.mxu0 0.0
  %3467 = vmatprep.subr.mxu0 0.0
  %3468 = vmatpush1.msra.mxu0 0.0
  %3469 = vmatprep.subr.mxu0 0.0
  %3470 = vmatpush1.msra.mxu0 0.0
  %3471 = vmatprep.subr.mxu0 0.0
  %3472 = vmatpush1.msra.mxu0 0.0
  %3473 = vmatprep.subr.mxu0 0.0
  %3474 = vmatpush1.msra.mxu0 0.0
  %3475 = vmatprep.subr.mxu0 0.0
  %3476 = vmatpush1.msra.mxu0 0.0
  %3477 = vmatprep.subr.mxu0 0.0
  %3478 = vmatpush1.msra.mxu0 0.0
  %3479 = vmatprep.subr.mxu0 0.0
  %3480 = vmatpush1.msra.mxu0 %v305
  %3481 = vmatprep.subr.mxu0 0.0
  %3482 = vmatpush1.msra.mxu0 %v304
  %3483 = vmatprep.subr.mxu0 0.0
  %3484 = vmatpush2.msra.mxu0 0.0
  %3485 = vmatprep.subr.mxu0 0.0
  %3486 = vmatpush2.msra.mxu0 0.0
  %3487 = vmatprep.subr.mxu0 0.0
  %3488 = vmatpush2.msra.mxu0 0.0
  %3489 = vmatprep.subr.mxu0 0.0
  %3490 = vmatpush2.msra.mxu0 0.0
  %3491 = vmatprep.subr.mxu0 0.0
  %3492 = vmatpush2.msra.mxu0 0.0
  %3493 = vmatprep.subr.mxu0 0.0
  %3494 = vmatpush2.msra.mxu0 0.0
  %3495 = vmatprep.subr.mxu0 0.0
  %3496 = vmatpush2.msra.mxu0 0.0
  %3497 = vmatprep.subr.mxu0 0.0
  %3498 = vmatpush2.msra.mxu0 0.0
  %3499 = vmatprep.subr.mxu0 0.0
  %3500 = vmatpush2.msra.mxu0 0.0
  %3501 = vmatprep.subr.mxu0 0.0
  %3502 = vmatpush2.msra.mxu0 0.0
  %3503 = vmatprep.subr.mxu0 0.0
  %3504 = vmatpush2.msra.mxu0 0.0
  %3505 = vmatprep.subr.mxu0 0.0
  %3506 = vmatpush2.msra.mxu0 0.0
  %3507 = vmatprep.subr.mxu0 0.0
  %3508 = vmatpush2.msra.mxu0 0.0
  %3509 = vmatprep.subr.mxu0 0.0
  %3510 = vmatpush2.msra.mxu0 0.0
  %3511 = vmatprep.subr.mxu0 0.0
  %3512 = vmatpush2.msra.mxu0 0.0
  %3513 = vmatprep.subr.mxu0 0.0
  %3514 = vmatpush2.msra.mxu0 0.0
  %3515 = vmatprep.mubr.f32.mxu0 0.0
  %3516 = vmatmul.mubr.f32.gmra.mxu0 %v3302
  %v3517 = vpop.f32.mrf.mxu0
  %v3518 = vadd.f32 %v310, %v3517
  %v3519 = vpop.f32.mrf.mxu0
  %3520 = vdwg.mxu0
  %v3521 = vmul.f32 %v3380, %v3448
  %v3522 = vadd.f32 %v3518, %v3521
  %v3523 = vtanh.pop %v3522
  %3524 = vmatprep.subr.mxu0 0.0
  %3525 = vmatpush1.msra.mxu0 %v400
  %3526 = vmatprep.subr.mxu0 0.0
  %3527 = vmatpush1.msra.mxu0 %v399
  %3528 = vmatprep.subr.mxu0 0.0
  %3529 = vmatpush1.msra.mxu0 %v398
  %3530 = vmatprep.subr.mxu0 0.0
  %3531 = vmatpush1.msra.mxu0 %v397
  %3532 = vmatprep.subr.mxu0 0.0
  %3533 = vmatpush1.msra.mxu0 %v396
  %3534 = vmatprep.subr.mxu0 0.0
  %3535 = vmatpush1.msra.mxu0 %v395
  %3536 = vmatprep.subr.mxu0 0.0
  %3537 = vmatpush1.msra.mxu0 %v394
  %3538 = vmatprep.subr.mxu0 0.0
  %3539 = vmatpush1.msra.mxu0 %v393
  %3540 = vmatprep.subr.mxu0 0.0
  %3541 = vmatpush1.msra.mxu0 %v392
  %3542 = vmatprep.subr.mxu0 0.0
  %3543 = vmatpush1.msra.mxu0 %v391
  %3544 = vmatprep.subr.mxu0 0.0
  %3545 = vmatpush1.msra.mxu0 %v390
  %3546 = vmatprep.subr.mxu0 0.0
  %3547 = vmatpush1.msra.mxu0 %v389
  %3548 = vmatprep.subr.mxu0 0.0
  %3549 = vmatpush1.msra.mxu0 %v388
  %3550 = vmatprep.subr.mxu0 0.0
  %3551 = vmatpush1.msra.mxu0 %v387
  %3552 = vmatprep.subr.mxu0 0.0
  %3553 = vmatpush1.msra.mxu0 %v386
  %3554 = vmatprep.subr.mxu0 0.0
  %3555 = vmatpush1.msra.mxu0 %v385
  %3556 = vmatprep.subr.mxu0 0.0
  %3557 = vmatpush2.msra.mxu0 0.0
  %3558 = vmatprep.subr.mxu0 0.0
  %3559 = vmatpush2.msra.mxu0 0.0
  %3560 = vmatprep.subr.mxu0 0.0
  %3561 = vmatpush2.msra.mxu0 0.0
  %3562 = vmatprep.subr.mxu0 0.0
  %3563 = vmatpush2.msra.mxu0 0.0
  %3564 = vmatprep.subr.mxu0 0.0
  %3565 = vmatpush2.msra.mxu0 0.0
  %3566 = vmatprep.subr.mxu0 0.0
  %3567 = vmatpush2.msra.mxu0 0.0
  %3568 = vmatprep.subr.mxu0 0.0
  %3569 = vmatpush2.msra.mxu0 0.0
  %3570 = vmatprep.subr.mxu0 0.0
  %3571 = vmatpush2.msra.mxu0 0.0
  %3572 = vmatprep.subr.mxu0 0.0
  %3573 = vmatpush2.msra.mxu0 0.0
  %3574 = vmatprep.subr.mxu0 0.0
  %3575 = vmatpush2.msra.mxu0 0.0
  %3576 = vmatprep.subr.mxu0 0.0
  %3577 = vmatpush2.msra.mxu0 0.0
  %3578 = vmatprep.subr.mxu0 0.0
  %3579 = vmatpush2.msra.mxu0 0.0
  %3580 = vmatprep.subr.mxu0 0.0
  %3581 = vmatpush2.msra.mxu0 0.0
  %3582 = vmatprep.subr.mxu0 0.0
  %3583 = vmatpush2.msra.mxu0 0.0
  %3584 = vmatprep.subr.mxu0 0.0
  %3585 = vmatpush2.msra.mxu0 0.0
  %3586 = vmatprep.subr.mxu0 0.0
  %3587 = vmatpush2.msra.mxu0 0.0
  %3588 = vmatprep.mubr.f32.mxu0 0.0
  %3589 = vmatmul.mubr.f32.gmra.mxu0 %v3228
  %v3590 = vpop.f32.mrf.mxu0
  %v3591 = vadd.f32 0.0, %v3590
  %v3592 = vpop.f32.mrf.mxu0
  %3593 = vdwg.mxu0
  %3594 = vmatprep.subr.mxu0 0.0
  %3595 = vmatpush1.msra.mxu0 0.0
  %3596 = vmatprep.subr.mxu0 0.0
  %3597 = vmatpush1.msra.mxu0 0.0
  %3598 = vmatprep.subr.mxu0 0.0
  %3599 = vmatpush1.msra.mxu0 0.0
  %3600 = vmatprep.subr.mxu0 0.0
  %3601 = vmatpush1.msra.mxu0 0.0
  %3602 = vmatprep.subr.mxu0 0.0
  %3603 = vmatpush1.msra.mxu0 0.0
  %3604 = vmatprep.subr.mxu0 0.0
  %3605 = vmatpush1.msra.mxu0 0.0
  %3606 = vmatprep.subr.mxu0 0.0
  %3607 = vmatpush1.msra.mxu0 0.0
  %3608 = vmatprep.subr.mxu0 0.0
  %3609 = vmatpush1.msra.mxu0 0.0
  %3610 = vmatprep.subr.mxu0 0.0
  %3611 = vmatpush1.msra.mxu0 0.0
  %3612 = vmatprep.subr.mxu0 0.0
  %3613 = vmatpush1.msra.mxu0 0.0
  %3614 = vmatprep.subr.mxu0 0.0
  %3615 = vmatpush1.msra.mxu0 0.0
  %3616 = vmatprep.subr.mxu0 0.0
  %3617 = vmatpush1.msra.mxu0 0.0
  %3618 = vmatprep.subr.mxu0 0.0
  %3619 = vmatpush1.msra.mxu0 0.0
  %3620 = vmatprep.subr.mxu0 0.0
  %3621 = vmatpush1.msra.mxu0 0.0
  %3622 = vmatprep.subr.mxu0 0.0
  %3623 = vmatpush1.msra.mxu0 %v472
  %3624 = vmatprep.subr.mxu0 0.0
  %3625 = vmatpush1.msra.mxu0 %v471
  %3626 = vmatprep.subr.mxu0 0.0
  %3627 = vmatpush2.msra.mxu0 0.0
  %3628 = vmatprep.subr.mxu0 0.0
  %3629 = vmatpush2.msra.mxu0 0.0
  %3630 = vmatprep.subr.mxu0 0.0
  %3631 = vmatpush2.msra.mxu0 0.0
  %3632 = vmatprep.subr.mxu0 0.0
  %3633 = vmatpush2.msra.mxu0 0.0
  %3634 = vmatprep.subr.mxu0 0.0
  %3635 = vmatpush2.msra.mxu0 0.0
  %3636 = vmatprep.subr.mxu0 0.0
  %3637 = vmatpush2.msra.mxu0 0.0
  %3638 = vmatprep.subr.mxu0 0.0
  %3639 = vmatpush2.msra.mxu0 0.0
  %3640 = vmatprep.subr.mxu0 0.0
  %3641 = vmatpush2.msra.mxu0 0.0
  %3642 = vmatprep.subr.mxu0 0.0
  %3643 = vmatpush2.msra.mxu0 0.0
  %3644 = vmatprep.subr.mxu0 0.0
  %3645 = vmatpush2.msra.mxu0 0.0
  %3646 = vmatprep.subr.mxu0 0.0
  %3647 = vmatpush2.msra.mxu0 0.0
  %3648 = vmatprep.subr.mxu0 0.0
  %3649 = vmatpush2.msra.mxu0 0.0
  %3650 = vmatprep.subr.mxu0 0.0
  %3651 = vmatpush2.msra.mxu0 0.0
  %3652 = vmatprep.subr.mxu0 0.0
  %3653 = vmatpush2.msra.mxu0 0.0
  %3654 = vmatprep.subr.mxu0 0.0
  %3655 = vmatpush2.msra.mxu0 0.0
  %3656 = vmatprep.subr.mxu0 0.0
  %3657 = vmatpush2.msra.mxu0 0.0
  %3658 = vmatprep.mubr.f32.mxu0 0.0
  %3659 = vmatmul.mubr.f32.gmra.mxu0 %v3302
  %v3660 = vpop.f32.mrf.mxu0
  %v3661 = vadd.f32 %v477, %v3660
  %v3662 = vpop.f32.mrf.mxu0
  %3663 = vdwg.mxu0
  %v3664 = vadd.f32 %v3661, %v3591
  %v3665 = vxor.u32 %v3664, 2147483648
  %v3666 = vmul.f32 %v3665, 1.442695
  %v3667 = vpow.pop %v3666
  %v3668 = vadd.f32 %v3667, 1.0
  %v3669 = vrcp.pop %v3668
  %v3670 = vmul.f32 1.0, %v3669
  %v3671 = vsub.f32 %v3228, %v3523
  %v3672 = vmul.f32 %v3670, %v3671
  %v3673 = vadd.f32 %v3523, %v3672
  %3674 = vst [vmem:[#allocation2] sm:$0xff] %v3673
  // Predicated region
  $region34: #{qnetwork_rnn_forward.1} parent=0 // pred_check
    %p3675 = pneg %p26
  $region35: #{qnetwork_rnn_forward.1} parent=0 // pred_check_branch
    %3677 = sbr.rel (%p3675) target = $region37
  $region36: #{qnetwork_rnn_forward.1} parent=0 // pred_region
    %v3678 = vld [vmem:[#allocation2] sm:$0xff]
    %v3679 = vld [vmem:[%s5] sm:$0xff]
    %v3680 = vld [vmem:[%s5 + $0x8] sm:$0xff]
    %v3681 = vld [vmem:[%s5 + $0x10] sm:$0xff]
    %v3682 = vld [vmem:[%s5 + $0x18] sm:$0xff]
    %v3683 = vld [vmem:[%s5 + $0x20] sm:$0xff]
    %v3684 = vld [vmem:[%s5 + $0x28] sm:$0xff]
    %v3685 = vld [vmem:[%s5 + $0x30] sm:$0xff]
    %v3686 = vld [vmem:[%s5 + $0x38] sm:$0xff]
    %v3687 = vld [vmem:[%s5 + $0x40] sm:$0xff]
    %v3688 = vld [vmem:[%s5 + $0x48] sm:$0xff]
    %v3689 = vld [vmem:[%s5 + $0x50] sm:$0xff]
    %v3690 = vld [vmem:[%s5 + $0x58] sm:$0xff]
    %v3691 = vld [vmem:[%s5 + $0x60] sm:$0xff]
    %v3692 = vld [vmem:[%s5 + $0x68] sm:$0xff]
    %v3693 = vld [vmem:[%s5 + $0x70] sm:$0xff]
    %v3694 = vld [vmem:[%s5 + $0x78] sm:$0xff]
    %v3695 = vld [vmem:[%s6] sm:$0x1]
    %v3697 = vlaneseq
    %v3698 = vshrl.u32 %v3697, 7
    %v3699 = vsub.s32 0, %v3698
    %v3700 = vrot.slane %v3695, %v3699
    %3702 = vmatprep.subr.mxu0 0.0
    %3703 = vmatpush1.msra.mxu0 %v3694
    %3704 = vmatprep.subr.mxu0 0.0
    %3705 = vmatpush1.msra.mxu0 %v3693
    %3706 = vmatprep.subr.mxu0 0.0
    %3707 = vmatpush1.msra.mxu0 %v3692
    %3708 = vmatprep.subr.mxu0 0.0
    %3709 = vmatpush1.msra.mxu0 %v3691
    %3710 = vmatprep.subr.mxu0 0.0
    %3711 = vmatpush1.msra.mxu0 %v3690
    %3712 = vmatprep.subr.mxu0 0.0
    %3713 = vmatpush1.msra.mxu0 %v3689
    %3714 = vmatprep.subr.mxu0 0.0
    %3715 = vmatpush1.msra.mxu0 %v3688
    %3716 = vmatprep.subr.mxu0 0.0
    %3717 = vmatpush1.msra.mxu0 %v3687
    %3718 = vmatprep.subr.mxu0 0.0
    %3719 = vmatpush1.msra.mxu0 %v3686
    %3720 = vmatprep.subr.mxu0 0.0
    %3721 = vmatpush1.msra.mxu0 %v3685
    %3722 = vmatprep.subr.mxu0 0.0
    %3723 = vmatpush1.msra.mxu0 %v3684
    %3724 = vmatprep.subr.mxu0 0.0
    %3725 = vmatpush1.msra.mxu0 %v3683
    %3726 = vmatprep.subr.mxu0 0.0
    %3727 = vmatpush1.msra.mxu0 %v3682
    %3728 = vmatprep.subr.mxu0 0.0
    %3729 = vmatpush1.msra.mxu0 %v3681
    %3730 = vmatprep.subr.mxu0 0.0
    %3731 = vmatpush1.msra.mxu0 %v3680
    %3732 = vmatprep.subr.mxu0 0.0
    %3733 = vmatpush1.msra.mxu0 %v3679
    %3734 = vmatprep.subr.mxu0 0.0
    %3735 = vmatpush2.msra.mxu0 0.0
    %3736 = vmatprep.subr.mxu0 0.0
    %3737 = vmatpush2.msra.mxu0 0.0
    %3738 = vmatprep.subr.mxu0 0.0
    %3739 = vmatpush2.msra.mxu0 0.0
    %3740 = vmatprep.subr.mxu0 0.0
    %3741 = vmatpush2.msra.mxu0 0.0
    %3742 = vmatprep.subr.mxu0 0.0
    %3743 = vmatpush2.msra.mxu0 0.0
    %3744 = vmatprep.subr.mxu0 0.0
    %3745 = vmatpush2.msra.mxu0 0.0
    %3746 = vmatprep.subr.mxu0 0.0
    %3747 = vmatpush2.msra.mxu0 0.0
    %3748 = vmatprep.subr.mxu0 0.0
    %3749 = vmatpush2.msra.mxu0 0.0
    %3750 = vmatprep.subr.mxu0 0.0
    %3751 = vmatpush2.msra.mxu0 0.0
    %3752 = vmatprep.subr.mxu0 0.0
    %3753 = vmatpush2.msra.mxu0 0.0
    %3754 = vmatprep.subr.mxu0 0.0
    %3755 = vmatpush2.msra.mxu0 0.0
    %3756 = vmatprep.subr.mxu0 0.0
    %3757 = vmatpush2.msra.mxu0 0.0
    %3758 = vmatprep.subr.mxu0 0.0
    %3759 = vmatpush2.msra.mxu0 0.0
    %3760 = vmatprep.subr.mxu0 0.0
    %3761 = vmatpush2.msra.mxu0 0.0
    %3762 = vmatprep.subr.mxu0 0.0
    %3763 = vmatpush2.msra.mxu0 0.0
    %3764 = vmatprep.subr.mxu0 0.0
    %3765 = vmatpush2.msra.mxu0 0.0
    %3766 = vmatprep.mubr.f32.mxu0 0.0
    %3767 = vmatmul.mubr.f32.gmra.mxu0 %v3678
    %v3768 = vpop.f32.mrf.mxu0
    %v3769 = vadd.f32 %v3700, %v3768
    %v3770 = vpop.f32.mrf.mxu0
    %3771 = vdwg.mxu0
    %3772 = vst [vmem:[%s7] sm:$0xff] %v3769
  $region37: #{qnetwork_rnn_forward.1} parent=0 // pred_fallthru
    _
  // Predicated region
  $region38: #{qnetwork_rnn_forward.1} parent=0 // pred_check
    _
  $region39: #{qnetwork_rnn_forward.1} parent=0 // pred_check_branch
    %3774 = sbr.rel (0) target = $region41
  $region40: #{qnetwork_rnn_forward.1} parent=0 // pred_region
    _
  $region41: #{qnetwork_rnn_forward.1} parent=0 // pred_fallthru
    _
  // Predicated region
  $region42: #{qnetwork_rnn_forward.1} parent=0 // pred_check
    _
  $region43: #{qnetwork_rnn_forward.1} parent=0 // pred_check_branch
    %3776 = sbr.rel (0) target = $region45
  $region44: #{qnetwork_rnn_forward.1} parent=0 // pred_region
    _
  $region45: #{qnetwork_rnn_forward.1} parent=0 // pred_fallthru
    _

</llo_original>
